<compile_context>
chip_gen: v7x
topology: tpu7x:2x2x1
jax: 0.10.0
libtpu: 0.0.40
codegen_flags: <defaults>
</compile_context>

<pallas_src>
import jax
import jax.numpy as jnp
from jax.experimental import pallas as pl
from jax.experimental.pallas import tpu as pltpu


_VMEM_SPEC = pl.BlockSpec(memory_space=pltpu.MemorySpace.VMEM)
_BN_EPS = 1e-5


# ---------------------------------------------------------------------------
# Pallas kernels
# ---------------------------------------------------------------------------
def _conv_bn_relu_pool_body(p_ref, w_ref, g_ref, be_ref):
    """Conv3x3 (as 4 corner matmuls) + BatchNorm(batch stats) + ReLU + 2x2 maxpool.

    p_ref : (4, N*R, Kpad) bf16  im2col rows grouped by 2x2-pool corner,
                                 R = (H/2)*(W/2) pooled pixels, Kpad = pad128(9*Cin).
    w_ref : (Kpad, Cout)  bf16   conv weight (HWIO flattened, zero-padded rows).
    g_ref : (1, Cout)     f32    BN gamma.
    be_ref: (1, Cout)     f32    BN beta.
    returns (N*R, Cout) f32 pooled activations (rows ordered n-major, then i, j).

    The conv bias is omitted on purpose: training-mode BatchNorm follows, so a
    per-channel bias cancels exactly in (y - mean).
    """
    nr = p_ref.shape[1]
    cnt = 4.0 * nr                       # N*H*W conv-output positions
    w = w_ref[...]

    # One batch-fused MXU matmul per pool corner (M = N*R), f32 accumulation.
    ys = [jnp.dot(p_ref[q], w, preferred_element_type=jnp.float32)
          for q in range(4)]

    # One-pass BatchNorm2d training statistics (biased variance, as PyTorch).
    s = sum(jnp.sum(y, axis=0, keepdims=True) for y in ys)
    ss = sum(jnp.sum(y * y, axis=0, keepdims=True) for y in ys)
    mean = s * (1.0 / cnt)
    var = jnp.maximum(ss * (1.0 / cnt) - mean * mean, 0.0)
    inv = jax.lax.rsqrt(var + _BN_EPS)
    scale = g_ref[...] * inv
    shift = be_ref[...] - mean * scale

    # Normalize + ReLU, then 2x2 max-pool = elementwise max over the 4 corners.
    a = [jnp.maximum(y * scale + shift, 0.0) for y in ys]
    return jnp.maximum(jnp.maximum(a[0], a[1]), jnp.maximum(a[2], a[3]))


def _conv_block_kernel(p_ref, w_ref, g_ref, be_ref, o_ref):
    """One encoder block: Conv3x3 -> BN(batch stats) -> ReLU -> MaxPool2."""
    o_ref[...] = _conv_bn_relu_pool_body(p_ref, w_ref, g_ref, be_ref)


def _conv_block_head_kernel(p_ref, w_ref, g_ref, be_ref,
                            wfc_ref, bfc_ref, w1_ref, w2_ref,
                            h_ref, z_ref):
    """Last encoder block fused with AdaptiveAvgPool(1,1) + fc + projector."""
    feat = _conv_bn_relu_pool_body(p_ref, w_ref, g_ref, be_ref)   # (N*R, 256)
    n = h_ref.shape[0]
    r = feat.shape[0] // n
    if r == 1:
        pooled = feat                                             # (N, 256)
    else:
        pooled = jnp.mean(feat.reshape(n, r, feat.shape[-1]), axis=1)
    h = jnp.dot(pooled, wfc_ref[...],
                preferred_element_type=jnp.float32) + bfc_ref[...]
    h_ref[...] = h
    t = jnp.maximum(jnp.dot(h, w1_ref[...],
                            preferred_element_type=jnp.float32), 0.0)
    z_ref[...] = jnp.dot(t, w2_ref[...], preferred_element_type=jnp.float32)


# ---------------------------------------------------------------------------
# Wrappers (layout / patch extraction / pallas_call plumbing)
# ---------------------------------------------------------------------------
def _im2col_pool_groups(x):
    """x: (N,H,W,C) -> (4, N*(H/2)*(W/2), 9*C) im2col rows grouped by pool corner."""
    N, H, W, C = x.shape
    xp = jnp.pad(x, ((0, 0), (1, 1), (1, 1), (0, 0)))
    cols = [xp[:, dy:dy + H, dx:dx + W, :] for dy in range(3) for dx in range(3)]
    pat = jnp.concatenate(cols, axis=-1)                   # (N, H, W, 9C)
    pat = pat.reshape(N, H // 2, 2, W // 2, 2, 9 * C)
    pat = pat.transpose(2, 4, 0, 1, 3, 5)                  # (di, dj, N, i, j, 9C)
    return pat.reshape(4, N * (H // 2) * (W // 2), 9 * C)


def _pad_contraction(patches, wmat, mult=128):
    """Zero-pad the shared contraction dim to a multiple of `mult` (MXU/lane align)."""
    k = wmat.shape[0]
    kp = ((k + mult - 1) // mult) * mult
    if kp != k:
        patches = jnp.pad(patches, ((0, 0), (0, 0), (0, kp - k)))
        wmat = jnp.pad(wmat, ((0, kp - k), (0, 0)))
    return patches, wmat


def conv_bn_relu_pool(x, w, gamma, beta):
    """One encoder block on NHWC input; returns NHWC pooled output."""
    N, H, W, Cin = x.shape
    Cout = w.shape[-1]
    patches = _im2col_pool_groups(x)
    wmat = w.reshape(9 * Cin, Cout)
    patches, wmat = _pad_contraction(patches, wmat)
    out = pl.pallas_call(
        _conv_block_kernel,
        out_shape=jax.ShapeDtypeStruct((N * (H // 2) * (W // 2), Cout),
                                       jnp.float32),
        in_specs=[_VMEM_SPEC] * 4,
        out_specs=_VMEM_SPEC,
    )(patches.astype(jnp.bfloat16), wmat.astype(jnp.bfloat16),
      gamma.reshape(1, Cout), beta.reshape(1, Cout))
    return out.reshape(N, H // 2, W // 2, Cout)


def conv_block_head(x, w, gamma, beta, wfc, bfc, w1, w2):
    """Last encoder block + adaptive avg-pool + fc + projector, fused."""
    N, H, W, Cin = x.shape
    Cout = w.shape[-1]
    patches = _im2col_pool_groups(x)
    wmat = w.reshape(9 * Cin, Cout)
    patches, wmat = _pad_contraction(patches, wmat)
    h_dim = wfc.shape[1]
    p_dim = w2.shape[1]
    h, z = pl.pallas_call(
        _conv_block_head_kernel,
        out_shape=(jax.ShapeDtypeStruct((N, h_dim), jnp.float32),
                   jax.ShapeDtypeStruct((N, p_dim), jnp.float32)),
        in_specs=[_VMEM_SPEC] * 8,
        out_specs=(_VMEM_SPEC, _VMEM_SPEC),
    )(patches.astype(jnp.bfloat16), wmat.astype(jnp.bfloat16),
      gamma.reshape(1, Cout), beta.reshape(1, Cout),
      wfc, bfc.reshape(1, h_dim), w1, w2)
    return h, z


def encode_project(x_nhwc, params):
    y = x_nhwc
    for i in range(1, 4):
        y = conv_bn_relu_pool(y, params[f'conv{i}_w'],
                              params[f'bn{i}_g'], params[f'bn{i}_b'])
    h, z = conv_block_head(y, params['conv4_w'],
                           params['bn4_g'], params['bn4_b'],
                           params['fc_w'], params['fc_b'],
                           params['proj_w1'], params['proj_w2'])
    return h, z


@jax.jit
def cl_forward(x_nchw, params):
    # TODO(synk): simclr_transform (torchvision random ColorJitter / rotation /
    # flips / affine / GaussianBlur / RandomResizedCrop) is stochastic host-side
    # preprocessing with no Pallas equivalent; the identity transform is used,
    # so both views are identical and the encoder+projector run ONCE (exact,
    # and half the FLOPs/DMA).  With real augmentations, concatenate both views
    # along the batch dim and run a single pass instead.
    x = jnp.transpose(x_nchw, (0, 2, 3, 1))        # NCHW -> NHWC
    h, z = encode_project(x, params)
    return z, z, h, h


# ---------------------------------------------------------------------------
# Deterministic parameter init (shapes from the module's __init__)
# ---------------------------------------------------------------------------
def init_params(key, in_channels=5, h_dim=32, projection_dim=32):
    chans = [in_channels, 32, 64, 128, 256]
    keys = jax.random.split(key, 8)
    params = {}
    for i in range(4):
        cin, cout = chans[i], chans[i + 1]
        params[f'conv{i + 1}_w'] = (jax.random.normal(
            keys[i], (3, 3, cin, cout), jnp.float32) * (2.0 / (9 * cin)) ** 0.5)
        # Conv bias exists in the PyTorch module but is cancelled exactly by the
        # training-mode BatchNorm that follows; kept here for parameter-shape
        # fidelity, intentionally unused by the kernels.
        params[f'conv{i + 1}_b'] = jnp.zeros((cout,), jnp.float32)
        params[f'bn{i + 1}_g'] = jnp.ones((cout,), jnp.float32)   # PyTorch default
        params[f'bn{i + 1}_b'] = jnp.zeros((cout,), jnp.float32)
    params['fc_w'] = jax.random.normal(keys[4], (256, h_dim),
                                       jnp.float32) * (1.0 / 256) ** 0.5
    params['fc_b'] = jnp.zeros((h_dim,), jnp.float32)
    params['proj_w1'] = jax.random.normal(keys[5], (h_dim, h_dim),
                                          jnp.float32) * (1.0 / h_dim) ** 0.5
    params['proj_w2'] = jax.random.normal(keys[6], (h_dim, projection_dim),
                                          jnp.float32) * (1.0 / h_dim) ** 0.5
    return params


if __name__ == "__main__":
    key = jax.random.PRNGKey(0)
    pkey, xkey = jax.random.split(key)
    params = init_params(pkey, in_channels=5, h_dim=32, projection_dim=32)
    # Small shapes consistent with the module: batch=2, channels=5, spatial=16.
    x = jax.random.normal(xkey, (2, 5, 16, 16), jnp.float32)   # NCHW like PyTorch
    z_i, z_j, h_i, h_j = cl_forward(x, params)
    jax.block_until_ready((z_i, z_j, h_i, h_j))
    assert z_i.shape == (2, 32) and z_j.shape == (2, 32)
    assert h_i.shape == (2, 32) and h_j.shape == (2, 32)
    print("KERNEL_OK")
</pallas_src>

<mosaic_0001>
module attributes {stable_mosaic.version = 11 : i64} {
  func.func @_conv_block_kernel(%arg0: memref<4x128x128xbf16, #tpu.memory_space<vmem>>, %arg1: memref<128x32xbf16, #tpu.memory_space<vmem>>, %arg2: memref<1x32xf32, #tpu.memory_space<vmem>>, %arg3: memref<1x32xf32, #tpu.memory_space<vmem>>, %arg4: memref<128x32xf32, #tpu.memory_space<vmem>>) attributes {dimension_semantics = [], scalar_prefetch = 0 : i64, scratch_operands = 0 : i64, tpu.core_type = #tpu.core_type<tc>} {
    %c0 = arith.constant 0 : index
    %c0_0 = arith.constant 0 : index
    %0 = vector.load %arg1[%c0, %c0_0] : memref<128x32xbf16, #tpu.memory_space<vmem>>, vector<128x32xbf16>
    %c0_1 = arith.constant 0 : index
    %c0_2 = arith.constant 0 : index
    %c0_3 = arith.constant 0 : index
    %1 = vector.load %arg0[%c0_1, %c0_2, %c0_3] : memref<4x128x128xbf16, #tpu.memory_space<vmem>>, vector<1x128x128xbf16>
    %2 = vector.shape_cast %1 : vector<1x128x128xbf16> to vector<128x128xbf16>
    %cst = arith.constant dense<0.000000e+00> : vector<128x32xf32>
    %3 = tpu.matmul %2, %0, %cst {dimension_numbers = #tpu.dot_dimension_numbers<[1], [0], [0], [1], [0, 0, 1, 1], [], []>} : vector<128x128xbf16>, vector<128x32xbf16>, vector<128x32xf32> -> vector<128x32xf32>
    %c1 = arith.constant 1 : index
    %c0_4 = arith.constant 0 : index
    %c0_5 = arith.constant 0 : index
    %4 = vector.load %arg0[%c1, %c0_4, %c0_5] : memref<4x128x128xbf16, #tpu.memory_space<vmem>>, vector<1x128x128xbf16>
    %5 = vector.shape_cast %4 : vector<1x128x128xbf16> to vector<128x128xbf16>
    %cst_6 = arith.constant dense<0.000000e+00> : vector<128x32xf32>
    %6 = tpu.matmul %5, %0, %cst_6 {dimension_numbers = #tpu.dot_dimension_numbers<[1], [0], [0], [1], [0, 0, 1, 1], [], []>} : vector<128x128xbf16>, vector<128x32xbf16>, vector<128x32xf32> -> vector<128x32xf32>
    %c2 = arith.constant 2 : index
    %c0_7 = arith.constant 0 : index
    %c0_8 = arith.constant 0 : index
    %7 = vector.load %arg0[%c2, %c0_7, %c0_8] : memref<4x128x128xbf16, #tpu.memory_space<vmem>>, vector<1x128x128xbf16>
    %8 = vector.shape_cast %7 : vector<1x128x128xbf16> to vector<128x128xbf16>
    %cst_9 = arith.constant dense<0.000000e+00> : vector<128x32xf32>
    %9 = tpu.matmul %8, %0, %cst_9 {dimension_numbers = #tpu.dot_dimension_numbers<[1], [0], [0], [1], [0, 0, 1, 1], [], []>} : vector<128x128xbf16>, vector<128x32xbf16>, vector<128x32xf32> -> vector<128x32xf32>
    %c3 = arith.constant 3 : index
    %c0_10 = arith.constant 0 : index
    %c0_11 = arith.constant 0 : index
    %10 = vector.load %arg0[%c3, %c0_10, %c0_11] : memref<4x128x128xbf16, #tpu.memory_space<vmem>>, vector<1x128x128xbf16>
    %11 = vector.shape_cast %10 : vector<1x128x128xbf16> to vector<128x128xbf16>
    %cst_12 = arith.constant dense<0.000000e+00> : vector<128x32xf32>
    %12 = tpu.matmul %11, %0, %cst_12 {dimension_numbers = #tpu.dot_dimension_numbers<[1], [0], [0], [1], [0, 0, 1, 1], [], []>} : vector<128x128xbf16>, vector<128x32xbf16>, vector<128x32xf32> -> vector<128x32xf32>
    %cst_13 = arith.constant dense<0.000000e+00> : vector<32xf32>
    %13 = vector.multi_reduction <add>, %3, %cst_13 [0] : vector<128x32xf32> to vector<32xf32>
    %14 = vector.shape_cast %13 : vector<32xf32> to vector<1x32xf32>
    %cst_14 = arith.constant 0.000000e+00 : f32
    %15 = vector.broadcast %cst_14 : f32 to vector<1x32xf32>
    %16 = arith.addf %15, %14 : vector<1x32xf32>
    %cst_15 = arith.constant dense<0.000000e+00> : vector<32xf32>
    %17 = vector.multi_reduction <add>, %6, %cst_15 [0] : vector<128x32xf32> to vector<32xf32>
    %18 = vector.shape_cast %17 : vector<32xf32> to vector<1x32xf32>
    %19 = arith.addf %16, %18 : vector<1x32xf32>
    %cst_16 = arith.constant dense<0.000000e+00> : vector<32xf32>
    %20 = vector.multi_reduction <add>, %9, %cst_16 [0] : vector<128x32xf32> to vector<32xf32>
    %21 = vector.shape_cast %20 : vector<32xf32> to vector<1x32xf32>
    %22 = arith.addf %19, %21 : vector<1x32xf32>
    %cst_17 = arith.constant dense<0.000000e+00> : vector<32xf32>
    %23 = vector.multi_reduction <add>, %12, %cst_17 [0] : vector<128x32xf32> to vector<32xf32>
    %24 = vector.shape_cast %23 : vector<32xf32> to vector<1x32xf32>
    %25 = arith.addf %22, %24 : vector<1x32xf32>
    %26 = arith.mulf %3, %3 : vector<128x32xf32>
    %cst_18 = arith.constant dense<0.000000e+00> : vector<32xf32>
    %27 = vector.multi_reduction <add>, %26, %cst_18 [0] : vector<128x32xf32> to vector<32xf32>
    %28 = vector.shape_cast %27 : vector<32xf32> to vector<1x32xf32>
    %cst_19 = arith.constant 0.000000e+00 : f32
    %29 = vector.broadcast %cst_19 : f32 to vector<1x32xf32>
    %30 = arith.addf %29, %28 : vector<1x32xf32>
    %31 = arith.mulf %6, %6 : vector<128x32xf32>
    %cst_20 = arith.constant dense<0.000000e+00> : vector<32xf32>
    %32 = vector.multi_reduction <add>, %31, %cst_20 [0] : vector<128x32xf32> to vector<32xf32>
    %33 = vector.shape_cast %32 : vector<32xf32> to vector<1x32xf32>
    %34 = arith.addf %30, %33 : vector<1x32xf32>
    %35 = arith.mulf %9, %9 : vector<128x32xf32>
    %cst_21 = arith.constant dense<0.000000e+00> : vector<32xf32>
    %36 = vector.multi_reduction <add>, %35, %cst_21 [0] : vector<128x32xf32> to vector<32xf32>
    %37 = vector.shape_cast %36 : vector<32xf32> to vector<1x32xf32>
    %38 = arith.addf %34, %37 : vector<1x32xf32>
    %39 = arith.mulf %12, %12 : vector<128x32xf32>
    %cst_22 = arith.constant dense<0.000000e+00> : vector<32xf32>
    %40 = vector.multi_reduction <add>, %39, %cst_22 [0] : vector<128x32xf32> to vector<32xf32>
    %41 = vector.shape_cast %40 : vector<32xf32> to vector<1x32xf32>
    %42 = arith.addf %38, %41 : vector<1x32xf32>
    %cst_23 = arith.constant 0.001953125 : f32
    %43 = vector.broadcast %cst_23 : f32 to vector<1x32xf32>
    %44 = arith.mulf %25, %43 : vector<1x32xf32>
    %cst_24 = arith.constant 0.001953125 : f32
    %45 = vector.broadcast %cst_24 : f32 to vector<1x32xf32>
    %46 = arith.mulf %42, %45 : vector<1x32xf32>
    %47 = arith.mulf %44, %44 : vector<1x32xf32>
    %48 = arith.subf %46, %47 : vector<1x32xf32>
    %cst_25 = arith.constant 0.000000e+00 : f32
    %49 = vector.broadcast %cst_25 : f32 to vector<1x32xf32>
    %50 = arith.maximumf %48, %49 : vector<1x32xf32>
    %cst_26 = arith.constant 9.99999974E-6 : f32
    %51 = vector.broadcast %cst_26 : f32 to vector<1x32xf32>
    %52 = arith.addf %50, %51 : vector<1x32xf32>
    %53 = math.rsqrt %52 : vector<1x32xf32>
    %c0_27 = arith.constant 0 : index
    %c0_28 = arith.constant 0 : index
    %54 = vector.load %arg2[%c0_27, %c0_28] : memref<1x32xf32, #tpu.memory_space<vmem>>, vector<1x32xf32>
    %55 = arith.mulf %54, %53 : vector<1x32xf32>
    %c0_29 = arith.constant 0 : index
    %c0_30 = arith.constant 0 : index
    %56 = vector.load %arg3[%c0_29, %c0_30] : memref<1x32xf32, #tpu.memory_space<vmem>>, vector<1x32xf32>
    %57 = arith.mulf %44, %55 : vector<1x32xf32>
    %58 = arith.subf %56, %57 : vector<1x32xf32>
    %59 = vector.broadcast %55 : vector<1x32xf32> to vector<128x32xf32>
    %60 = arith.mulf %3, %59 : vector<128x32xf32>
    %61 = vector.broadcast %58 : vector<1x32xf32> to vector<128x32xf32>
    %62 = arith.addf %60, %61 : vector<128x32xf32>
    %cst_31 = arith.constant 0.000000e+00 : f32
    %63 = vector.broadcast %cst_31 : f32 to vector<128x32xf32>
    %64 = arith.maximumf %62, %63 : vector<128x32xf32>
    %65 = vector.broadcast %55 : vector<1x32xf32> to vector<128x32xf32>
    %66 = arith.mulf %6, %65 : vector<128x32xf32>
    %67 = vector.broadcast %58 : vector<1x32xf32> to vector<128x32xf32>
    %68 = arith.addf %66, %67 : vector<128x32xf32>
    %cst_32 = arith.constant 0.000000e+00 : f32
    %69 = vector.broadcast %cst_32 : f32 to vector<128x32xf32>
    %70 = arith.maximumf %68, %69 : vector<128x32xf32>
    %71 = vector.broadcast %55 : vector<1x32xf32> to vector<128x32xf32>
    %72 = arith.mulf %9, %71 : vector<128x32xf32>
    %73 = vector.broadcast %58 : vector<1x32xf32> to vector<128x32xf32>
    %74 = arith.addf %72, %73 : vector<128x32xf32>
    %cst_33 = arith.constant 0.000000e+00 : f32
    %75 = vector.broadcast %cst_33 : f32 to vector<128x32xf32>
    %76 = arith.maximumf %74, %75 : vector<128x32xf32>
    %77 = vector.broadcast %55 : vector<1x32xf32> to vector<128x32xf32>
    %78 = arith.mulf %12, %77 : vector<128x32xf32>
    %79 = vector.broadcast %58 : vector<1x32xf32> to vector<128x32xf32>
    %80 = arith.addf %78, %79 : vector<128x32xf32>
    %cst_34 = arith.constant 0.000000e+00 : f32
    %81 = vector.broadcast %cst_34 : f32 to vector<128x32xf32>
    %82 = arith.maximumf %80, %81 : vector<128x32xf32>
    %83 = arith.maximumf %64, %70 : vector<128x32xf32>
    %84 = arith.maximumf %76, %82 : vector<128x32xf32>
    %85 = arith.maximumf %83, %84 : vector<128x32xf32>
    %c0_35 = arith.constant 0 : index
    %c0_36 = arith.constant 0 : index
    %86 = vector.load %arg4[%c0_35, %c0_36] : memref<128x32xf32, #tpu.memory_space<vmem>>, vector<128x32xf32>
    tpu.vector_store %arg4[%c0_35, %c0_36], %85 {strides = array<i32>} : memref<128x32xf32, #tpu.memory_space<vmem>>, vector<128x32xf32>,
    return
  }
}

module attributes {stable_mosaic.version = 11 : i64} {
  func.func @_conv_block_kernel(%arg0: memref<4x32x384xbf16, #tpu.memory_space<vmem>>, %arg1: memref<384x64xbf16, #tpu.memory_space<vmem>>, %arg2: memref<1x64xf32, #tpu.memory_space<vmem>>, %arg3: memref<1x64xf32, #tpu.memory_space<vmem>>, %arg4: memref<32x64xf32, #tpu.memory_space<vmem>>) attributes {dimension_semantics = [], scalar_prefetch = 0 : i64, scratch_operands = 0 : i64, tpu.core_type = #tpu.core_type<tc>} {
    %c0 = arith.constant 0 : index
    %c0_0 = arith.constant 0 : index
    %0 = vector.load %arg1[%c0, %c0_0] : memref<384x64xbf16, #tpu.memory_space<vmem>>, vector<384x64xbf16>
    %c0_1 = arith.constant 0 : index
    %c0_2 = arith.constant 0 : index
    %c0_3 = arith.constant 0 : index
    %1 = vector.load %arg0[%c0_1, %c0_2, %c0_3] : memref<4x32x384xbf16, #tpu.memory_space<vmem>>, vector<1x32x384xbf16>
    %2 = vector.shape_cast %1 : vector<1x32x384xbf16> to vector<32x384xbf16>
    %cst = arith.constant dense<0.000000e+00> : vector<32x64xf32>
    %3 = tpu.matmul %2, %0, %cst {dimension_numbers = #tpu.dot_dimension_numbers<[1], [0], [0], [1], [0, 0, 1, 1], [], []>} : vector<32x384xbf16>, vector<384x64xbf16>, vector<32x64xf32> -> vector<32x64xf32>
    %c1 = arith.constant 1 : index
    %c0_4 = arith.constant 0 : index
    %c0_5 = arith.constant 0 : index
    %4 = vector.load %arg0[%c1, %c0_4, %c0_5] : memref<4x32x384xbf16, #tpu.memory_space<vmem>>, vector<1x32x384xbf16>
    %5 = vector.shape_cast %4 : vector<1x32x384xbf16> to vector<32x384xbf16>
    %cst_6 = arith.constant dense<0.000000e+00> : vector<32x64xf32>
    %6 = tpu.matmul %5, %0, %cst_6 {dimension_numbers = #tpu.dot_dimension_numbers<[1], [0], [0], [1], [0, 0, 1, 1], [], []>} : vector<32x384xbf16>, vector<384x64xbf16>, vector<32x64xf32> -> vector<32x64xf32>
    %c2 = arith.constant 2 : index
    %c0_7 = arith.constant 0 : index
    %c0_8 = arith.constant 0 : index
    %7 = vector.load %arg0[%c2, %c0_7, %c0_8] : memref<4x32x384xbf16, #tpu.memory_space<vmem>>, vector<1x32x384xbf16>
    %8 = vector.shape_cast %7 : vector<1x32x384xbf16> to vector<32x384xbf16>
    %cst_9 = arith.constant dense<0.000000e+00> : vector<32x64xf32>
    %9 = tpu.matmul %8, %0, %cst_9 {dimension_numbers = #tpu.dot_dimension_numbers<[1], [0], [0], [1], [0, 0, 1, 1], [], []>} : vector<32x384xbf16>, vector<384x64xbf16>, vector<32x64xf32> -> vector<32x64xf32>
    %c3 = arith.constant 3 : index
    %c0_10 = arith.constant 0 : index
    %c0_11 = arith.constant 0 : index
    %10 = vector.load %arg0[%c3, %c0_10, %c0_11] : memref<4x32x384xbf16, #tpu.memory_space<vmem>>, vector<1x32x384xbf16>
    %11 = vector.shape_cast %10 : vector<1x32x384xbf16> to vector<32x384xbf16>
    %cst_12 = arith.constant dense<0.000000e+00> : vector<32x64xf32>
    %12 = tpu.matmul %11, %0, %cst_12 {dimension_numbers = #tpu.dot_dimension_numbers<[1], [0], [0], [1], [0, 0, 1, 1], [], []>} : vector<32x384xbf16>, vector<384x64xbf16>, vector<32x64xf32> -> vector<32x64xf32>
    %cst_13 = arith.constant dense<0.000000e+00> : vector<64xf32>
    %13 = vector.multi_reduction <add>, %3, %cst_13 [0] : vector<32x64xf32> to vector<64xf32>
    %14 = vector.shape_cast %13 : vector<64xf32> to vector<1x64xf32>
    %cst_14 = arith.constant 0.000000e+00 : f32
    %15 = vector.broadcast %cst_14 : f32 to vector<1x64xf32>
    %16 = arith.addf %15, %14 : vector<1x64xf32>
    %cst_15 = arith.constant dense<0.000000e+00> : vector<64xf32>
    %17 = vector.multi_reduction <add>, %6, %cst_15 [0] : vector<32x64xf32> to vector<64xf32>
    %18 = vector.shape_cast %17 : vector<64xf32> to vector<1x64xf32>
    %19 = arith.addf %16, %18 : vector<1x64xf32>
    %cst_16 = arith.constant dense<0.000000e+00> : vector<64xf32>
    %20 = vector.multi_reduction <add>, %9, %cst_16 [0] : vector<32x64xf32> to vector<64xf32>
    %21 = vector.shape_cast %20 : vector<64xf32> to vector<1x64xf32>
    %22 = arith.addf %19, %21 : vector<1x64xf32>
    %cst_17 = arith.constant dense<0.000000e+00> : vector<64xf32>
    %23 = vector.multi_reduction <add>, %12, %cst_17 [0] : vector<32x64xf32> to vector<64xf32>
    %24 = vector.shape_cast %23 : vector<64xf32> to vector<1x64xf32>
    %25 = arith.addf %22, %24 : vector<1x64xf32>
    %26 = arith.mulf %3, %3 : vector<32x64xf32>
    %cst_18 = arith.constant dense<0.000000e+00> : vector<64xf32>
    %27 = vector.multi_reduction <add>, %26, %cst_18 [0] : vector<32x64xf32> to vector<64xf32>
    %28 = vector.shape_cast %27 : vector<64xf32> to vector<1x64xf32>
    %cst_19 = arith.constant 0.000000e+00 : f32
    %29 = vector.broadcast %cst_19 : f32 to vector<1x64xf32>
    %30 = arith.addf %29, %28 : vector<1x64xf32>
    %31 = arith.mulf %6, %6 : vector<32x64xf32>
    %cst_20 = arith.constant dense<0.000000e+00> : vector<64xf32>
    %32 = vector.multi_reduction <add>, %31, %cst_20 [0] : vector<32x64xf32> to vector<64xf32>
    %33 = vector.shape_cast %32 : vector<64xf32> to vector<1x64xf32>
    %34 = arith.addf %30, %33 : vector<1x64xf32>
    %35 = arith.mulf %9, %9 : vector<32x64xf32>
    %cst_21 = arith.constant dense<0.000000e+00> : vector<64xf32>
    %36 = vector.multi_reduction <add>, %35, %cst_21 [0] : vector<32x64xf32> to vector<64xf32>
    %37 = vector.shape_cast %36 : vector<64xf32> to vector<1x64xf32>
    %38 = arith.addf %34, %37 : vector<1x64xf32>
    %39 = arith.mulf %12, %12 : vector<32x64xf32>
    %cst_22 = arith.constant dense<0.000000e+00> : vector<64xf32>
    %40 = vector.multi_reduction <add>, %39, %cst_22 [0] : vector<32x64xf32> to vector<64xf32>
    %41 = vector.shape_cast %40 : vector<64xf32> to vector<1x64xf32>
    %42 = arith.addf %38, %41 : vector<1x64xf32>
    %cst_23 = arith.constant 7.812500e-03 : f32
    %43 = vector.broadcast %cst_23 : f32 to vector<1x64xf32>
    %44 = arith.mulf %25, %43 : vector<1x64xf32>
    %cst_24 = arith.constant 7.812500e-03 : f32
    %45 = vector.broadcast %cst_24 : f32 to vector<1x64xf32>
    %46 = arith.mulf %42, %45 : vector<1x64xf32>
    %47 = arith.mulf %44, %44 : vector<1x64xf32>
    %48 = arith.subf %46, %47 : vector<1x64xf32>
    %cst_25 = arith.constant 0.000000e+00 : f32
    %49 = vector.broadcast %cst_25 : f32 to vector<1x64xf32>
    %50 = arith.maximumf %48, %49 : vector<1x64xf32>
    %cst_26 = arith.constant 9.99999974E-6 : f32
    %51 = vector.broadcast %cst_26 : f32 to vector<1x64xf32>
    %52 = arith.addf %50, %51 : vector<1x64xf32>
    %53 = math.rsqrt %52 : vector<1x64xf32>
    %c0_27 = arith.constant 0 : index
    %c0_28 = arith.constant 0 : index
    %54 = vector.load %arg2[%c0_27, %c0_28] : memref<1x64xf32, #tpu.memory_space<vmem>>, vector<1x64xf32>
    %55 = arith.mulf %54, %53 : vector<1x64xf32>
    %c0_29 = arith.constant 0 : index
    %c0_30 = arith.constant 0 : index
    %56 = vector.load %arg3[%c0_29, %c0_30] : memref<1x64xf32, #tpu.memory_space<vmem>>, vector<1x64xf32>
    %57 = arith.mulf %44, %55 : vector<1x64xf32>
    %58 = arith.subf %56, %57 : vector<1x64xf32>
    %59 = vector.broadcast %55 : vector<1x64xf32> to vector<32x64xf32>
    %60 = arith.mulf %3, %59 : vector<32x64xf32>
    %61 = vector.broadcast %58 : vector<1x64xf32> to vector<32x64xf32>
    %62 = arith.addf %60, %61 : vector<32x64xf32>
    %cst_31 = arith.constant 0.000000e+00 : f32
    %63 = vector.broadcast %cst_31 : f32 to vector<32x64xf32>
    %64 = arith.maximumf %62, %63 : vector<32x64xf32>
    %65 = vector.broadcast %55 : vector<1x64xf32> to vector<32x64xf32>
    %66 = arith.mulf %6, %65 : vector<32x64xf32>
    %67 = vector.broadcast %58 : vector<1x64xf32> to vector<32x64xf32>
    %68 = arith.addf %66, %67 : vector<32x64xf32>
    %cst_32 = arith.constant 0.000000e+00 : f32
    %69 = vector.broadcast %cst_32 : f32 to vector<32x64xf32>
    %70 = arith.maximumf %68, %69 : vector<32x64xf32>
    %71 = vector.broadcast %55 : vector<1x64xf32> to vector<32x64xf32>
    %72 = arith.mulf %9, %71 : vector<32x64xf32>
    %73 = vector.broadcast %58 : vector<1x64xf32> to vector<32x64xf32>
    %74 = arith.addf %72, %73 : vector<32x64xf32>
    %cst_33 = arith.constant 0.000000e+00 : f32
    %75 = vector.broadcast %cst_33 : f32 to vector<32x64xf32>
    %76 = arith.maximumf %74, %75 : vector<32x64xf32>
    %77 = vector.broadcast %55 : vector<1x64xf32> to vector<32x64xf32>
    %78 = arith.mulf %12, %77 : vector<32x64xf32>
    %79 = vector.broadcast %58 : vector<1x64xf32> to vector<32x64xf32>
    %80 = arith.addf %78, %79 : vector<32x64xf32>
    %cst_34 = arith.constant 0.000000e+00 : f32
    %81 = vector.broadcast %cst_34 : f32 to vector<32x64xf32>
    %82 = arith.maximumf %80, %81 : vector<32x64xf32>
    %83 = arith.maximumf %64, %70 : vector<32x64xf32>
    %84 = arith.maximumf %76, %82 : vector<32x64xf32>
    %85 = arith.maximumf %83, %84 : vector<32x64xf32>
    %c0_35 = arith.constant 0 : index
    %c0_36 = arith.constant 0 : index
    %86 = vector.load %arg4[%c0_35, %c0_36] : memref<32x64xf32, #tpu.memory_space<vmem>>, vector<32x64xf32>
    tpu.vector_store %arg4[%c0_35, %c0_36], %85 {strides = array<i32>} : memref<32x64xf32, #tpu.memory_space<vmem>>, vector<32x64xf32>,
    return
  }
}

module attributes {stable_mosaic.version = 11 : i64} {
  func.func @_conv_block_kernel(%arg0: memref<4x8x640xbf16, #tpu.memory_space<vmem>>, %arg1: memref<640x128xbf16, #tpu.memory_space<vmem>>, %arg2: memref<1x128xf32, #tpu.memory_space<vmem>>, %arg3: memref<1x128xf32, #tpu.memory_space<vmem>>, %arg4: memref<8x128xf32, #tpu.memory_space<vmem>>) attributes {dimension_semantics = [], scalar_prefetch = 0 : i64, scratch_operands = 0 : i64, tpu.core_type = #tpu.core_type<tc>} {
    %c0 = arith.constant 0 : index
    %c0_0 = arith.constant 0 : index
    %0 = vector.load %arg1[%c0, %c0_0] : memref<640x128xbf16, #tpu.memory_space<vmem>>, vector<640x128xbf16>
    %c0_1 = arith.constant 0 : index
    %c0_2 = arith.constant 0 : index
    %c0_3 = arith.constant 0 : index
    %1 = vector.load %arg0[%c0_1, %c0_2, %c0_3] : memref<4x8x640xbf16, #tpu.memory_space<vmem>>, vector<1x8x640xbf16>
    %2 = vector.shape_cast %1 : vector<1x8x640xbf16> to vector<8x640xbf16>
    %cst = arith.constant dense<0.000000e+00> : vector<8x128xf32>
    %3 = tpu.matmul %2, %0, %cst {dimension_numbers = #tpu.dot_dimension_numbers<[1], [0], [0], [1], [0, 0, 1, 1], [], []>} : vector<8x640xbf16>, vector<640x128xbf16>, vector<8x128xf32> -> vector<8x128xf32>
    %c1 = arith.constant 1 : index
    %c0_4 = arith.constant 0 : index
    %c0_5 = arith.constant 0 : index
    %4 = vector.load %arg0[%c1, %c0_4, %c0_5] : memref<4x8x640xbf16, #tpu.memory_space<vmem>>, vector<1x8x640xbf16>
    %5 = vector.shape_cast %4 : vector<1x8x640xbf16> to vector<8x640xbf16>
    %cst_6 = arith.constant dense<0.000000e+00> : vector<8x128xf32>
    %6 = tpu.matmul %5, %0, %cst_6 {dimension_numbers = #tpu.dot_dimension_numbers<[1], [0], [0], [1], [0, 0, 1, 1], [], []>} : vector<8x640xbf16>, vector<640x128xbf16>, vector<8x128xf32> -> vector<8x128xf32>
    %c2 = arith.constant 2 : index
    %c0_7 = arith.constant 0 : index
    %c0_8 = arith.constant 0 : index
    %7 = vector.load %arg0[%c2, %c0_7, %c0_8] : memref<4x8x640xbf16, #tpu.memory_space<vmem>>, vector<1x8x640xbf16>
    %8 = vector.shape_cast %7 : vector<1x8x640xbf16> to vector<8x640xbf16>
    %cst_9 = arith.constant dense<0.000000e+00> : vector<8x128xf32>
    %9 = tpu.matmul %8, %0, %cst_9 {dimension_numbers = #tpu.dot_dimension_numbers<[1], [0], [0], [1], [0, 0, 1, 1], [], []>} : vector<8x640xbf16>, vector<640x128xbf16>, vector<8x128xf32> -> vector<8x128xf32>
    %c3 = arith.constant 3 : index
    %c0_10 = arith.constant 0 : index
    %c0_11 = arith.constant 0 : index
    %10 = vector.load %arg0[%c3, %c0_10, %c0_11] : memref<4x8x640xbf16, #tpu.memory_space<vmem>>, vector<1x8x640xbf16>
    %11 = vector.shape_cast %10 : vector<1x8x640xbf16> to vector<8x640xbf16>
    %cst_12 = arith.constant dense<0.000000e+00> : vector<8x128xf32>
    %12 = tpu.matmul %11, %0, %cst_12 {dimension_numbers = #tpu.dot_dimension_numbers<[1], [0], [0], [1], [0, 0, 1, 1], [], []>} : vector<8x640xbf16>, vector<640x128xbf16>, vector<8x128xf32> -> vector<8x128xf32>
    %cst_13 = arith.constant dense<0.000000e+00> : vector<128xf32>
    %13 = vector.multi_reduction <add>, %3, %cst_13 [0] : vector<8x128xf32> to vector<128xf32>
    %14 = vector.shape_cast %13 : vector<128xf32> to vector<1x128xf32>
    %cst_14 = arith.constant 0.000000e+00 : f32
    %15 = vector.broadcast %cst_14 : f32 to vector<1x128xf32>
    %16 = arith.addf %15, %14 : vector<1x128xf32>
    %cst_15 = arith.constant dense<0.000000e+00> : vector<128xf32>
    %17 = vector.multi_reduction <add>, %6, %cst_15 [0] : vector<8x128xf32> to vector<128xf32>
    %18 = vector.shape_cast %17 : vector<128xf32> to vector<1x128xf32>
    %19 = arith.addf %16, %18 : vector<1x128xf32>
    %cst_16 = arith.constant dense<0.000000e+00> : vector<128xf32>
    %20 = vector.multi_reduction <add>, %9, %cst_16 [0] : vector<8x128xf32> to vector<128xf32>
    %21 = vector.shape_cast %20 : vector<128xf32> to vector<1x128xf32>
    %22 = arith.addf %19, %21 : vector<1x128xf32>
    %cst_17 = arith.constant dense<0.000000e+00> : vector<128xf32>
    %23 = vector.multi_reduction <add>, %12, %cst_17 [0] : vector<8x128xf32> to vector<128xf32>
    %24 = vector.shape_cast %23 : vector<128xf32> to vector<1x128xf32>
    %25 = arith.addf %22, %24 : vector<1x128xf32>
    %26 = arith.mulf %3, %3 : vector<8x128xf32>
    %cst_18 = arith.constant dense<0.000000e+00> : vector<128xf32>
    %27 = vector.multi_reduction <add>, %26, %cst_18 [0] : vector<8x128xf32> to vector<128xf32>
    %28 = vector.shape_cast %27 : vector<128xf32> to vector<1x128xf32>
    %cst_19 = arith.constant 0.000000e+00 : f32
    %29 = vector.broadcast %cst_19 : f32 to vector<1x128xf32>
    %30 = arith.addf %29, %28 : vector<1x128xf32>
    %31 = arith.mulf %6, %6 : vector<8x128xf32>
    %cst_20 = arith.constant dense<0.000000e+00> : vector<128xf32>
    %32 = vector.multi_reduction <add>, %31, %cst_20 [0] : vector<8x128xf32> to vector<128xf32>
    %33 = vector.shape_cast %32 : vector<128xf32> to vector<1x128xf32>
    %34 = arith.addf %30, %33 : vector<1x128xf32>
    %35 = arith.mulf %9, %9 : vector<8x128xf32>
    %cst_21 = arith.constant dense<0.000000e+00> : vector<128xf32>
    %36 = vector.multi_reduction <add>, %35, %cst_21 [0] : vector<8x128xf32> to vector<128xf32>
    %37 = vector.shape_cast %36 : vector<128xf32> to vector<1x128xf32>
    %38 = arith.addf %34, %37 : vector<1x128xf32>
    %39 = arith.mulf %12, %12 : vector<8x128xf32>
    %cst_22 = arith.constant dense<0.000000e+00> : vector<128xf32>
    %40 = vector.multi_reduction <add>, %39, %cst_22 [0] : vector<8x128xf32> to vector<128xf32>
    %41 = vector.shape_cast %40 : vector<128xf32> to vector<1x128xf32>
    %42 = arith.addf %38, %41 : vector<1x128xf32>
    %cst_23 = arith.constant 3.125000e-02 : f32
    %43 = vector.broadcast %cst_23 : f32 to vector<1x128xf32>
    %44 = arith.mulf %25, %43 : vector<1x128xf32>
    %cst_24 = arith.constant 3.125000e-02 : f32
    %45 = vector.broadcast %cst_24 : f32 to vector<1x128xf32>
    %46 = arith.mulf %42, %45 : vector<1x128xf32>
    %47 = arith.mulf %44, %44 : vector<1x128xf32>
    %48 = arith.subf %46, %47 : vector<1x128xf32>
    %cst_25 = arith.constant 0.000000e+00 : f32
    %49 = vector.broadcast %cst_25 : f32 to vector<1x128xf32>
    %50 = arith.maximumf %48, %49 : vector<1x128xf32>
    %cst_26 = arith.constant 9.99999974E-6 : f32
    %51 = vector.broadcast %cst_26 : f32 to vector<1x128xf32>
    %52 = arith.addf %50, %51 : vector<1x128xf32>
    %53 = math.rsqrt %52 : vector<1x128xf32>
    %c0_27 = arith.constant 0 : index
    %c0_28 = arith.constant 0 : index
    %54 = vector.load %arg2[%c0_27, %c0_28] : memref<1x128xf32, #tpu.memory_space<vmem>>, vector<1x128xf32>
    %55 = arith.mulf %54, %53 : vector<1x128xf32>
    %c0_29 = arith.constant 0 : index
    %c0_30 = arith.constant 0 : index
    %56 = vector.load %arg3[%c0_29, %c0_30] : memref<1x128xf32, #tpu.memory_space<vmem>>, vector<1x128xf32>
    %57 = arith.mulf %44, %55 : vector<1x128xf32>
    %58 = arith.subf %56, %57 : vector<1x128xf32>
    %59 = vector.broadcast %55 : vector<1x128xf32> to vector<8x128xf32>
    %60 = arith.mulf %3, %59 : vector<8x128xf32>
    %61 = vector.broadcast %58 : vector<1x128xf32> to vector<8x128xf32>
    %62 = arith.addf %60, %61 : vector<8x128xf32>
    %cst_31 = arith.constant 0.000000e+00 : f32
    %63 = vector.broadcast %cst_31 : f32 to vector<8x128xf32>
    %64 = arith.maximumf %62, %63 : vector<8x128xf32>
    %65 = vector.broadcast %55 : vector<1x128xf32> to vector<8x128xf32>
    %66 = arith.mulf %6, %65 : vector<8x128xf32>
    %67 = vector.broadcast %58 : vector<1x128xf32> to vector<8x128xf32>
    %68 = arith.addf %66, %67 : vector<8x128xf32>
    %cst_32 = arith.constant 0.000000e+00 : f32
    %69 = vector.broadcast %cst_32 : f32 to vector<8x128xf32>
    %70 = arith.maximumf %68, %69 : vector<8x128xf32>
    %71 = vector.broadcast %55 : vector<1x128xf32> to vector<8x128xf32>
    %72 = arith.mulf %9, %71 : vector<8x128xf32>
    %73 = vector.broadcast %58 : vector<1x128xf32> to vector<8x128xf32>
    %74 = arith.addf %72, %73 : vector<8x128xf32>
    %cst_33 = arith.constant 0.000000e+00 : f32
    %75 = vector.broadcast %cst_33 : f32 to vector<8x128xf32>
    %76 = arith.maximumf %74, %75 : vector<8x128xf32>
    %77 = vector.broadcast %55 : vector<1x128xf32> to vector<8x128xf32>
    %78 = arith.mulf %12, %77 : vector<8x128xf32>
    %79 = vector.broadcast %58 : vector<1x128xf32> to vector<8x128xf32>
    %80 = arith.addf %78, %79 : vector<8x128xf32>
    %cst_34 = arith.constant 0.000000e+00 : f32
    %81 = vector.broadcast %cst_34 : f32 to vector<8x128xf32>
    %82 = arith.maximumf %80, %81 : vector<8x128xf32>
    %83 = arith.maximumf %64, %70 : vector<8x128xf32>
    %84 = arith.maximumf %76, %82 : vector<8x128xf32>
    %85 = arith.maximumf %83, %84 : vector<8x128xf32>
    %c0_35 = arith.constant 0 : index
    %c0_36 = arith.constant 0 : index
    %86 = vector.load %arg4[%c0_35, %c0_36] : memref<8x128xf32, #tpu.memory_space<vmem>>, vector<8x128xf32>
    tpu.vector_store %arg4[%c0_35, %c0_36], %85 {strides = array<i32>} : memref<8x128xf32, #tpu.memory_space<vmem>>, vector<8x128xf32>,
    return
  }
}

module attributes {stable_mosaic.version = 11 : i64} {
  func.func @_conv_block_head_kernel(%arg0: memref<4x2x1152xbf16, #tpu.memory_space<vmem>>, %arg1: memref<1152x256xbf16, #tpu.memory_space<vmem>>, %arg2: memref<1x256xf32, #tpu.memory_space<vmem>>, %arg3: memref<1x256xf32, #tpu.memory_space<vmem>>, %arg4: memref<256x32xf32, #tpu.memory_space<vmem>>, %arg5: memref<1x32xf32, #tpu.memory_space<vmem>>, %arg6: memref<32x32xf32, #tpu.memory_space<vmem>>, %arg7: memref<32x32xf32, #tpu.memory_space<vmem>>, %arg8: memref<2x32xf32, #tpu.memory_space<vmem>>, %arg9: memref<2x32xf32, #tpu.memory_space<vmem>>) attributes {dimension_semantics = [], scalar_prefetch = 0 : i64, scratch_operands = 0 : i64, tpu.core_type = #tpu.core_type<tc>} {
    %c0 = arith.constant 0 : index
    %c0_0 = arith.constant 0 : index
    %0 = vector.load %arg1[%c0, %c0_0] : memref<1152x256xbf16, #tpu.memory_space<vmem>>, vector<1152x256xbf16>
    %c0_1 = arith.constant 0 : index
    %c0_2 = arith.constant 0 : index
    %c0_3 = arith.constant 0 : index
    %1 = vector.load %arg0[%c0_1, %c0_2, %c0_3] : memref<4x2x1152xbf16, #tpu.memory_space<vmem>>, vector<1x2x1152xbf16>
    %2 = vector.shape_cast %1 : vector<1x2x1152xbf16> to vector<2x1152xbf16>
    %cst = arith.constant dense<0.000000e+00> : vector<2x256xf32>
    %3 = tpu.matmul %2, %0, %cst {dimension_numbers = #tpu.dot_dimension_numbers<[1], [0], [0], [1], [0, 0, 1, 1], [], []>} : vector<2x1152xbf16>, vector<1152x256xbf16>, vector<2x256xf32> -> vector<2x256xf32>
    %c1 = arith.constant 1 : index
    %c0_4 = arith.constant 0 : index
    %c0_5 = arith.constant 0 : index
    %4 = vector.load %arg0[%c1, %c0_4, %c0_5] : memref<4x2x1152xbf16, #tpu.memory_space<vmem>>, vector<1x2x1152xbf16>
    %5 = vector.shape_cast %4 : vector<1x2x1152xbf16> to vector<2x1152xbf16>
    %cst_6 = arith.constant dense<0.000000e+00> : vector<2x256xf32>
    %6 = tpu.matmul %5, %0, %cst_6 {dimension_numbers = #tpu.dot_dimension_numbers<[1], [0], [0], [1], [0, 0, 1, 1], [], []>} : vector<2x1152xbf16>, vector<1152x256xbf16>, vector<2x256xf32> -> vector<2x256xf32>
    %c2 = arith.constant 2 : index
    %c0_7 = arith.constant 0 : index
    %c0_8 = arith.constant 0 : index
    %7 = vector.load %arg0[%c2, %c0_7, %c0_8] : memref<4x2x1152xbf16, #tpu.memory_space<vmem>>, vector<1x2x1152xbf16>
    %8 = vector.shape_cast %7 : vector<1x2x1152xbf16> to vector<2x1152xbf16>
    %cst_9 = arith.constant dense<0.000000e+00> : vector<2x256xf32>
    %9 = tpu.matmul %8, %0, %cst_9 {dimension_numbers = #tpu.dot_dimension_numbers<[1], [0], [0], [1], [0, 0, 1, 1], [], []>} : vector<2x1152xbf16>, vector<1152x256xbf16>, vector<2x256xf32> -> vector<2x256xf32>
    %c3 = arith.constant 3 : index
    %c0_10 = arith.constant 0 : index
    %c0_11 = arith.constant 0 : index
    %10 = vector.load %arg0[%c3, %c0_10, %c0_11] : memref<4x2x1152xbf16, #tpu.memory_space<vmem>>, vector<1x2x1152xbf16>
    %11 = vector.shape_cast %10 : vector<1x2x1152xbf16> to vector<2x1152xbf16>
    %cst_12 = arith.constant dense<0.000000e+00> : vector<2x256xf32>
    %12 = tpu.matmul %11, %0, %cst_12 {dimension_numbers = #tpu.dot_dimension_numbers<[1], [0], [0], [1], [0, 0, 1, 1], [], []>} : vector<2x1152xbf16>, vector<1152x256xbf16>, vector<2x256xf32> -> vector<2x256xf32>
    %cst_13 = arith.constant dense<0.000000e+00> : vector<256xf32>
    %13 = vector.multi_reduction <add>, %3, %cst_13 [0] : vector<2x256xf32> to vector<256xf32>
    %14 = vector.shape_cast %13 : vector<256xf32> to vector<1x256xf32>
    %cst_14 = arith.constant 0.000000e+00 : f32
    %15 = vector.broadcast %cst_14 : f32 to vector<1x256xf32>
    %16 = arith.addf %15, %14 : vector<1x256xf32>
    %cst_15 = arith.constant dense<0.000000e+00> : vector<256xf32>
    %17 = vector.multi_reduction <add>, %6, %cst_15 [0] : vector<2x256xf32> to vector<256xf32>
    %18 = vector.shape_cast %17 : vector<256xf32> to vector<1x256xf32>
    %19 = arith.addf %16, %18 : vector<1x256xf32>
    %cst_16 = arith.constant dense<0.000000e+00> : vector<256xf32>
    %20 = vector.multi_reduction <add>, %9, %cst_16 [0] : vector<2x256xf32> to vector<256xf32>
    %21 = vector.shape_cast %20 : vector<256xf32> to vector<1x256xf32>
    %22 = arith.addf %19, %21 : vector<1x256xf32>
    %cst_17 = arith.constant dense<0.000000e+00> : vector<256xf32>
    %23 = vector.multi_reduction <add>, %12, %cst_17 [0] : vector<2x256xf32> to vector<256xf32>
    %24 = vector.shape_cast %23 : vector<256xf32> to vector<1x256xf32>
    %25 = arith.addf %22, %24 : vector<1x256xf32>
    %26 = arith.mulf %3, %3 : vector<2x256xf32>
    %cst_18 = arith.constant dense<0.000000e+00> : vector<256xf32>
    %27 = vector.multi_reduction <add>, %26, %cst_18 [0] : vector<2x256xf32> to vector<256xf32>
    %28 = vector.shape_cast %27 : vector<256xf32> to vector<1x256xf32>
    %cst_19 = arith.constant 0.000000e+00 : f32
    %29 = vector.broadcast %cst_19 : f32 to vector<1x256xf32>
    %30 = arith.addf %29, %28 : vector<1x256xf32>
    %31 = arith.mulf %6, %6 : vector<2x256xf32>
    %cst_20 = arith.constant dense<0.000000e+00> : vector<256xf32>
    %32 = vector.multi_reduction <add>, %31, %cst_20 [0] : vector<2x256xf32> to vector<256xf32>
    %33 = vector.shape_cast %32 : vector<256xf32> to vector<1x256xf32>
    %34 = arith.addf %30, %33 : vector<1x256xf32>
    %35 = arith.mulf %9, %9 : vector<2x256xf32>
    %cst_21 = arith.constant dense<0.000000e+00> : vector<256xf32>
    %36 = vector.multi_reduction <add>, %35, %cst_21 [0] : vector<2x256xf32> to vector<256xf32>
    %37 = vector.shape_cast %36 : vector<256xf32> to vector<1x256xf32>
    %38 = arith.addf %34, %37 : vector<1x256xf32>
    %39 = arith.mulf %12, %12 : vector<2x256xf32>
    %cst_22 = arith.constant dense<0.000000e+00> : vector<256xf32>
    %40 = vector.multi_reduction <add>, %39, %cst_22 [0] : vector<2x256xf32> to vector<256xf32>
    %41 = vector.shape_cast %40 : vector<256xf32> to vector<1x256xf32>
    %42 = arith.addf %38, %41 : vector<1x256xf32>
    %cst_23 = arith.constant 1.250000e-01 : f32
    %43 = vector.broadcast %cst_23 : f32 to vector<1x256xf32>
    %44 = arith.mulf %25, %43 : vector<1x256xf32>
    %cst_24 = arith.constant 1.250000e-01 : f32
    %45 = vector.broadcast %cst_24 : f32 to vector<1x256xf32>
    %46 = arith.mulf %42, %45 : vector<1x256xf32>
    %47 = arith.mulf %44, %44 : vector<1x256xf32>
    %48 = arith.subf %46, %47 : vector<1x256xf32>
    %cst_25 = arith.constant 0.000000e+00 : f32
    %49 = vector.broadcast %cst_25 : f32 to vector<1x256xf32>
    %50 = arith.maximumf %48, %49 : vector<1x256xf32>
    %cst_26 = arith.constant 9.99999974E-6 : f32
    %51 = vector.broadcast %cst_26 : f32 to vector<1x256xf32>
    %52 = arith.addf %50, %51 : vector<1x256xf32>
    %53 = math.rsqrt %52 : vector<1x256xf32>
    %c0_27 = arith.constant 0 : index
    %c0_28 = arith.constant 0 : index
    %54 = vector.load %arg2[%c0_27, %c0_28] : memref<1x256xf32, #tpu.memory_space<vmem>>, vector<1x256xf32>
    %55 = arith.mulf %54, %53 : vector<1x256xf32>
    %c0_29 = arith.constant 0 : index
    %c0_30 = arith.constant 0 : index
    %56 = vector.load %arg3[%c0_29, %c0_30] : memref<1x256xf32, #tpu.memory_space<vmem>>, vector<1x256xf32>
    %57 = arith.mulf %44, %55 : vector<1x256xf32>
    %58 = arith.subf %56, %57 : vector<1x256xf32>
    %59 = vector.broadcast %55 : vector<1x256xf32> to vector<2x256xf32>
    %60 = arith.mulf %3, %59 : vector<2x256xf32>
    %61 = vector.broadcast %58 : vector<1x256xf32> to vector<2x256xf32>
    %62 = arith.addf %60, %61 : vector<2x256xf32>
    %cst_31 = arith.constant 0.000000e+00 : f32
    %63 = vector.broadcast %cst_31 : f32 to vector<2x256xf32>
    %64 = arith.maximumf %62, %63 : vector<2x256xf32>
    %65 = vector.broadcast %55 : vector<1x256xf32> to vector<2x256xf32>
    %66 = arith.mulf %6, %65 : vector<2x256xf32>
    %67 = vector.broadcast %58 : vector<1x256xf32> to vector<2x256xf32>
    %68 = arith.addf %66, %67 : vector<2x256xf32>
    %cst_32 = arith.constant 0.000000e+00 : f32
    %69 = vector.broadcast %cst_32 : f32 to vector<2x256xf32>
    %70 = arith.maximumf %68, %69 : vector<2x256xf32>
    %71 = vector.broadcast %55 : vector<1x256xf32> to vector<2x256xf32>
    %72 = arith.mulf %9, %71 : vector<2x256xf32>
    %73 = vector.broadcast %58 : vector<1x256xf32> to vector<2x256xf32>
    %74 = arith.addf %72, %73 : vector<2x256xf32>
    %cst_33 = arith.constant 0.000000e+00 : f32
    %75 = vector.broadcast %cst_33 : f32 to vector<2x256xf32>
    %76 = arith.maximumf %74, %75 : vector<2x256xf32>
    %77 = vector.broadcast %55 : vector<1x256xf32> to vector<2x256xf32>
    %78 = arith.mulf %12, %77 : vector<2x256xf32>
    %79 = vector.broadcast %58 : vector<1x256xf32> to vector<2x256xf32>
    %80 = arith.addf %78, %79 : vector<2x256xf32>
    %cst_34 = arith.constant 0.000000e+00 : f32
    %81 = vector.broadcast %cst_34 : f32 to vector<2x256xf32>
    %82 = arith.maximumf %80, %81 : vector<2x256xf32>
    %83 = arith.maximumf %64, %70 : vector<2x256xf32>
    %84 = arith.maximumf %76, %82 : vector<2x256xf32>
    %85 = arith.maximumf %83, %84 : vector<2x256xf32>
    %c0_35 = arith.constant 0 : index
    %c0_36 = arith.constant 0 : index
    %86 = vector.load %arg4[%c0_35, %c0_36] : memref<256x32xf32, #tpu.memory_space<vmem>>, vector<256x32xf32>
    %cst_37 = arith.constant dense<0.000000e+00> : vector<2x32xf32>
    %87 = tpu.matmul %85, %86, %cst_37 {dimension_numbers = #tpu.dot_dimension_numbers<[1], [0], [0], [1], [0, 0, 1, 1], [], []>} : vector<2x256xf32>, vector<256x32xf32>, vector<2x32xf32> -> vector<2x32xf32>
    %c0_38 = arith.constant 0 : index
    %c0_39 = arith.constant 0 : index
    %88 = vector.load %arg5[%c0_38, %c0_39] : memref<1x32xf32, #tpu.memory_space<vmem>>, vector<1x32xf32>
    %89 = vector.broadcast %88 : vector<1x32xf32> to vector<2x32xf32>
    %90 = arith.addf %87, %89 : vector<2x32xf32>
    %c0_40 = arith.constant 0 : index
    %c0_41 = arith.constant 0 : index
    %91 = vector.load %arg8[%c0_40, %c0_41] : memref<2x32xf32, #tpu.memory_space<vmem>>, vector<2x32xf32>
    tpu.vector_store %arg8[%c0_40, %c0_41], %90 {strides = array<i32>} : memref<2x32xf32, #tpu.memory_space<vmem>>, vector<2x32xf32>,
    %c0_42 = arith.constant 0 : index
    %c0_43 = arith.constant 0 : index
    %92 = vector.load %arg6[%c0_42, %c0_43] : memref<32x32xf32, #tpu.memory_space<vmem>>, vector<32x32xf32>
    %cst_44 = arith.constant dense<0.000000e+00> : vector<2x32xf32>
    %93 = tpu.matmul %90, %92, %cst_44 {dimension_numbers = #tpu.dot_dimension_numbers<[1], [0], [0], [1], [0, 0, 1, 1], [], []>} : vector<2x32xf32>, vector<32x32xf32>, vector<2x32xf32> -> vector<2x32xf32>
    %cst_45 = arith.constant 0.000000e+00 : f32
    %94 = vector.broadcast %cst_45 : f32 to vector<2x32xf32>
    %95 = arith.maximumf %93, %94 : vector<2x32xf32>
    %c0_46 = arith.constant 0 : index
    %c0_47 = arith.constant 0 : index
    %96 = vector.load %arg7[%c0_46, %c0_47] : memref<32x32xf32, #tpu.memory_space<vmem>>, vector<32x32xf32>
    %cst_48 = arith.constant dense<0.000000e+00> : vector<2x32xf32>
    %97 = tpu.matmul %95, %96, %cst_48 {dimension_numbers = #tpu.dot_dimension_numbers<[1], [0], [0], [1], [0, 0, 1, 1], [], []>} : vector<2x32xf32>, vector<32x32xf32>, vector<2x32xf32> -> vector<2x32xf32>
    %c0_49 = arith.constant 0 : index
    %c0_50 = arith.constant 0 : index
    %98 = vector.load %arg9[%c0_49, %c0_50] : memref<2x32xf32, #tpu.memory_space<vmem>>, vector<2x32xf32>
    tpu.vector_store %arg9[%c0_49, %c0_50], %97 {strides = array<i32>} : memref<2x32xf32, #tpu.memory_space<vmem>>, vector<2x32xf32>,
    return
  }
}

</mosaic_0001>

<llo_original>
// kernel: cl_forward.4
$region0: #{cl_forward.4}
  #allocation0 [shape = 'u32[]', space=smem, size = 0x4, offset = 0x4, fixed_abs, tag = 'smem constant byte address 0x4 - core index']
  #allocation1 [shape = 'u32[144,128]{1,0:T(1,128)}', space=vmem, size = 0x12000, scoped, tag = 'internal scratch']
  %s0 = inlined_call_operand.vmem [shape: bf16[4,128,128], index: 0, kind: input, shape index: {}]
  %s1 = inlined_call_operand.vmem [shape: bf16[128,32], index: 1, kind: input, shape index: {}]
  %s2 = inlined_call_operand.vmem [shape: f32[1,32], index: 2, kind: input, shape index: {}]
  %s3 = inlined_call_operand.vmem [shape: f32[1,32], index: 3, kind: input, shape index: {}]
  %s4 = inlined_call_operand.vmem [shape: f32[128,32], index: 4, kind: output, shape index: {}]
  %s5 = sld [smem:[#allocation0]]
  $region26: #{cl_forward.4} parent=0
    _
  %s7 = ssub.s32 1, %s5
  %s8 = scalar_select 0, %s7, %s5
  // Predicated region
  $region2: #{cl_forward.4} parent=0 // pred_check
    _
  $region3: #{cl_forward.4} parent=0 // pred_check_branch
    %10 = sbr.rel (0) target = $region5
  $region4: #{cl_forward.4} parent=0 // pred_region
    _
  $region5: #{cl_forward.4} parent=0 // pred_fallthru
    _
  // Predicated region
  $region6: #{cl_forward.4} parent=0 // pred_check
    _
  $region7: #{cl_forward.4} parent=0 // pred_check_branch
    %12 = sbr.rel (0) target = $region9
  $region8: #{cl_forward.4} parent=0 // pred_region
    _
  $region9: #{cl_forward.4} parent=0 // pred_fallthru
    _
  // Predicated region
  $region10: #{cl_forward.4} parent=0 // pred_check
    _
  $region11: #{cl_forward.4} parent=0 // pred_check_branch
    %14 = sbr.rel (0) target = $region13
  $region12: #{cl_forward.4} parent=0 // pred_region
    _
  $region13: #{cl_forward.4} parent=0 // pred_fallthru
    _
  // Predicated region
  $region14: #{cl_forward.4} parent=0 // pred_check
    _
  $region15: #{cl_forward.4} parent=0 // pred_check_branch
    %16 = sbr.rel (0) target = $region17
  $region16: #{cl_forward.4} parent=0 // pred_region
    _
  $region17: #{cl_forward.4} parent=0 // pred_fallthru
    _
  %v18 = vld [vmem:[%s1] sm:$0xf]
  %v19 = vld [vmem:[%s1 + $0x4] sm:$0xf]
  %v20 = vld [vmem:[%s1 + $0x8] sm:$0xf]
  %v21 = vld [vmem:[%s1 + $0xc] sm:$0xf]
  %v22 = vld [vmem:[%s1 + $0x10] sm:$0xf]
  %v23 = vld [vmem:[%s1 + $0x14] sm:$0xf]
  %v24 = vld [vmem:[%s1 + $0x18] sm:$0xf]
  %v25 = vld [vmem:[%s1 + $0x1c] sm:$0xf]
  %v26 = vld [vmem:[%s1 + $0x20] sm:$0xf]
  %v27 = vld [vmem:[%s1 + $0x24] sm:$0xf]
  %v28 = vld [vmem:[%s1 + $0x28] sm:$0xf]
  %v29 = vld [vmem:[%s1 + $0x2c] sm:$0xf]
  %v30 = vld [vmem:[%s1 + $0x30] sm:$0xf]
  %v31 = vld [vmem:[%s1 + $0x34] sm:$0xf]
  %v32 = vld [vmem:[%s1 + $0x38] sm:$0xf]
  %v33 = vld [vmem:[%s1 + $0x3c] sm:$0xf]
  %v34 = vld [vmem:[%s0] sm:$0xf]
  %v35 = vld [vmem:[%s0 + $0x4] sm:$0xf]
  %v36 = vld [vmem:[%s0 + $0x8] sm:$0xf]
  %v37 = vld [vmem:[%s0 + $0xc] sm:$0xf]
  %v38 = vld [vmem:[%s0 + $0x10] sm:$0xf]
  %v39 = vld [vmem:[%s0 + $0x14] sm:$0xf]
  %v40 = vld [vmem:[%s0 + $0x18] sm:$0xf]
  %v41 = vld [vmem:[%s0 + $0x1c] sm:$0xf]
  %v42 = vld [vmem:[%s0 + $0x20] sm:$0xf]
  %v43 = vld [vmem:[%s0 + $0x24] sm:$0xf]
  %v44 = vld [vmem:[%s0 + $0x28] sm:$0xf]
  %v45 = vld [vmem:[%s0 + $0x2c] sm:$0xf]
  %v46 = vld [vmem:[%s0 + $0x30] sm:$0xf]
  %v47 = vld [vmem:[%s0 + $0x34] sm:$0xf]
  %v48 = vld [vmem:[%s0 + $0x38] sm:$0xf]
  %v49 = vld [vmem:[%s0 + $0x3c] sm:$0xf]
  %v66 = vunpack.c.l.b16 %v34
  %v67 = vunpack.c.l.b16 %v35
  %v68 = vunpack.c.l.b16 %v36
  %v69 = vunpack.c.l.b16 %v37
  %v70 = vunpack.c.l.b16 %v38
  %v71 = vunpack.c.l.b16 %v39
  %v72 = vunpack.c.l.b16 %v40
  %v73 = vunpack.c.l.b16 %v41
  %v74 = vunpack.c.l.b16 %v42
  %v75 = vunpack.c.l.b16 %v43
  %v76 = vunpack.c.l.b16 %v44
  %v77 = vunpack.c.l.b16 %v45
  %v78 = vunpack.c.l.b16 %v46
  %v79 = vunpack.c.l.b16 %v47
  %v80 = vunpack.c.l.b16 %v48
  %v81 = vunpack.c.l.b16 %v49
  %v82 = vpack.c.b16 %v67, %v66
  %v83 = vpack.c.b16 %v69, %v68
  %v84 = vpack.c.b16 %v71, %v70
  %v85 = vpack.c.b16 %v73, %v72
  %v86 = vpack.c.b16 %v75, %v74
  %v87 = vpack.c.b16 %v77, %v76
  %v88 = vpack.c.b16 %v79, %v78
  %v89 = vpack.c.b16 %v81, %v80
  %v114 = vunpack.c.l.b16 %v18
  %v115 = vunpack.c.l.b16 %v19
  %v116 = vunpack.c.l.b16 %v20
  %v117 = vunpack.c.l.b16 %v21
  %v118 = vunpack.c.l.b16 %v22
  %v119 = vunpack.c.l.b16 %v23
  %v120 = vunpack.c.l.b16 %v24
  %v121 = vunpack.c.l.b16 %v25
  %v122 = vunpack.c.l.b16 %v26
  %v123 = vunpack.c.l.b16 %v27
  %v124 = vunpack.c.l.b16 %v28
  %v125 = vunpack.c.l.b16 %v29
  %v126 = vunpack.c.l.b16 %v30
  %v127 = vunpack.c.l.b16 %v31
  %v128 = vunpack.c.l.b16 %v32
  %v129 = vunpack.c.l.b16 %v33
  %v130 = vpack.c.b16 %v115, %v114
  %v131 = vpack.c.b16 %v117, %v116
  %v132 = vpack.c.b16 %v119, %v118
  %v133 = vpack.c.b16 %v121, %v120
  %v134 = vpack.c.b16 %v123, %v122
  %v135 = vpack.c.b16 %v125, %v124
  %v136 = vpack.c.b16 %v127, %v126
  %v137 = vpack.c.b16 %v129, %v128
  %146 = vmatprep.subr.bf16.mxu0 0
  %147 = vmatpush1.bf16.msra.mxu0 %v130
  %148 = vmatprep.subr.bf16.mxu0 0
  %149 = vmatpush1.bf16.msra.mxu0 %v131
  %150 = vmatprep.subr.bf16.mxu0 0
  %151 = vmatpush1.bf16.msra.mxu0 %v132
  %152 = vmatprep.subr.bf16.mxu0 0
  %153 = vmatpush1.bf16.msra.mxu0 %v133
  %154 = vmatprep.subr.bf16.mxu0 0
  %155 = vmatpush1.bf16.msra.mxu0 %v134
  %156 = vmatprep.subr.bf16.mxu0 0
  %157 = vmatpush1.bf16.msra.mxu0 %v135
  %158 = vmatprep.subr.bf16.mxu0 0
  %159 = vmatpush1.bf16.msra.mxu0 %v136
  %160 = vmatprep.subr.bf16.mxu0 0
  %161 = vmatpush1.bf16.msra.mxu0 %v137
  %162 = vmatprep.subr.bf16.mxu0 0
  %163 = vmatpush1.bf16.msra.mxu0 0
  %164 = vmatprep.subr.bf16.mxu0 0
  %165 = vmatpush1.bf16.msra.mxu0 0
  %166 = vmatprep.subr.bf16.mxu0 0
  %167 = vmatpush1.bf16.msra.mxu0 0
  %168 = vmatprep.subr.bf16.mxu0 0
  %169 = vmatpush1.bf16.msra.mxu0 0
  %170 = vmatprep.subr.bf16.mxu0 0
  %171 = vmatpush1.bf16.msra.mxu0 0
  %172 = vmatprep.subr.bf16.mxu0 0
  %173 = vmatpush1.bf16.msra.mxu0 0
  %174 = vmatprep.subr.bf16.mxu0 0
  %175 = vmatpush1.bf16.msra.mxu0 0
  %176 = vmatprep.subr.bf16.mxu0 0
  %177 = vmatpush1.bf16.msra.mxu0 0
  %178 = vmatprep.mubr.bf16.mxu0 0
  %179 = vmatmul.mubr.bf16.gmra.mrb[0].mxu0 %v82
  %v180 = vpop.f32.mrb[0].mxu0
  %v181 = vadd.f32 0.0, %v180
  %v182 = vpop.f32.mrb[0].mxu0
  %v183 = vpop.f32.mrb[0].mxu0
  %v184 = vadd.f32 0.0, %v183
  %v185 = vpop.f32.mrb[0].mxu0
  %186 = vmatprep.mubr.bf16.mxu0 0
  %187 = vmatmul.mubr.bf16.gmra.mrb[0].mxu0 %v83
  %v188 = vpop.f32.mrb[0].mxu0
  %v189 = vadd.f32 0.0, %v188
  %v190 = vpop.f32.mrb[0].mxu0
  %v191 = vpop.f32.mrb[0].mxu0
  %v192 = vadd.f32 0.0, %v191
  %v193 = vpop.f32.mrb[0].mxu0
  %194 = vmatprep.mubr.bf16.mxu0 0
  %195 = vmatmul.mubr.bf16.gmra.mrb[0].mxu0 %v84
  %v196 = vpop.f32.mrb[0].mxu0
  %v197 = vadd.f32 0.0, %v196
  %v198 = vpop.f32.mrb[0].mxu0
  %v199 = vpop.f32.mrb[0].mxu0
  %v200 = vadd.f32 0.0, %v199
  %v201 = vpop.f32.mrb[0].mxu0
  %202 = vmatprep.mubr.bf16.mxu0 0
  %203 = vmatmul.mubr.bf16.gmra.mrb[0].mxu0 %v85
  %v204 = vpop.f32.mrb[0].mxu0
  %v205 = vadd.f32 0.0, %v204
  %v206 = vpop.f32.mrb[0].mxu0
  %v207 = vpop.f32.mrb[0].mxu0
  %v208 = vadd.f32 0.0, %v207
  %v209 = vpop.f32.mrb[0].mxu0
  %210 = vmatprep.mubr.bf16.mxu0 0
  %211 = vmatmul.mubr.bf16.gmra.mrb[0].mxu0 %v86
  %v212 = vpop.f32.mrb[0].mxu0
  %v213 = vadd.f32 0.0, %v212
  %v214 = vpop.f32.mrb[0].mxu0
  %v215 = vpop.f32.mrb[0].mxu0
  %v216 = vadd.f32 0.0, %v215
  %v217 = vpop.f32.mrb[0].mxu0
  %218 = vmatprep.mubr.bf16.mxu0 0
  %219 = vmatmul.mubr.bf16.gmra.mrb[0].mxu0 %v87
  %v220 = vpop.f32.mrb[0].mxu0
  %v221 = vadd.f32 0.0, %v220
  %v222 = vpop.f32.mrb[0].mxu0
  %v223 = vpop.f32.mrb[0].mxu0
  %v224 = vadd.f32 0.0, %v223
  %v225 = vpop.f32.mrb[0].mxu0
  %226 = vmatprep.mubr.bf16.mxu0 0
  %227 = vmatmul.mubr.bf16.gmra.mrb[0].mxu0 %v88
  %v228 = vpop.f32.mrb[0].mxu0
  %v229 = vadd.f32 0.0, %v228
  %v230 = vpop.f32.mrb[0].mxu0
  %v231 = vpop.f32.mrb[0].mxu0
  %v232 = vadd.f32 0.0, %v231
  %v233 = vpop.f32.mrb[0].mxu0
  %234 = vmatprep.mubr.bf16.mxu0 0
  %235 = vmatmul.mubr.bf16.gmra.mrb[0].mxu0 %v89
  %v236 = vpop.f32.mrb[0].mxu0
  %v237 = vadd.f32 0.0, %v236
  %v238 = vpop.f32.mrb[0].mxu0
  %v239 = vpop.f32.mrb[0].mxu0
  %v240 = vadd.f32 0.0, %v239
  %v241 = vpop.f32.mrb[0].mxu0
  %242 = vdwg.mxu0
  %s243 = scalar_lea.vmem %s0, 64
  %v244 = vld [vmem:[%s243] sm:$0xf]
  %v245 = vld [vmem:[%s243 + $0x4] sm:$0xf]
  %v246 = vld [vmem:[%s243 + $0x8] sm:$0xf]
  %v247 = vld [vmem:[%s243 + $0xc] sm:$0xf]
  %v248 = vld [vmem:[%s243 + $0x10] sm:$0xf]
  %v249 = vld [vmem:[%s243 + $0x14] sm:$0xf]
  %v250 = vld [vmem:[%s243 + $0x18] sm:$0xf]
  %v251 = vld [vmem:[%s243 + $0x1c] sm:$0xf]
  %v252 = vld [vmem:[%s243 + $0x20] sm:$0xf]
  %v253 = vld [vmem:[%s243 + $0x24] sm:$0xf]
  %v254 = vld [vmem:[%s243 + $0x28] sm:$0xf]
  %v255 = vld [vmem:[%s243 + $0x2c] sm:$0xf]
  %v256 = vld [vmem:[%s243 + $0x30] sm:$0xf]
  %v257 = vld [vmem:[%s243 + $0x34] sm:$0xf]
  %v258 = vld [vmem:[%s243 + $0x38] sm:$0xf]
  %v259 = vld [vmem:[%s243 + $0x3c] sm:$0xf]
  %v276 = vunpack.c.l.b16 %v244
  %v277 = vunpack.c.l.b16 %v245
  %v278 = vunpack.c.l.b16 %v246
  %v279 = vunpack.c.l.b16 %v247
  %v280 = vunpack.c.l.b16 %v248
  %v281 = vunpack.c.l.b16 %v249
  %v282 = vunpack.c.l.b16 %v250
  %v283 = vunpack.c.l.b16 %v251
  %v284 = vunpack.c.l.b16 %v252
  %v285 = vunpack.c.l.b16 %v253
  %v286 = vunpack.c.l.b16 %v254
  %v287 = vunpack.c.l.b16 %v255
  %v288 = vunpack.c.l.b16 %v256
  %v289 = vunpack.c.l.b16 %v257
  %v290 = vunpack.c.l.b16 %v258
  %v291 = vunpack.c.l.b16 %v259
  %v292 = vpack.c.b16 %v277, %v276
  %v293 = vpack.c.b16 %v279, %v278
  %v294 = vpack.c.b16 %v281, %v280
  %v295 = vpack.c.b16 %v283, %v282
  %v296 = vpack.c.b16 %v285, %v284
  %v297 = vpack.c.b16 %v287, %v286
  %v298 = vpack.c.b16 %v289, %v288
  %v299 = vpack.c.b16 %v291, %v290
  %308 = vmatprep.subr.bf16.mxu0 0
  %309 = vmatpush1.bf16.msra.mxu0 %v130
  %310 = vmatprep.subr.bf16.mxu0 0
  %311 = vmatpush1.bf16.msra.mxu0 %v131
  %312 = vmatprep.subr.bf16.mxu0 0
  %313 = vmatpush1.bf16.msra.mxu0 %v132
  %314 = vmatprep.subr.bf16.mxu0 0
  %315 = vmatpush1.bf16.msra.mxu0 %v133
  %316 = vmatprep.subr.bf16.mxu0 0
  %317 = vmatpush1.bf16.msra.mxu0 %v134
  %318 = vmatprep.subr.bf16.mxu0 0
  %319 = vmatpush1.bf16.msra.mxu0 %v135
  %320 = vmatprep.subr.bf16.mxu0 0
  %321 = vmatpush1.bf16.msra.mxu0 %v136
  %322 = vmatprep.subr.bf16.mxu0 0
  %323 = vmatpush1.bf16.msra.mxu0 %v137
  %324 = vmatprep.subr.bf16.mxu0 0
  %325 = vmatpush1.bf16.msra.mxu0 0
  %326 = vmatprep.subr.bf16.mxu0 0
  %327 = vmatpush1.bf16.msra.mxu0 0
  %328 = vmatprep.subr.bf16.mxu0 0
  %329 = vmatpush1.bf16.msra.mxu0 0
  %330 = vmatprep.subr.bf16.mxu0 0
  %331 = vmatpush1.bf16.msra.mxu0 0
  %332 = vmatprep.subr.bf16.mxu0 0
  %333 = vmatpush1.bf16.msra.mxu0 0
  %334 = vmatprep.subr.bf16.mxu0 0
  %335 = vmatpush1.bf16.msra.mxu0 0
  %336 = vmatprep.subr.bf16.mxu0 0
  %337 = vmatpush1.bf16.msra.mxu0 0
  %338 = vmatprep.subr.bf16.mxu0 0
  %339 = vmatpush1.bf16.msra.mxu0 0
  %340 = vmatprep.mubr.bf16.mxu0 0
  %341 = vmatmul.mubr.bf16.gmra.mrb[0].mxu0 %v292
  %v342 = vpop.f32.mrb[0].mxu0
  %v343 = vadd.f32 0.0, %v342
  %v344 = vpop.f32.mrb[0].mxu0
  %v345 = vpop.f32.mrb[0].mxu0
  %v346 = vadd.f32 0.0, %v345
  %v347 = vpop.f32.mrb[0].mxu0
  %348 = vmatprep.mubr.bf16.mxu0 0
  %349 = vmatmul.mubr.bf16.gmra.mrb[0].mxu0 %v293
  %v350 = vpop.f32.mrb[0].mxu0
  %v351 = vadd.f32 0.0, %v350
  %v352 = vpop.f32.mrb[0].mxu0
  %v353 = vpop.f32.mrb[0].mxu0
  %v354 = vadd.f32 0.0, %v353
  %v355 = vpop.f32.mrb[0].mxu0
  %356 = vmatprep.mubr.bf16.mxu0 0
  %357 = vmatmul.mubr.bf16.gmra.mrb[0].mxu0 %v294
  %v358 = vpop.f32.mrb[0].mxu0
  %v359 = vadd.f32 0.0, %v358
  %v360 = vpop.f32.mrb[0].mxu0
  %v361 = vpop.f32.mrb[0].mxu0
  %v362 = vadd.f32 0.0, %v361
  %v363 = vpop.f32.mrb[0].mxu0
  %364 = vmatprep.mubr.bf16.mxu0 0
  %365 = vmatmul.mubr.bf16.gmra.mrb[0].mxu0 %v295
  %v366 = vpop.f32.mrb[0].mxu0
  %v367 = vadd.f32 0.0, %v366
  %v368 = vpop.f32.mrb[0].mxu0
  %v369 = vpop.f32.mrb[0].mxu0
  %v370 = vadd.f32 0.0, %v369
  %v371 = vpop.f32.mrb[0].mxu0
  %372 = vmatprep.mubr.bf16.mxu0 0
  %373 = vmatmul.mubr.bf16.gmra.mrb[0].mxu0 %v296
  %v374 = vpop.f32.mrb[0].mxu0
  %v375 = vadd.f32 0.0, %v374
  %v376 = vpop.f32.mrb[0].mxu0
  %v377 = vpop.f32.mrb[0].mxu0
  %v378 = vadd.f32 0.0, %v377
  %v379 = vpop.f32.mrb[0].mxu0
  %380 = vmatprep.mubr.bf16.mxu0 0
  %381 = vmatmul.mubr.bf16.gmra.mrb[0].mxu0 %v297
  %v382 = vpop.f32.mrb[0].mxu0
  %v383 = vadd.f32 0.0, %v382
  %v384 = vpop.f32.mrb[0].mxu0
  %v385 = vpop.f32.mrb[0].mxu0
  %v386 = vadd.f32 0.0, %v385
  %v387 = vpop.f32.mrb[0].mxu0
  %388 = vmatprep.mubr.bf16.mxu0 0
  %389 = vmatmul.mubr.bf16.gmra.mrb[0].mxu0 %v298
  %v390 = vpop.f32.mrb[0].mxu0
  %v391 = vadd.f32 0.0, %v390
  %v392 = vpop.f32.mrb[0].mxu0
  %v393 = vpop.f32.mrb[0].mxu0
  %v394 = vadd.f32 0.0, %v393
  %v395 = vpop.f32.mrb[0].mxu0
  %396 = vmatprep.mubr.bf16.mxu0 0
  %397 = vmatmul.mubr.bf16.gmra.mrb[0].mxu0 %v299
  %v398 = vpop.f32.mrb[0].mxu0
  %v399 = vadd.f32 0.0, %v398
  %v400 = vpop.f32.mrb[0].mxu0
  %v401 = vpop.f32.mrb[0].mxu0
  %v402 = vadd.f32 0.0, %v401
  %v403 = vpop.f32.mrb[0].mxu0
  %404 = vdwg.mxu0
  %s405 = scalar_lea.vmem %s0, 128
  %v406 = vld [vmem:[%s405] sm:$0xf]
  %v407 = vld [vmem:[%s405 + $0x4] sm:$0xf]
  %v408 = vld [vmem:[%s405 + $0x8] sm:$0xf]
  %v409 = vld [vmem:[%s405 + $0xc] sm:$0xf]
  %v410 = vld [vmem:[%s405 + $0x10] sm:$0xf]
  %v411 = vld [vmem:[%s405 + $0x14] sm:$0xf]
  %v412 = vld [vmem:[%s405 + $0x18] sm:$0xf]
  %v413 = vld [vmem:[%s405 + $0x1c] sm:$0xf]
  %v414 = vld [vmem:[%s405 + $0x20] sm:$0xf]
  %v415 = vld [vmem:[%s405 + $0x24] sm:$0xf]
  %v416 = vld [vmem:[%s405 + $0x28] sm:$0xf]
  %v417 = vld [vmem:[%s405 + $0x2c] sm:$0xf]
  %v418 = vld [vmem:[%s405 + $0x30] sm:$0xf]
  %v419 = vld [vmem:[%s405 + $0x34] sm:$0xf]
  %v420 = vld [vmem:[%s405 + $0x38] sm:$0xf]
  %v421 = vld [vmem:[%s405 + $0x3c] sm:$0xf]
  %v438 = vunpack.c.l.b16 %v406
  %v439 = vunpack.c.l.b16 %v407
  %v440 = vunpack.c.l.b16 %v408
  %v441 = vunpack.c.l.b16 %v409
  %v442 = vunpack.c.l.b16 %v410
  %v443 = vunpack.c.l.b16 %v411
  %v444 = vunpack.c.l.b16 %v412
  %v445 = vunpack.c.l.b16 %v413
  %v446 = vunpack.c.l.b16 %v414
  %v447 = vunpack.c.l.b16 %v415
  %v448 = vunpack.c.l.b16 %v416
  %v449 = vunpack.c.l.b16 %v417
  %v450 = vunpack.c.l.b16 %v418
  %v451 = vunpack.c.l.b16 %v419
  %v452 = vunpack.c.l.b16 %v420
  %v453 = vunpack.c.l.b16 %v421
  %v454 = vpack.c.b16 %v439, %v438
  %v455 = vpack.c.b16 %v441, %v440
  %v456 = vpack.c.b16 %v443, %v442
  %v457 = vpack.c.b16 %v445, %v444
  %v458 = vpack.c.b16 %v447, %v446
  %v459 = vpack.c.b16 %v449, %v448
  %v460 = vpack.c.b16 %v451, %v450
  %v461 = vpack.c.b16 %v453, %v452
  %470 = vmatprep.subr.bf16.mxu0 0
  %471 = vmatpush1.bf16.msra.mxu0 %v130
  %472 = vmatprep.subr.bf16.mxu0 0
  %473 = vmatpush1.bf16.msra.mxu0 %v131
  %474 = vmatprep.subr.bf16.mxu0 0
  %475 = vmatpush1.bf16.msra.mxu0 %v132
  %476 = vmatprep.subr.bf16.mxu0 0
  %477 = vmatpush1.bf16.msra.mxu0 %v133
  %478 = vmatprep.subr.bf16.mxu0 0
  %479 = vmatpush1.bf16.msra.mxu0 %v134
  %480 = vmatprep.subr.bf16.mxu0 0
  %481 = vmatpush1.bf16.msra.mxu0 %v135
  %482 = vmatprep.subr.bf16.mxu0 0
  %483 = vmatpush1.bf16.msra.mxu0 %v136
  %484 = vmatprep.subr.bf16.mxu0 0
  %485 = vmatpush1.bf16.msra.mxu0 %v137
  %486 = vmatprep.subr.bf16.mxu0 0
  %487 = vmatpush1.bf16.msra.mxu0 0
  %488 = vmatprep.subr.bf16.mxu0 0
  %489 = vmatpush1.bf16.msra.mxu0 0
  %490 = vmatprep.subr.bf16.mxu0 0
  %491 = vmatpush1.bf16.msra.mxu0 0
  %492 = vmatprep.subr.bf16.mxu0 0
  %493 = vmatpush1.bf16.msra.mxu0 0
  %494 = vmatprep.subr.bf16.mxu0 0
  %495 = vmatpush1.bf16.msra.mxu0 0
  %496 = vmatprep.subr.bf16.mxu0 0
  %497 = vmatpush1.bf16.msra.mxu0 0
  %498 = vmatprep.subr.bf16.mxu0 0
  %499 = vmatpush1.bf16.msra.mxu0 0
  %500 = vmatprep.subr.bf16.mxu0 0
  %501 = vmatpush1.bf16.msra.mxu0 0
  %502 = vmatprep.mubr.bf16.mxu0 0
  %503 = vmatmul.mubr.bf16.gmra.mrb[0].mxu0 %v454
  %v504 = vpop.f32.mrb[0].mxu0
  %v505 = vadd.f32 0.0, %v504
  %v506 = vpop.f32.mrb[0].mxu0
  %v507 = vpop.f32.mrb[0].mxu0
  %v508 = vadd.f32 0.0, %v507
  %v509 = vpop.f32.mrb[0].mxu0
  %510 = vmatprep.mubr.bf16.mxu0 0
  %511 = vmatmul.mubr.bf16.gmra.mrb[0].mxu0 %v455
  %v512 = vpop.f32.mrb[0].mxu0
  %v513 = vadd.f32 0.0, %v512
  %v514 = vpop.f32.mrb[0].mxu0
  %v515 = vpop.f32.mrb[0].mxu0
  %v516 = vadd.f32 0.0, %v515
  %v517 = vpop.f32.mrb[0].mxu0
  %518 = vmatprep.mubr.bf16.mxu0 0
  %519 = vmatmul.mubr.bf16.gmra.mrb[0].mxu0 %v456
  %v520 = vpop.f32.mrb[0].mxu0
  %v521 = vadd.f32 0.0, %v520
  %v522 = vpop.f32.mrb[0].mxu0
  %v523 = vpop.f32.mrb[0].mxu0
  %v524 = vadd.f32 0.0, %v523
  %v525 = vpop.f32.mrb[0].mxu0
  %526 = vmatprep.mubr.bf16.mxu0 0
  %527 = vmatmul.mubr.bf16.gmra.mrb[0].mxu0 %v457
  %v528 = vpop.f32.mrb[0].mxu0
  %v529 = vadd.f32 0.0, %v528
  %v530 = vpop.f32.mrb[0].mxu0
  %v531 = vpop.f32.mrb[0].mxu0
  %v532 = vadd.f32 0.0, %v531
  %v533 = vpop.f32.mrb[0].mxu0
  %534 = vmatprep.mubr.bf16.mxu0 0
  %535 = vmatmul.mubr.bf16.gmra.mrb[0].mxu0 %v458
  %v536 = vpop.f32.mrb[0].mxu0
  %v537 = vadd.f32 0.0, %v536
  %v538 = vpop.f32.mrb[0].mxu0
  %v539 = vpop.f32.mrb[0].mxu0
  %v540 = vadd.f32 0.0, %v539
  %v541 = vpop.f32.mrb[0].mxu0
  %542 = vmatprep.mubr.bf16.mxu0 0
  %543 = vmatmul.mubr.bf16.gmra.mrb[0].mxu0 %v459
  %v544 = vpop.f32.mrb[0].mxu0
  %v545 = vadd.f32 0.0, %v544
  %v546 = vpop.f32.mrb[0].mxu0
  %v547 = vpop.f32.mrb[0].mxu0
  %v548 = vadd.f32 0.0, %v547
  %v549 = vpop.f32.mrb[0].mxu0
  %550 = vmatprep.mubr.bf16.mxu0 0
  %551 = vmatmul.mubr.bf16.gmra.mrb[0].mxu0 %v460
  %v552 = vpop.f32.mrb[0].mxu0
  %v553 = vadd.f32 0.0, %v552
  %v554 = vpop.f32.mrb[0].mxu0
  %v555 = vpop.f32.mrb[0].mxu0
  %v556 = vadd.f32 0.0, %v555
  %v557 = vpop.f32.mrb[0].mxu0
  %558 = vmatprep.mubr.bf16.mxu0 0
  %559 = vmatmul.mubr.bf16.gmra.mrb[0].mxu0 %v461
  %v560 = vpop.f32.mrb[0].mxu0
  %v561 = vadd.f32 0.0, %v560
  %v562 = vpop.f32.mrb[0].mxu0
  %v563 = vpop.f32.mrb[0].mxu0
  %v564 = vadd.f32 0.0, %v563
  %v565 = vpop.f32.mrb[0].mxu0
  %566 = vdwg.mxu0
  %s567 = scalar_lea.vmem %s0, 192
  %v568 = vld [vmem:[%s567] sm:$0xf]
  %v569 = vld [vmem:[%s567 + $0x4] sm:$0xf]
  %v570 = vld [vmem:[%s567 + $0x8] sm:$0xf]
  %v571 = vld [vmem:[%s567 + $0xc] sm:$0xf]
  %v572 = vld [vmem:[%s567 + $0x10] sm:$0xf]
  %v573 = vld [vmem:[%s567 + $0x14] sm:$0xf]
  %v574 = vld [vmem:[%s567 + $0x18] sm:$0xf]
  %v575 = vld [vmem:[%s567 + $0x1c] sm:$0xf]
  %v576 = vld [vmem:[%s567 + $0x20] sm:$0xf]
  %v577 = vld [vmem:[%s567 + $0x24] sm:$0xf]
  %v578 = vld [vmem:[%s567 + $0x28] sm:$0xf]
  %v579 = vld [vmem:[%s567 + $0x2c] sm:$0xf]
  %v580 = vld [vmem:[%s567 + $0x30] sm:$0xf]
  %v581 = vld [vmem:[%s567 + $0x34] sm:$0xf]
  %v582 = vld [vmem:[%s567 + $0x38] sm:$0xf]
  %v583 = vld [vmem:[%s567 + $0x3c] sm:$0xf]
  %v600 = vunpack.c.l.b16 %v568
  %v601 = vunpack.c.l.b16 %v569
  %v602 = vunpack.c.l.b16 %v570
  %v603 = vunpack.c.l.b16 %v571
  %v604 = vunpack.c.l.b16 %v572
  %v605 = vunpack.c.l.b16 %v573
  %v606 = vunpack.c.l.b16 %v574
  %v607 = vunpack.c.l.b16 %v575
  %v608 = vunpack.c.l.b16 %v576
  %v609 = vunpack.c.l.b16 %v577
  %v610 = vunpack.c.l.b16 %v578
  %v611 = vunpack.c.l.b16 %v579
  %v612 = vunpack.c.l.b16 %v580
  %v613 = vunpack.c.l.b16 %v581
  %v614 = vunpack.c.l.b16 %v582
  %v615 = vunpack.c.l.b16 %v583
  %v616 = vpack.c.b16 %v601, %v600
  %v617 = vpack.c.b16 %v603, %v602
  %v618 = vpack.c.b16 %v605, %v604
  %v619 = vpack.c.b16 %v607, %v606
  %v620 = vpack.c.b16 %v609, %v608
  %v621 = vpack.c.b16 %v611, %v610
  %v622 = vpack.c.b16 %v613, %v612
  %v623 = vpack.c.b16 %v615, %v614
  %632 = vmatprep.subr.bf16.mxu0 0
  %633 = vmatpush1.bf16.msra.mxu0 %v130
  %634 = vmatprep.subr.bf16.mxu0 0
  %635 = vmatpush1.bf16.msra.mxu0 %v131
  %636 = vmatprep.subr.bf16.mxu0 0
  %637 = vmatpush1.bf16.msra.mxu0 %v132
  %638 = vmatprep.subr.bf16.mxu0 0
  %639 = vmatpush1.bf16.msra.mxu0 %v133
  %640 = vmatprep.subr.bf16.mxu0 0
  %641 = vmatpush1.bf16.msra.mxu0 %v134
  %642 = vmatprep.subr.bf16.mxu0 0
  %643 = vmatpush1.bf16.msra.mxu0 %v135
  %644 = vmatprep.subr.bf16.mxu0 0
  %645 = vmatpush1.bf16.msra.mxu0 %v136
  %646 = vmatprep.subr.bf16.mxu0 0
  %647 = vmatpush1.bf16.msra.mxu0 %v137
  %648 = vmatprep.subr.bf16.mxu0 0
  %649 = vmatpush1.bf16.msra.mxu0 0
  %650 = vmatprep.subr.bf16.mxu0 0
  %651 = vmatpush1.bf16.msra.mxu0 0
  %652 = vmatprep.subr.bf16.mxu0 0
  %653 = vmatpush1.bf16.msra.mxu0 0
  %654 = vmatprep.subr.bf16.mxu0 0
  %655 = vmatpush1.bf16.msra.mxu0 0
  %656 = vmatprep.subr.bf16.mxu0 0
  %657 = vmatpush1.bf16.msra.mxu0 0
  %658 = vmatprep.subr.bf16.mxu0 0
  %659 = vmatpush1.bf16.msra.mxu0 0
  %660 = vmatprep.subr.bf16.mxu0 0
  %661 = vmatpush1.bf16.msra.mxu0 0
  %662 = vmatprep.subr.bf16.mxu0 0
  %663 = vmatpush1.bf16.msra.mxu0 0
  %664 = vmatprep.mubr.bf16.mxu0 0
  %665 = vmatmul.mubr.bf16.gmra.mrb[0].mxu0 %v616
  %v666 = vpop.f32.mrb[0].mxu0
  %v667 = vadd.f32 0.0, %v666
  %v668 = vpop.f32.mrb[0].mxu0
  %v669 = vpop.f32.mrb[0].mxu0
  %v670 = vadd.f32 0.0, %v669
  %v671 = vpop.f32.mrb[0].mxu0
  %672 = vmatprep.mubr.bf16.mxu0 0
  %673 = vmatmul.mubr.bf16.gmra.mrb[0].mxu0 %v617
  %v674 = vpop.f32.mrb[0].mxu0
  %v675 = vadd.f32 0.0, %v674
  %v676 = vpop.f32.mrb[0].mxu0
  %v677 = vpop.f32.mrb[0].mxu0
  %v678 = vadd.f32 0.0, %v677
  %v679 = vpop.f32.mrb[0].mxu0
  %680 = vmatprep.mubr.bf16.mxu0 0
  %681 = vmatmul.mubr.bf16.gmra.mrb[0].mxu0 %v618
  %v682 = vpop.f32.mrb[0].mxu0
  %v683 = vadd.f32 0.0, %v682
  %v684 = vpop.f32.mrb[0].mxu0
  %v685 = vpop.f32.mrb[0].mxu0
  %v686 = vadd.f32 0.0, %v685
  %v687 = vpop.f32.mrb[0].mxu0
  %688 = vmatprep.mubr.bf16.mxu0 0
  %689 = vmatmul.mubr.bf16.gmra.mrb[0].mxu0 %v619
  %v690 = vpop.f32.mrb[0].mxu0
  %v691 = vadd.f32 0.0, %v690
  %v692 = vpop.f32.mrb[0].mxu0
  %v693 = vpop.f32.mrb[0].mxu0
  %v694 = vadd.f32 0.0, %v693
  %v695 = vpop.f32.mrb[0].mxu0
  %696 = vmatprep.mubr.bf16.mxu0 0
  %697 = vmatmul.mubr.bf16.gmra.mrb[0].mxu0 %v620
  %v698 = vpop.f32.mrb[0].mxu0
  %v699 = vadd.f32 0.0, %v698
  %v700 = vpop.f32.mrb[0].mxu0
  %v701 = vpop.f32.mrb[0].mxu0
  %v702 = vadd.f32 0.0, %v701
  %v703 = vpop.f32.mrb[0].mxu0
  %704 = vmatprep.mubr.bf16.mxu0 0
  %705 = vmatmul.mubr.bf16.gmra.mrb[0].mxu0 %v621
  %v706 = vpop.f32.mrb[0].mxu0
  %v707 = vadd.f32 0.0, %v706
  %v708 = vpop.f32.mrb[0].mxu0
  %v709 = vpop.f32.mrb[0].mxu0
  %v710 = vadd.f32 0.0, %v709
  %v711 = vpop.f32.mrb[0].mxu0
  %712 = vmatprep.mubr.bf16.mxu0 0
  %713 = vmatmul.mubr.bf16.gmra.mrb[0].mxu0 %v622
  %v714 = vpop.f32.mrb[0].mxu0
  %v715 = vadd.f32 0.0, %v714
  %v716 = vpop.f32.mrb[0].mxu0
  %v717 = vpop.f32.mrb[0].mxu0
  %v718 = vadd.f32 0.0, %v717
  %v719 = vpop.f32.mrb[0].mxu0
  %720 = vmatprep.mubr.bf16.mxu0 0
  %721 = vmatmul.mubr.bf16.gmra.mrb[0].mxu0 %v623
  %v722 = vpop.f32.mrb[0].mxu0
  %v723 = vadd.f32 0.0, %v722
  %v724 = vpop.f32.mrb[0].mxu0
  %v725 = vpop.f32.mrb[0].mxu0
  %v726 = vadd.f32 0.0, %v725
  %v727 = vpop.f32.mrb[0].mxu0
  %728 = vdwg.mxu0
  %vm729 = vcmask 261120
  %v730 = vsel %vm729, %v181, 0.0
  %v731 = vsel %vm729, %v184, 0.0
  %v732 = vadd.f32 %v730, %v731
  %v733 = vsel %vm729, %v189, 0.0
  %v734 = vadd.f32 %v732, %v733
  %v735 = vsel %vm729, %v192, 0.0
  %v736 = vadd.f32 %v734, %v735
  %v737 = vsel %vm729, %v197, 0.0
  %v738 = vadd.f32 %v736, %v737
  %v739 = vsel %vm729, %v200, 0.0
  %v740 = vadd.f32 %v738, %v739
  %v741 = vsel %vm729, %v205, 0.0
  %v742 = vadd.f32 %v740, %v741
  %v743 = vsel %vm729, %v208, 0.0
  %v744 = vadd.f32 %v742, %v743
  %v745 = vsel %vm729, %v213, 0.0
  %v746 = vadd.f32 %v744, %v745
  %v747 = vsel %vm729, %v216, 0.0
  %v748 = vadd.f32 %v746, %v747
  %v749 = vsel %vm729, %v221, 0.0
  %v750 = vadd.f32 %v748, %v749
  %v751 = vsel %vm729, %v224, 0.0
  %v752 = vadd.f32 %v750, %v751
  %v753 = vsel %vm729, %v229, 0.0
  %v754 = vadd.f32 %v752, %v753
  %v755 = vsel %vm729, %v232, 0.0
  %v756 = vadd.f32 %v754, %v755
  %v757 = vsel %vm729, %v237, 0.0
  %v758 = vadd.f32 %v756, %v757
  %v759 = vsel %vm729, %v240, 0.0
  %v760 = vadd.f32 %v758, %v759
  %v761 = vrot.slane %v760, 4
  %v762 = vadd.f32 %v760, %v761
  %v763 = vrot.slane %v762, 2
  %v764 = vadd.f32 %v762, %v763
  %v765 = vrot.slane %v764, 1
  %v766 = vadd.f32 %v764, %v765
  %v767 = vadd.f32 %v766, 0.0
  %v768 = vsel %vm729, %v343, 0.0
  %v769 = vsel %vm729, %v346, 0.0
  %v770 = vadd.f32 %v768, %v769
  %v771 = vsel %vm729, %v351, 0.0
  %v772 = vadd.f32 %v770, %v771
  %v773 = vsel %vm729, %v354, 0.0
  %v774 = vadd.f32 %v772, %v773
  %v775 = vsel %vm729, %v359, 0.0
  %v776 = vadd.f32 %v774, %v775
  %v777 = vsel %vm729, %v362, 0.0
  %v778 = vadd.f32 %v776, %v777
  %v779 = vsel %vm729, %v367, 0.0
  %v780 = vadd.f32 %v778, %v779
  %v781 = vsel %vm729, %v370, 0.0
  %v782 = vadd.f32 %v780, %v781
  %v783 = vsel %vm729, %v375, 0.0
  %v784 = vadd.f32 %v782, %v783
  %v785 = vsel %vm729, %v378, 0.0
  %v786 = vadd.f32 %v784, %v785
  %v787 = vsel %vm729, %v383, 0.0
  %v788 = vadd.f32 %v786, %v787
  %v789 = vsel %vm729, %v386, 0.0
  %v790 = vadd.f32 %v788, %v789
  %v791 = vsel %vm729, %v391, 0.0
  %v792 = vadd.f32 %v790, %v791
  %v793 = vsel %vm729, %v394, 0.0
  %v794 = vadd.f32 %v792, %v793
  %v795 = vsel %vm729, %v399, 0.0
  %v796 = vadd.f32 %v794, %v795
  %v797 = vsel %vm729, %v402, 0.0
  %v798 = vadd.f32 %v796, %v797
  %v799 = vrot.slane %v798, 4
  %v800 = vadd.f32 %v798, %v799
  %v801 = vrot.slane %v800, 2
  %v802 = vadd.f32 %v800, %v801
  %v803 = vrot.slane %v802, 1
  %v804 = vadd.f32 %v802, %v803
  %v805 = vadd.f32 %v767, %v804
  %v806 = vsel %vm729, %v505, 0.0
  %v807 = vsel %vm729, %v508, 0.0
  %v808 = vadd.f32 %v806, %v807
  %v809 = vsel %vm729, %v513, 0.0
  %v810 = vadd.f32 %v808, %v809
  %v811 = vsel %vm729, %v516, 0.0
  %v812 = vadd.f32 %v810, %v811
  %v813 = vsel %vm729, %v521, 0.0
  %v814 = vadd.f32 %v812, %v813
  %v815 = vsel %vm729, %v524, 0.0
  %v816 = vadd.f32 %v814, %v815
  %v817 = vsel %vm729, %v529, 0.0
  %v818 = vadd.f32 %v816, %v817
  %v819 = vsel %vm729, %v532, 0.0
  %v820 = vadd.f32 %v818, %v819
  %v821 = vsel %vm729, %v537, 0.0
  %v822 = vadd.f32 %v820, %v821
  %v823 = vsel %vm729, %v540, 0.0
  %v824 = vadd.f32 %v822, %v823
  %v825 = vsel %vm729, %v545, 0.0
  %v826 = vadd.f32 %v824, %v825
  %v827 = vsel %vm729, %v548, 0.0
  %v828 = vadd.f32 %v826, %v827
  %v829 = vsel %vm729, %v553, 0.0
  %v830 = vadd.f32 %v828, %v829
  %v831 = vsel %vm729, %v556, 0.0
  %v832 = vadd.f32 %v830, %v831
  %v833 = vsel %vm729, %v561, 0.0
  %v834 = vadd.f32 %v832, %v833
  %v835 = vsel %vm729, %v564, 0.0
  %v836 = vadd.f32 %v834, %v835
  %v837 = vrot.slane %v836, 4
  %v838 = vadd.f32 %v836, %v837
  %v839 = vrot.slane %v838, 2
  %v840 = vadd.f32 %v838, %v839
  %v841 = vrot.slane %v840, 1
  %v842 = vadd.f32 %v840, %v841
  %v843 = vadd.f32 %v805, %v842
  %v844 = vsel %vm729, %v667, 0.0
  %v845 = vsel %vm729, %v670, 0.0
  %v846 = vadd.f32 %v844, %v845
  %v847 = vsel %vm729, %v675, 0.0
  %v848 = vadd.f32 %v846, %v847
  %v849 = vsel %vm729, %v678, 0.0
  %v850 = vadd.f32 %v848, %v849
  %v851 = vsel %vm729, %v683, 0.0
  %v852 = vadd.f32 %v850, %v851
  %v853 = vsel %vm729, %v686, 0.0
  %v854 = vadd.f32 %v852, %v853
  %v855 = vsel %vm729, %v691, 0.0
  %v856 = vadd.f32 %v854, %v855
  %v857 = vsel %vm729, %v694, 0.0
  %v858 = vadd.f32 %v856, %v857
  %v859 = vsel %vm729, %v699, 0.0
  %v860 = vadd.f32 %v858, %v859
  %v861 = vsel %vm729, %v702, 0.0
  %v862 = vadd.f32 %v860, %v861
  %v863 = vsel %vm729, %v707, 0.0
  %v864 = vadd.f32 %v862, %v863
  %v865 = vsel %vm729, %v710, 0.0
  %v866 = vadd.f32 %v864, %v865
  %v867 = vsel %vm729, %v715, 0.0
  %v868 = vadd.f32 %v866, %v867
  %v869 = vsel %vm729, %v718, 0.0
  %v870 = vadd.f32 %v868, %v869
  %v871 = vsel %vm729, %v723, 0.0
  %v872 = vadd.f32 %v870, %v871
  %v873 = vsel %vm729, %v726, 0.0
  %v874 = vadd.f32 %v872, %v873
  %v875 = vrot.slane %v874, 4
  %v876 = vadd.f32 %v874, %v875
  %v877 = vrot.slane %v876, 2
  %v878 = vadd.f32 %v876, %v877
  %v879 = vrot.slane %v878, 1
  %v880 = vadd.f32 %v878, %v879
  %v881 = vadd.f32 %v843, %v880
  %v882 = vmul.f32 %v181, %v181
  %v883 = vmul.f32 %v184, %v184
  %v884 = vmul.f32 %v189, %v189
  %v885 = vmul.f32 %v192, %v192
  %v886 = vmul.f32 %v197, %v197
  %v887 = vmul.f32 %v200, %v200
  %v888 = vmul.f32 %v205, %v205
  %v889 = vmul.f32 %v208, %v208
  %v890 = vmul.f32 %v213, %v213
  %v891 = vmul.f32 %v216, %v216
  %v892 = vmul.f32 %v221, %v221
  %v893 = vmul.f32 %v224, %v224
  %v894 = vmul.f32 %v229, %v229
  %v895 = vmul.f32 %v232, %v232
  %v896 = vmul.f32 %v237, %v237
  %v897 = vmul.f32 %v240, %v240
  %v898 = vsel %vm729, %v882, 0.0
  %v899 = vsel %vm729, %v883, 0.0
  %v900 = vadd.f32 %v898, %v899
  %v901 = vsel %vm729, %v884, 0.0
  %v902 = vadd.f32 %v900, %v901
  %v903 = vsel %vm729, %v885, 0.0
  %v904 = vadd.f32 %v902, %v903
  %v905 = vsel %vm729, %v886, 0.0
  %v906 = vadd.f32 %v904, %v905
  %v907 = vsel %vm729, %v887, 0.0
  %v908 = vadd.f32 %v906, %v907
  %v909 = vsel %vm729, %v888, 0.0
  %v910 = vadd.f32 %v908, %v909
  %v911 = vsel %vm729, %v889, 0.0
  %v912 = vadd.f32 %v910, %v911
  %v913 = vsel %vm729, %v890, 0.0
  %v914 = vadd.f32 %v912, %v913
  %v915 = vsel %vm729, %v891, 0.0
  %v916 = vadd.f32 %v914, %v915
  %v917 = vsel %vm729, %v892, 0.0
  %v918 = vadd.f32 %v916, %v917
  %v919 = vsel %vm729, %v893, 0.0
  %v920 = vadd.f32 %v918, %v919
  %v921 = vsel %vm729, %v894, 0.0
  %v922 = vadd.f32 %v920, %v921
  %v923 = vsel %vm729, %v895, 0.0
  %v924 = vadd.f32 %v922, %v923
  %v925 = vsel %vm729, %v896, 0.0
  %v926 = vadd.f32 %v924, %v925
  %v927 = vsel %vm729, %v897, 0.0
  %v928 = vadd.f32 %v926, %v927
  %v929 = vrot.slane %v928, 4
  %v930 = vadd.f32 %v928, %v929
  %v931 = vrot.slane %v930, 2
  %v932 = vadd.f32 %v930, %v931
  %v933 = vrot.slane %v932, 1
  %v934 = vadd.f32 %v932, %v933
  %v935 = vadd.f32 %v934, 0.0
  %v936 = vmul.f32 %v343, %v343
  %v937 = vmul.f32 %v346, %v346
  %v938 = vmul.f32 %v351, %v351
  %v939 = vmul.f32 %v354, %v354
  %v940 = vmul.f32 %v359, %v359
  %v941 = vmul.f32 %v362, %v362
  %v942 = vmul.f32 %v367, %v367
  %v943 = vmul.f32 %v370, %v370
  %v944 = vmul.f32 %v375, %v375
  %v945 = vmul.f32 %v378, %v378
  %v946 = vmul.f32 %v383, %v383
  %v947 = vmul.f32 %v386, %v386
  %v948 = vmul.f32 %v391, %v391
  %v949 = vmul.f32 %v394, %v394
  %v950 = vmul.f32 %v399, %v399
  %v951 = vmul.f32 %v402, %v402
  %v952 = vsel %vm729, %v936, 0.0
  %v953 = vsel %vm729, %v937, 0.0
  %v954 = vadd.f32 %v952, %v953
  %v955 = vsel %vm729, %v938, 0.0
  %v956 = vadd.f32 %v954, %v955
  %v957 = vsel %vm729, %v939, 0.0
  %v958 = vadd.f32 %v956, %v957
  %v959 = vsel %vm729, %v940, 0.0
  %v960 = vadd.f32 %v958, %v959
  %v961 = vsel %vm729, %v941, 0.0
  %v962 = vadd.f32 %v960, %v961
  %v963 = vsel %vm729, %v942, 0.0
  %v964 = vadd.f32 %v962, %v963
  %v965 = vsel %vm729, %v943, 0.0
  %v966 = vadd.f32 %v964, %v965
  %v967 = vsel %vm729, %v944, 0.0
  %v968 = vadd.f32 %v966, %v967
  %v969 = vsel %vm729, %v945, 0.0
  %v970 = vadd.f32 %v968, %v969
  %v971 = vsel %vm729, %v946, 0.0
  %v972 = vadd.f32 %v970, %v971
  %v973 = vsel %vm729, %v947, 0.0
  %v974 = vadd.f32 %v972, %v973
  %v975 = vsel %vm729, %v948, 0.0
  %v976 = vadd.f32 %v974, %v975
  %v977 = vsel %vm729, %v949, 0.0
  %v978 = vadd.f32 %v976, %v977
  %v979 = vsel %vm729, %v950, 0.0
  %v980 = vadd.f32 %v978, %v979
  %v981 = vsel %vm729, %v951, 0.0
  %v982 = vadd.f32 %v980, %v981
  %v983 = vrot.slane %v982, 4
  %v984 = vadd.f32 %v982, %v983
  %v985 = vrot.slane %v984, 2
  %v986 = vadd.f32 %v984, %v985
  %v987 = vrot.slane %v986, 1
  %v988 = vadd.f32 %v986, %v987
  %v989 = vadd.f32 %v935, %v988
  %v990 = vmul.f32 %v505, %v505
  %v991 = vmul.f32 %v508, %v508
  %v992 = vmul.f32 %v513, %v513
  %v993 = vmul.f32 %v516, %v516
  %v994 = vmul.f32 %v521, %v521
  %v995 = vmul.f32 %v524, %v524
  %v996 = vmul.f32 %v529, %v529
  %v997 = vmul.f32 %v532, %v532
  %v998 = vmul.f32 %v537, %v537
  %v999 = vmul.f32 %v540, %v540
  %v1000 = vmul.f32 %v545, %v545
  %v1001 = vmul.f32 %v548, %v548
  %v1002 = vmul.f32 %v553, %v553
  %v1003 = vmul.f32 %v556, %v556
  %v1004 = vmul.f32 %v561, %v561
  %v1005 = vmul.f32 %v564, %v564
  %v1006 = vsel %vm729, %v990, 0.0
  %v1007 = vsel %vm729, %v991, 0.0
  %v1008 = vadd.f32 %v1006, %v1007
  %v1009 = vsel %vm729, %v992, 0.0
  %v1010 = vadd.f32 %v1008, %v1009
  %v1011 = vsel %vm729, %v993, 0.0
  %v1012 = vadd.f32 %v1010, %v1011
  %v1013 = vsel %vm729, %v994, 0.0
  %v1014 = vadd.f32 %v1012, %v1013
  %v1015 = vsel %vm729, %v995, 0.0
  %v1016 = vadd.f32 %v1014, %v1015
  %v1017 = vsel %vm729, %v996, 0.0
  %v1018 = vadd.f32 %v1016, %v1017
  %v1019 = vsel %vm729, %v997, 0.0
  %v1020 = vadd.f32 %v1018, %v1019
  %v1021 = vsel %vm729, %v998, 0.0
  %v1022 = vadd.f32 %v1020, %v1021
  %v1023 = vsel %vm729, %v999, 0.0
  %v1024 = vadd.f32 %v1022, %v1023
  %v1025 = vsel %vm729, %v1000, 0.0
  %v1026 = vadd.f32 %v1024, %v1025
  %v1027 = vsel %vm729, %v1001, 0.0
  %v1028 = vadd.f32 %v1026, %v1027
  %v1029 = vsel %vm729, %v1002, 0.0
  %v1030 = vadd.f32 %v1028, %v1029
  %v1031 = vsel %vm729, %v1003, 0.0
  %v1032 = vadd.f32 %v1030, %v1031
  %v1033 = vsel %vm729, %v1004, 0.0
  %v1034 = vadd.f32 %v1032, %v1033
  %v1035 = vsel %vm729, %v1005, 0.0
  %v1036 = vadd.f32 %v1034, %v1035
  %v1037 = vrot.slane %v1036, 4
  %v1038 = vadd.f32 %v1036, %v1037
  %v1039 = vrot.slane %v1038, 2
  %v1040 = vadd.f32 %v1038, %v1039
  %v1041 = vrot.slane %v1040, 1
  %v1042 = vadd.f32 %v1040, %v1041
  %v1043 = vadd.f32 %v989, %v1042
  %v1044 = vmul.f32 %v667, %v667
  %v1045 = vmul.f32 %v670, %v670
  %v1046 = vmul.f32 %v675, %v675
  %v1047 = vmul.f32 %v678, %v678
  %v1048 = vmul.f32 %v683, %v683
  %v1049 = vmul.f32 %v686, %v686
  %v1050 = vmul.f32 %v691, %v691
  %v1051 = vmul.f32 %v694, %v694
  %v1052 = vmul.f32 %v699, %v699
  %v1053 = vmul.f32 %v702, %v702
  %v1054 = vmul.f32 %v707, %v707
  %v1055 = vmul.f32 %v710, %v710
  %v1056 = vmul.f32 %v715, %v715
  %v1057 = vmul.f32 %v718, %v718
  %v1058 = vmul.f32 %v723, %v723
  %v1059 = vmul.f32 %v726, %v726
  %v1060 = vsel %vm729, %v1044, 0.0
  %v1061 = vsel %vm729, %v1045, 0.0
  %v1062 = vadd.f32 %v1060, %v1061
  %v1063 = vsel %vm729, %v1046, 0.0
  %v1064 = vadd.f32 %v1062, %v1063
  %v1065 = vsel %vm729, %v1047, 0.0
  %v1066 = vadd.f32 %v1064, %v1065
  %v1067 = vsel %vm729, %v1048, 0.0
  %v1068 = vadd.f32 %v1066, %v1067
  %v1069 = vsel %vm729, %v1049, 0.0
  %v1070 = vadd.f32 %v1068, %v1069
  %v1071 = vsel %vm729, %v1050, 0.0
  %v1072 = vadd.f32 %v1070, %v1071
  %v1073 = vsel %vm729, %v1051, 0.0
  %v1074 = vadd.f32 %v1072, %v1073
  %v1075 = vsel %vm729, %v1052, 0.0
  %v1076 = vadd.f32 %v1074, %v1075
  %v1077 = vsel %vm729, %v1053, 0.0
  %v1078 = vadd.f32 %v1076, %v1077
  %v1079 = vsel %vm729, %v1054, 0.0
  %v1080 = vadd.f32 %v1078, %v1079
  %v1081 = vsel %vm729, %v1055, 0.0
  %v1082 = vadd.f32 %v1080, %v1081
  %v1083 = vsel %vm729, %v1056, 0.0
  %v1084 = vadd.f32 %v1082, %v1083
  %v1085 = vsel %vm729, %v1057, 0.0
  %v1086 = vadd.f32 %v1084, %v1085
  %v1087 = vsel %vm729, %v1058, 0.0
  %v1088 = vadd.f32 %v1086, %v1087
  %v1089 = vsel %vm729, %v1059, 0.0
  %v1090 = vadd.f32 %v1088, %v1089
  %v1091 = vrot.slane %v1090, 4
  %v1092 = vadd.f32 %v1090, %v1091
  %v1093 = vrot.slane %v1092, 2
  %v1094 = vadd.f32 %v1092, %v1093
  %v1095 = vrot.slane %v1094, 1
  %v1096 = vadd.f32 %v1094, %v1095
  %v1097 = vadd.f32 %v1043, %v1096
  %v1098 = vmul.f32 %v881, 0.001953125
  %v1099 = vmul.f32 %v1097, 0.001953125
  %v1100 = vmul.f32 %v1098, %v1098
  %v1101 = vsub.f32 %v1099, %v1100
  %v1102 = vmax.f32 %v1101, 0.0
  %v1103 = vadd.f32 %v1102, 1e-05
  %v1104 = vrsqrt.pop %v1103
  %v1105 = vld [vmem:[%s2] sm:$0x1]
  %v1106 = vmul.f32 %v1105, %v1104
  %v1107 = vld [vmem:[%s3] sm:$0x1]
  %v1108 = vmul.f32 %v1098, %v1106
  %v1109 = vsub.f32 %v1107, %v1108
  %v1111 = vlaneseq
  %v1112 = vshrl.u32 %v1111, 7
  %v1113 = vsub.s32 0, %v1112
  %v1114 = vrot.slane %v1106, %v1113
  %v1116 = vmul.f32 %v181, %v1114
  %v1117 = vmul.f32 %v184, %v1114
  %v1118 = vmul.f32 %v189, %v1114
  %v1119 = vmul.f32 %v192, %v1114
  %v1120 = vmul.f32 %v197, %v1114
  %v1121 = vmul.f32 %v200, %v1114
  %v1122 = vmul.f32 %v205, %v1114
  %v1123 = vmul.f32 %v208, %v1114
  %v1124 = vmul.f32 %v213, %v1114
  %v1125 = vmul.f32 %v216, %v1114
  %v1126 = vmul.f32 %v221, %v1114
  %v1127 = vmul.f32 %v224, %v1114
  %v1128 = vmul.f32 %v229, %v1114
  %v1129 = vmul.f32 %v232, %v1114
  %v1130 = vmul.f32 %v237, %v1114
  %v1131 = vmul.f32 %v240, %v1114
  %v1133 = vlaneseq
  %v1134 = vshrl.u32 %v1133, 7
  %v1135 = vsub.s32 0, %v1134
  %v1136 = vrot.slane %v1109, %v1135
  %v1138 = vadd.f32 %v1116, %v1136
  %v1139 = vadd.f32 %v1117, %v1136
  %v1140 = vadd.f32 %v1118, %v1136
  %v1141 = vadd.f32 %v1119, %v1136
  %v1142 = vadd.f32 %v1120, %v1136
  %v1143 = vadd.f32 %v1121, %v1136
  %v1144 = vadd.f32 %v1122, %v1136
  %v1145 = vadd.f32 %v1123, %v1136
  %v1146 = vadd.f32 %v1124, %v1136
  %v1147 = vadd.f32 %v1125, %v1136
  %v1148 = vadd.f32 %v1126, %v1136
  %v1149 = vadd.f32 %v1127, %v1136
  %v1150 = vadd.f32 %v1128, %v1136
  %v1151 = vadd.f32 %v1129, %v1136
  %v1152 = vadd.f32 %v1130, %v1136
  %v1153 = vadd.f32 %v1131, %v1136
  %v1154 = vmax.f32 %v1138, 0.0
  %v1155 = vmax.f32 %v1139, 0.0
  %v1156 = vmax.f32 %v1140, 0.0
  %v1157 = vmax.f32 %v1141, 0.0
  %v1158 = vmax.f32 %v1142, 0.0
  %v1159 = vmax.f32 %v1143, 0.0
  %v1160 = vmax.f32 %v1144, 0.0
  %v1161 = vmax.f32 %v1145, 0.0
  %v1162 = vmax.f32 %v1146, 0.0
  %v1163 = vmax.f32 %v1147, 0.0
  %v1164 = vmax.f32 %v1148, 0.0
  %v1165 = vmax.f32 %v1149, 0.0
  %v1166 = vmax.f32 %v1150, 0.0
  %v1167 = vmax.f32 %v1151, 0.0
  %v1168 = vmax.f32 %v1152, 0.0
  %v1169 = vmax.f32 %v1153, 0.0
  %v1170 = vmul.f32 %v343, %v1114
  %v1171 = vmul.f32 %v346, %v1114
  %v1172 = vmul.f32 %v351, %v1114
  %v1173 = vmul.f32 %v354, %v1114
  %v1174 = vmul.f32 %v359, %v1114
  %v1175 = vmul.f32 %v362, %v1114
  %v1176 = vmul.f32 %v367, %v1114
  %v1177 = vmul.f32 %v370, %v1114
  %v1178 = vmul.f32 %v375, %v1114
  %v1179 = vmul.f32 %v378, %v1114
  %v1180 = vmul.f32 %v383, %v1114
  %v1181 = vmul.f32 %v386, %v1114
  %v1182 = vmul.f32 %v391, %v1114
  %v1183 = vmul.f32 %v394, %v1114
  %v1184 = vmul.f32 %v399, %v1114
  %v1185 = vmul.f32 %v402, %v1114
  %v1186 = vadd.f32 %v1170, %v1136
  %v1187 = vadd.f32 %v1171, %v1136
  %v1188 = vadd.f32 %v1172, %v1136
  %v1189 = vadd.f32 %v1173, %v1136
  %v1190 = vadd.f32 %v1174, %v1136
  %v1191 = vadd.f32 %v1175, %v1136
  %v1192 = vadd.f32 %v1176, %v1136
  %v1193 = vadd.f32 %v1177, %v1136
  %v1194 = vadd.f32 %v1178, %v1136
  %v1195 = vadd.f32 %v1179, %v1136
  %v1196 = vadd.f32 %v1180, %v1136
  %v1197 = vadd.f32 %v1181, %v1136
  %v1198 = vadd.f32 %v1182, %v1136
  %v1199 = vadd.f32 %v1183, %v1136
  %v1200 = vadd.f32 %v1184, %v1136
  %v1201 = vadd.f32 %v1185, %v1136
  %v1202 = vmax.f32 %v1186, 0.0
  %v1203 = vmax.f32 %v1187, 0.0
  %v1204 = vmax.f32 %v1188, 0.0
  %v1205 = vmax.f32 %v1189, 0.0
  %v1206 = vmax.f32 %v1190, 0.0
  %v1207 = vmax.f32 %v1191, 0.0
  %v1208 = vmax.f32 %v1192, 0.0
  %v1209 = vmax.f32 %v1193, 0.0
  %v1210 = vmax.f32 %v1194, 0.0
  %v1211 = vmax.f32 %v1195, 0.0
  %v1212 = vmax.f32 %v1196, 0.0
  %v1213 = vmax.f32 %v1197, 0.0
  %v1214 = vmax.f32 %v1198, 0.0
  %v1215 = vmax.f32 %v1199, 0.0
  %v1216 = vmax.f32 %v1200, 0.0
  %v1217 = vmax.f32 %v1201, 0.0
  %v1218 = vmul.f32 %v505, %v1114
  %v1219 = vmul.f32 %v508, %v1114
  %v1220 = vmul.f32 %v513, %v1114
  %v1221 = vmul.f32 %v516, %v1114
  %v1222 = vmul.f32 %v521, %v1114
  %v1223 = vmul.f32 %v524, %v1114
  %v1224 = vmul.f32 %v529, %v1114
  %v1225 = vmul.f32 %v532, %v1114
  %v1226 = vmul.f32 %v537, %v1114
  %v1227 = vmul.f32 %v540, %v1114
  %v1228 = vmul.f32 %v545, %v1114
  %v1229 = vmul.f32 %v548, %v1114
  %v1230 = vmul.f32 %v553, %v1114
  %v1231 = vmul.f32 %v556, %v1114
  %v1232 = vmul.f32 %v561, %v1114
  %v1233 = vmul.f32 %v564, %v1114
  %v1234 = vadd.f32 %v1218, %v1136
  %v1235 = vadd.f32 %v1219, %v1136
  %v1236 = vadd.f32 %v1220, %v1136
  %v1237 = vadd.f32 %v1221, %v1136
  %v1238 = vadd.f32 %v1222, %v1136
  %v1239 = vadd.f32 %v1223, %v1136
  %v1240 = vadd.f32 %v1224, %v1136
  %v1241 = vadd.f32 %v1225, %v1136
  %v1242 = vadd.f32 %v1226, %v1136
  %v1243 = vadd.f32 %v1227, %v1136
  %v1244 = vadd.f32 %v1228, %v1136
  %v1245 = vadd.f32 %v1229, %v1136
  %v1246 = vadd.f32 %v1230, %v1136
  %v1247 = vadd.f32 %v1231, %v1136
  %v1248 = vadd.f32 %v1232, %v1136
  %v1249 = vadd.f32 %v1233, %v1136
  %v1250 = vmax.f32 %v1234, 0.0
  %v1251 = vmax.f32 %v1235, 0.0
  %v1252 = vmax.f32 %v1236, 0.0
  %v1253 = vmax.f32 %v1237, 0.0
  %v1254 = vmax.f32 %v1238, 0.0
  %v1255 = vmax.f32 %v1239, 0.0
  %v1256 = vmax.f32 %v1240, 0.0
  %v1257 = vmax.f32 %v1241, 0.0
  %v1258 = vmax.f32 %v1242, 0.0
  %v1259 = vmax.f32 %v1243, 0.0
  %v1260 = vmax.f32 %v1244, 0.0
  %v1261 = vmax.f32 %v1245, 0.0
  %v1262 = vmax.f32 %v1246, 0.0
  %v1263 = vmax.f32 %v1247, 0.0
  %v1264 = vmax.f32 %v1248, 0.0
  %v1265 = vmax.f32 %v1249, 0.0
  %v1266 = vmul.f32 %v667, %v1114
  %v1267 = vmul.f32 %v670, %v1114
  %v1268 = vmul.f32 %v675, %v1114
  %v1269 = vmul.f32 %v678, %v1114
  %v1270 = vmul.f32 %v683, %v1114
  %v1271 = vmul.f32 %v686, %v1114
  %v1272 = vmul.f32 %v691, %v1114
  %v1273 = vmul.f32 %v694, %v1114
  %v1274 = vmul.f32 %v699, %v1114
  %v1275 = vmul.f32 %v702, %v1114
  %v1276 = vmul.f32 %v707, %v1114
  %v1277 = vmul.f32 %v710, %v1114
  %v1278 = vmul.f32 %v715, %v1114
  %v1279 = vmul.f32 %v718, %v1114
  %v1280 = vmul.f32 %v723, %v1114
  %v1281 = vmul.f32 %v726, %v1114
  %v1282 = vadd.f32 %v1266, %v1136
  %v1283 = vadd.f32 %v1267, %v1136
  %v1284 = vadd.f32 %v1268, %v1136
  %v1285 = vadd.f32 %v1269, %v1136
  %v1286 = vadd.f32 %v1270, %v1136
  %v1287 = vadd.f32 %v1271, %v1136
  %v1288 = vadd.f32 %v1272, %v1136
  %v1289 = vadd.f32 %v1273, %v1136
  %v1290 = vadd.f32 %v1274, %v1136
  %v1291 = vadd.f32 %v1275, %v1136
  %v1292 = vadd.f32 %v1276, %v1136
  %v1293 = vadd.f32 %v1277, %v1136
  %v1294 = vadd.f32 %v1278, %v1136
  %v1295 = vadd.f32 %v1279, %v1136
  %v1296 = vadd.f32 %v1280, %v1136
  %v1297 = vadd.f32 %v1281, %v1136
  %v1298 = vmax.f32 %v1282, 0.0
  %v1299 = vmax.f32 %v1283, 0.0
  %v1300 = vmax.f32 %v1284, 0.0
  %v1301 = vmax.f32 %v1285, 0.0
  %v1302 = vmax.f32 %v1286, 0.0
  %v1303 = vmax.f32 %v1287, 0.0
  %v1304 = vmax.f32 %v1288, 0.0
  %v1305 = vmax.f32 %v1289, 0.0
  %v1306 = vmax.f32 %v1290, 0.0
  %v1307 = vmax.f32 %v1291, 0.0
  %v1308 = vmax.f32 %v1292, 0.0
  %v1309 = vmax.f32 %v1293, 0.0
  %v1310 = vmax.f32 %v1294, 0.0
  %v1311 = vmax.f32 %v1295, 0.0
  %v1312 = vmax.f32 %v1296, 0.0
  %v1313 = vmax.f32 %v1297, 0.0
  %v1314 = vmax.f32 %v1154, %v1202
  %v1315 = vmax.f32 %v1155, %v1203
  %v1316 = vmax.f32 %v1156, %v1204
  %v1317 = vmax.f32 %v1157, %v1205
  %v1318 = vmax.f32 %v1158, %v1206
  %v1319 = vmax.f32 %v1159, %v1207
  %v1320 = vmax.f32 %v1160, %v1208
  %v1321 = vmax.f32 %v1161, %v1209
  %v1322 = vmax.f32 %v1162, %v1210
  %v1323 = vmax.f32 %v1163, %v1211
  %v1324 = vmax.f32 %v1164, %v1212
  %v1325 = vmax.f32 %v1165, %v1213
  %v1326 = vmax.f32 %v1166, %v1214
  %v1327 = vmax.f32 %v1167, %v1215
  %v1328 = vmax.f32 %v1168, %v1216
  %v1329 = vmax.f32 %v1169, %v1217
  %v1330 = vmax.f32 %v1250, %v1298
  %v1331 = vmax.f32 %v1251, %v1299
  %v1332 = vmax.f32 %v1252, %v1300
  %v1333 = vmax.f32 %v1253, %v1301
  %v1334 = vmax.f32 %v1254, %v1302
  %v1335 = vmax.f32 %v1255, %v1303
  %v1336 = vmax.f32 %v1256, %v1304
  %v1337 = vmax.f32 %v1257, %v1305
  %v1338 = vmax.f32 %v1258, %v1306
  %v1339 = vmax.f32 %v1259, %v1307
  %v1340 = vmax.f32 %v1260, %v1308
  %v1341 = vmax.f32 %v1261, %v1309
  %v1342 = vmax.f32 %v1262, %v1310
  %v1343 = vmax.f32 %v1263, %v1311
  %v1344 = vmax.f32 %v1264, %v1312
  %v1345 = vmax.f32 %v1265, %v1313
  %v1346 = vmax.f32 %v1314, %v1330
  %v1347 = vmax.f32 %v1315, %v1331
  %v1348 = vmax.f32 %v1316, %v1332
  %v1349 = vmax.f32 %v1317, %v1333
  %v1350 = vmax.f32 %v1318, %v1334
  %v1351 = vmax.f32 %v1319, %v1335
  %v1352 = vmax.f32 %v1320, %v1336
  %v1353 = vmax.f32 %v1321, %v1337
  %v1354 = vmax.f32 %v1322, %v1338
  %v1355 = vmax.f32 %v1323, %v1339
  %v1356 = vmax.f32 %v1324, %v1340
  %v1357 = vmax.f32 %v1325, %v1341
  %v1358 = vmax.f32 %v1326, %v1342
  %v1359 = vmax.f32 %v1327, %v1343
  %v1360 = vmax.f32 %v1328, %v1344
  %v1361 = vmax.f32 %v1329, %v1345
  %1362 = vst.msk [vmem:[%s4] sm:$0xff] %vm729, %v1346
  %1363 = vst.msk [vmem:[%s4 + $0x8] sm:$0xff] %vm729, %v1347
  %1364 = vst.msk [vmem:[%s4 + $0x10] sm:$0xff] %vm729, %v1348
  %1365 = vst.msk [vmem:[%s4 + $0x18] sm:$0xff] %vm729, %v1349
  %1366 = vst.msk [vmem:[%s4 + $0x20] sm:$0xff] %vm729, %v1350
  %1367 = vst.msk [vmem:[%s4 + $0x28] sm:$0xff] %vm729, %v1351
  %1368 = vst.msk [vmem:[%s4 + $0x30] sm:$0xff] %vm729, %v1352
  %1369 = vst.msk [vmem:[%s4 + $0x38] sm:$0xff] %vm729, %v1353
  %1370 = vst.msk [vmem:[%s4 + $0x40] sm:$0xff] %vm729, %v1354
  %1371 = vst.msk [vmem:[%s4 + $0x48] sm:$0xff] %vm729, %v1355
  %1372 = vst.msk [vmem:[%s4 + $0x50] sm:$0xff] %vm729, %v1356
  %1373 = vst.msk [vmem:[%s4 + $0x58] sm:$0xff] %vm729, %v1357
  %1374 = vst.msk [vmem:[%s4 + $0x60] sm:$0xff] %vm729, %v1358
  %1375 = vst.msk [vmem:[%s4 + $0x68] sm:$0xff] %vm729, %v1359
  %1376 = vst.msk [vmem:[%s4 + $0x70] sm:$0xff] %vm729, %v1360
  %1377 = vst.msk [vmem:[%s4 + $0x78] sm:$0xff] %vm729, %v1361
  // Predicated region
  $region18: #{cl_forward.4} parent=0 // pred_check
    _
  $region19: #{cl_forward.4} parent=0 // pred_check_branch
    %1379 = sbr.rel (0) target = $region21
  $region20: #{cl_forward.4} parent=0 // pred_region
    _
  $region21: #{cl_forward.4} parent=0 // pred_fallthru
    _
  // Predicated region
  $region22: #{cl_forward.4} parent=0 // pred_check
    _
  $region23: #{cl_forward.4} parent=0 // pred_check_branch
    %1381 = sbr.rel (0) target = $region25
  $region24: #{cl_forward.4} parent=0 // pred_region
    _
  $region25: #{cl_forward.4} parent=0 // pred_fallthru
    _

// kernel: cl_forward.5
$region0: #{cl_forward.5}
  #allocation0 [shape = 'u32[]', space=smem, size = 0x4, offset = 0x4, fixed_abs, tag = 'smem constant byte address 0x4 - core index']
  #allocation1 [shape = 'u32[144,128]{1,0:T(1,128)}', space=vmem, size = 0x12000, scoped, tag = 'internal scratch']
  %s0 = inlined_call_operand.vmem [shape: bf16[4,32,384], index: 0, kind: input, shape index: {}]
  %s1 = inlined_call_operand.vmem [shape: bf16[384,64], index: 1, kind: input, shape index: {}]
  %s2 = inlined_call_operand.vmem [shape: f32[1,64], index: 2, kind: input, shape index: {}]
  %s3 = inlined_call_operand.vmem [shape: f32[1,64], index: 3, kind: input, shape index: {}]
  %s4 = inlined_call_operand.vmem [shape: f32[32,64], index: 4, kind: output, shape index: {}]
  %s5 = sld [smem:[#allocation0]]
  $region26: #{cl_forward.5} parent=0
    _
  %s7 = ssub.s32 1, %s5
  %s8 = scalar_select 0, %s7, %s5
  // Predicated region
  $region2: #{cl_forward.5} parent=0 // pred_check
    _
  $region3: #{cl_forward.5} parent=0 // pred_check_branch
    %10 = sbr.rel (0) target = $region5
  $region4: #{cl_forward.5} parent=0 // pred_region
    _
  $region5: #{cl_forward.5} parent=0 // pred_fallthru
    _
  // Predicated region
  $region6: #{cl_forward.5} parent=0 // pred_check
    _
  $region7: #{cl_forward.5} parent=0 // pred_check_branch
    %12 = sbr.rel (0) target = $region9
  $region8: #{cl_forward.5} parent=0 // pred_region
    _
  $region9: #{cl_forward.5} parent=0 // pred_fallthru
    _
  // Predicated region
  $region10: #{cl_forward.5} parent=0 // pred_check
    _
  $region11: #{cl_forward.5} parent=0 // pred_check_branch
    %14 = sbr.rel (0) target = $region13
  $region12: #{cl_forward.5} parent=0 // pred_region
    _
  $region13: #{cl_forward.5} parent=0 // pred_fallthru
    _
  // Predicated region
  $region14: #{cl_forward.5} parent=0 // pred_check
    _
  $region15: #{cl_forward.5} parent=0 // pred_check_branch
    %16 = sbr.rel (0) target = $region17
  $region16: #{cl_forward.5} parent=0 // pred_region
    _
  $region17: #{cl_forward.5} parent=0 // pred_fallthru
    _
  %v18 = vld [vmem:[%s1] sm:$0xf]
  %v19 = vld [vmem:[%s1 + $0x4] sm:$0xf]
  %v20 = vld [vmem:[%s1 + $0x8] sm:$0xf]
  %v21 = vld [vmem:[%s1 + $0xc] sm:$0xf]
  %v22 = vld [vmem:[%s1 + $0x10] sm:$0xf]
  %v23 = vld [vmem:[%s1 + $0x14] sm:$0xf]
  %v24 = vld [vmem:[%s1 + $0x18] sm:$0xf]
  %v25 = vld [vmem:[%s1 + $0x1c] sm:$0xf]
  %v26 = vld [vmem:[%s1 + $0x20] sm:$0xf]
  %v27 = vld [vmem:[%s1 + $0x24] sm:$0xf]
  %v28 = vld [vmem:[%s1 + $0x28] sm:$0xf]
  %v29 = vld [vmem:[%s1 + $0x2c] sm:$0xf]
  %v30 = vld [vmem:[%s1 + $0x30] sm:$0xf]
  %v31 = vld [vmem:[%s1 + $0x34] sm:$0xf]
  %v32 = vld [vmem:[%s1 + $0x38] sm:$0xf]
  %v33 = vld [vmem:[%s1 + $0x3c] sm:$0xf]
  %v34 = vld [vmem:[%s1 + $0x40] sm:$0xf]
  %v35 = vld [vmem:[%s1 + $0x44] sm:$0xf]
  %v36 = vld [vmem:[%s1 + $0x48] sm:$0xf]
  %v37 = vld [vmem:[%s1 + $0x4c] sm:$0xf]
  %v38 = vld [vmem:[%s1 + $0x50] sm:$0xf]
  %v39 = vld [vmem:[%s1 + $0x54] sm:$0xf]
  %v40 = vld [vmem:[%s1 + $0x58] sm:$0xf]
  %v41 = vld [vmem:[%s1 + $0x5c] sm:$0xf]
  %v42 = vld [vmem:[%s1 + $0x60] sm:$0xf]
  %v43 = vld [vmem:[%s1 + $0x64] sm:$0xf]
  %v44 = vld [vmem:[%s1 + $0x68] sm:$0xf]
  %v45 = vld [vmem:[%s1 + $0x6c] sm:$0xf]
  %v46 = vld [vmem:[%s1 + $0x70] sm:$0xf]
  %v47 = vld [vmem:[%s1 + $0x74] sm:$0xf]
  %v48 = vld [vmem:[%s1 + $0x78] sm:$0xf]
  %v49 = vld [vmem:[%s1 + $0x7c] sm:$0xf]
  %v50 = vld [vmem:[%s1 + $0x80] sm:$0xf]
  %v51 = vld [vmem:[%s1 + $0x84] sm:$0xf]
  %v52 = vld [vmem:[%s1 + $0x88] sm:$0xf]
  %v53 = vld [vmem:[%s1 + $0x8c] sm:$0xf]
  %v54 = vld [vmem:[%s1 + $0x90] sm:$0xf]
  %v55 = vld [vmem:[%s1 + $0x94] sm:$0xf]
  %v56 = vld [vmem:[%s1 + $0x98] sm:$0xf]
  %v57 = vld [vmem:[%s1 + $0x9c] sm:$0xf]
  %v58 = vld [vmem:[%s1 + $0xa0] sm:$0xf]
  %v59 = vld [vmem:[%s1 + $0xa4] sm:$0xf]
  %v60 = vld [vmem:[%s1 + $0xa8] sm:$0xf]
  %v61 = vld [vmem:[%s1 + $0xac] sm:$0xf]
  %v62 = vld [vmem:[%s1 + $0xb0] sm:$0xf]
  %v63 = vld [vmem:[%s1 + $0xb4] sm:$0xf]
  %v64 = vld [vmem:[%s1 + $0xb8] sm:$0xf]
  %v65 = vld [vmem:[%s1 + $0xbc] sm:$0xf]
  %v66 = vld [vmem:[%s0] sm:$0xff]
  %v67 = vld [vmem:[%s0 + $0x8] sm:$0xf]
  %v68 = vld [vmem:[%s0 + $0xc] sm:$0xff]
  %v69 = vld [vmem:[%s0 + $0x14] sm:$0xf]
  %v70 = vld [vmem:[%s0 + $0x18] sm:$0xff]
  %v71 = vld [vmem:[%s0 + $0x20] sm:$0xf]
  %v72 = vld [vmem:[%s0 + $0x24] sm:$0xff]
  %v73 = vld [vmem:[%s0 + $0x2c] sm:$0xf]
  %v82 = vunpack.c.l.b16 %v66
  %v83 = vunpack.c.h.b16 %v66
  %v84 = vunpack.c.l.b16 %v67
  %v85 = vunpack.c.l.b16 %v68
  %v86 = vunpack.c.h.b16 %v68
  %v87 = vunpack.c.l.b16 %v69
  %v88 = vunpack.c.l.b16 %v70
  %v89 = vunpack.c.h.b16 %v70
  %v90 = vunpack.c.l.b16 %v71
  %v91 = vunpack.c.l.b16 %v72
  %v92 = vunpack.c.h.b16 %v72
  %v93 = vunpack.c.l.b16 %v73
  %v94 = vpack.c.b16 %v85, %v82
  %v95 = vpack.c.b16 %v86, %v83
  %v96 = vpack.c.b16 %v87, %v84
  %v97 = vpack.c.b16 %v91, %v88
  %v98 = vpack.c.b16 %v92, %v89
  %v99 = vpack.c.b16 %v93, %v90
  %v154 = vunpack.c.l.b16 %v18
  %v155 = vunpack.c.l.b16 %v19
  %v156 = vunpack.c.l.b16 %v20
  %v157 = vunpack.c.l.b16 %v21
  %v158 = vunpack.c.l.b16 %v22
  %v159 = vunpack.c.l.b16 %v23
  %v160 = vunpack.c.l.b16 %v24
  %v161 = vunpack.c.l.b16 %v25
  %v162 = vunpack.c.l.b16 %v26
  %v163 = vunpack.c.l.b16 %v27
  %v164 = vunpack.c.l.b16 %v28
  %v165 = vunpack.c.l.b16 %v29
  %v166 = vunpack.c.l.b16 %v30
  %v167 = vunpack.c.l.b16 %v31
  %v168 = vunpack.c.l.b16 %v32
  %v169 = vunpack.c.l.b16 %v33
  %v170 = vunpack.c.l.b16 %v34
  %v171 = vunpack.c.l.b16 %v35
  %v172 = vunpack.c.l.b16 %v36
  %v173 = vunpack.c.l.b16 %v37
  %v174 = vunpack.c.l.b16 %v38
  %v175 = vunpack.c.l.b16 %v39
  %v176 = vunpack.c.l.b16 %v40
  %v177 = vunpack.c.l.b16 %v41
  %v178 = vunpack.c.l.b16 %v42
  %v179 = vunpack.c.l.b16 %v43
  %v180 = vunpack.c.l.b16 %v44
  %v181 = vunpack.c.l.b16 %v45
  %v182 = vunpack.c.l.b16 %v46
  %v183 = vunpack.c.l.b16 %v47
  %v184 = vunpack.c.l.b16 %v48
  %v185 = vunpack.c.l.b16 %v49
  %v186 = vunpack.c.l.b16 %v50
  %v187 = vunpack.c.l.b16 %v51
  %v188 = vunpack.c.l.b16 %v52
  %v189 = vunpack.c.l.b16 %v53
  %v190 = vunpack.c.l.b16 %v54
  %v191 = vunpack.c.l.b16 %v55
  %v192 = vunpack.c.l.b16 %v56
  %v193 = vunpack.c.l.b16 %v57
  %v194 = vunpack.c.l.b16 %v58
  %v195 = vunpack.c.l.b16 %v59
  %v196 = vunpack.c.l.b16 %v60
  %v197 = vunpack.c.l.b16 %v61
  %v198 = vunpack.c.l.b16 %v62
  %v199 = vunpack.c.l.b16 %v63
  %v200 = vunpack.c.l.b16 %v64
  %v201 = vunpack.c.l.b16 %v65
  %v202 = vpack.c.b16 %v155, %v154
  %v203 = vpack.c.b16 %v157, %v156
  %v204 = vpack.c.b16 %v159, %v158
  %v205 = vpack.c.b16 %v161, %v160
  %v206 = vpack.c.b16 %v163, %v162
  %v207 = vpack.c.b16 %v165, %v164
  %v208 = vpack.c.b16 %v167, %v166
  %v209 = vpack.c.b16 %v169, %v168
  %v210 = vpack.c.b16 %v171, %v170
  %v211 = vpack.c.b16 %v173, %v172
  %v212 = vpack.c.b16 %v175, %v174
  %v213 = vpack.c.b16 %v177, %v176
  %v214 = vpack.c.b16 %v179, %v178
  %v215 = vpack.c.b16 %v181, %v180
  %v216 = vpack.c.b16 %v183, %v182
  %v217 = vpack.c.b16 %v185, %v184
  %v218 = vpack.c.b16 %v187, %v186
  %v219 = vpack.c.b16 %v189, %v188
  %v220 = vpack.c.b16 %v191, %v190
  %v221 = vpack.c.b16 %v193, %v192
  %v222 = vpack.c.b16 %v195, %v194
  %v223 = vpack.c.b16 %v197, %v196
  %v224 = vpack.c.b16 %v199, %v198
  %v225 = vpack.c.b16 %v201, %v200
  %250 = vmatprep.subr.bf16.mxu0 0
  %251 = vmatpush1.bf16.msra.mxu0 %v202
  %252 = vmatprep.subr.bf16.mxu0 0
  %253 = vmatpush1.bf16.msra.mxu0 %v203
  %254 = vmatprep.subr.bf16.mxu0 0
  %255 = vmatpush1.bf16.msra.mxu0 %v204
  %256 = vmatprep.subr.bf16.mxu0 0
  %257 = vmatpush1.bf16.msra.mxu0 %v205
  %258 = vmatprep.subr.bf16.mxu0 0
  %259 = vmatpush1.bf16.msra.mxu0 %v206
  %260 = vmatprep.subr.bf16.mxu0 0
  %261 = vmatpush1.bf16.msra.mxu0 %v207
  %262 = vmatprep.subr.bf16.mxu0 0
  %263 = vmatpush1.bf16.msra.mxu0 %v208
  %264 = vmatprep.subr.bf16.mxu0 0
  %265 = vmatpush1.bf16.msra.mxu0 %v209
  %266 = vmatprep.subr.bf16.mxu0 0
  %267 = vmatpush1.bf16.msra.mxu0 %v210
  %268 = vmatprep.subr.bf16.mxu0 0
  %269 = vmatpush1.bf16.msra.mxu0 %v211
  %270 = vmatprep.subr.bf16.mxu0 0
  %271 = vmatpush1.bf16.msra.mxu0 %v212
  %272 = vmatprep.subr.bf16.mxu0 0
  %273 = vmatpush1.bf16.msra.mxu0 %v213
  %274 = vmatprep.subr.bf16.mxu0 0
  %275 = vmatpush1.bf16.msra.mxu0 %v214
  %276 = vmatprep.subr.bf16.mxu0 0
  %277 = vmatpush1.bf16.msra.mxu0 %v215
  %278 = vmatprep.subr.bf16.mxu0 0
  %279 = vmatpush1.bf16.msra.mxu0 %v216
  %280 = vmatprep.subr.bf16.mxu0 0
  %281 = vmatpush1.bf16.msra.mxu0 %v217
  %282 = vmatprep.mubr.bf16.mxu0 %v95
  %283 = vmatmul.mubr.bf16.gmra.mrb[0].mxu0 %v94
  %v284 = vpop.f32.mrb[0].mxu0
  %v285 = vadd.f32 0.0, %v284
  %v286 = vpop.f32.mrb[0].mxu0
  %v287 = vpop.f32.mrb[0].mxu0
  %v288 = vadd.f32 0.0, %v287
  %v289 = vpop.f32.mrb[0].mxu0
  %290 = vmatprep.mubr.bf16.mxu0 %v98
  %291 = vmatmul.mubr.bf16.gmra.mrb[0].mxu0 %v97
  %v292 = vpop.f32.mrb[0].mxu0
  %v293 = vadd.f32 0.0, %v292
  %v294 = vpop.f32.mrb[0].mxu0
  %v295 = vpop.f32.mrb[0].mxu0
  %v296 = vadd.f32 0.0, %v295
  %v297 = vpop.f32.mrb[0].mxu0
  %298 = vdwg.mxu0
  %299 = vmatprep.subr.bf16.mxu0 0
  %300 = vmatpush1.bf16.msra.mxu0 %v218
  %301 = vmatprep.subr.bf16.mxu0 0
  %302 = vmatpush1.bf16.msra.mxu0 %v219
  %303 = vmatprep.subr.bf16.mxu0 0
  %304 = vmatpush1.bf16.msra.mxu0 %v220
  %305 = vmatprep.subr.bf16.mxu0 0
  %306 = vmatpush1.bf16.msra.mxu0 %v221
  %307 = vmatprep.subr.bf16.mxu0 0
  %308 = vmatpush1.bf16.msra.mxu0 %v222
  %309 = vmatprep.subr.bf16.mxu0 0
  %310 = vmatpush1.bf16.msra.mxu0 %v223
  %311 = vmatprep.subr.bf16.mxu0 0
  %312 = vmatpush1.bf16.msra.mxu0 %v224
  %313 = vmatprep.subr.bf16.mxu0 0
  %314 = vmatpush1.bf16.msra.mxu0 %v225
  %315 = vmatprep.subr.bf16.mxu0 0
  %316 = vmatpush1.bf16.msra.mxu0 0
  %317 = vmatprep.subr.bf16.mxu0 0
  %318 = vmatpush1.bf16.msra.mxu0 0
  %319 = vmatprep.subr.bf16.mxu0 0
  %320 = vmatpush1.bf16.msra.mxu0 0
  %321 = vmatprep.subr.bf16.mxu0 0
  %322 = vmatpush1.bf16.msra.mxu0 0
  %323 = vmatprep.subr.bf16.mxu0 0
  %324 = vmatpush1.bf16.msra.mxu0 0
  %325 = vmatprep.subr.bf16.mxu0 0
  %326 = vmatpush1.bf16.msra.mxu0 0
  %327 = vmatprep.subr.bf16.mxu0 0
  %328 = vmatpush1.bf16.msra.mxu0 0
  %329 = vmatprep.subr.bf16.mxu0 0
  %330 = vmatpush1.bf16.msra.mxu0 0
  %331 = vmatprep.mubr.bf16.mxu0 0
  %332 = vmatmul.mubr.bf16.gmra.mrb[0].mxu0 %v96
  %v333 = vpop.f32.mrb[0].mxu0
  %v334 = vadd.f32 %v285, %v333
  %v335 = vpop.f32.mrb[0].mxu0
  %v336 = vpop.f32.mrb[0].mxu0
  %v337 = vadd.f32 %v288, %v336
  %v338 = vpop.f32.mrb[0].mxu0
  %339 = vmatprep.mubr.bf16.mxu0 0
  %340 = vmatmul.mubr.bf16.gmra.mrb[0].mxu0 %v99
  %v341 = vpop.f32.mrb[0].mxu0
  %v342 = vadd.f32 %v293, %v341
  %v343 = vpop.f32.mrb[0].mxu0
  %v344 = vpop.f32.mrb[0].mxu0
  %v345 = vadd.f32 %v296, %v344
  %v346 = vpop.f32.mrb[0].mxu0
  %347 = vdwg.mxu0
  %s348 = scalar_lea.vmem %s0, 48
  %v349 = vld [vmem:[%s348] sm:$0xff]
  %v350 = vld [vmem:[%s348 + $0x8] sm:$0xf]
  %v351 = vld [vmem:[%s348 + $0xc] sm:$0xff]
  %v352 = vld [vmem:[%s348 + $0x14] sm:$0xf]
  %v353 = vld [vmem:[%s348 + $0x18] sm:$0xff]
  %v354 = vld [vmem:[%s348 + $0x20] sm:$0xf]
  %v355 = vld [vmem:[%s348 + $0x24] sm:$0xff]
  %v356 = vld [vmem:[%s348 + $0x2c] sm:$0xf]
  %v365 = vunpack.c.l.b16 %v349
  %v366 = vunpack.c.h.b16 %v349
  %v367 = vunpack.c.l.b16 %v350
  %v368 = vunpack.c.l.b16 %v351
  %v369 = vunpack.c.h.b16 %v351
  %v370 = vunpack.c.l.b16 %v352
  %v371 = vunpack.c.l.b16 %v353
  %v372 = vunpack.c.h.b16 %v353
  %v373 = vunpack.c.l.b16 %v354
  %v374 = vunpack.c.l.b16 %v355
  %v375 = vunpack.c.h.b16 %v355
  %v376 = vunpack.c.l.b16 %v356
  %v377 = vpack.c.b16 %v368, %v365
  %v378 = vpack.c.b16 %v369, %v366
  %v379 = vpack.c.b16 %v370, %v367
  %v380 = vpack.c.b16 %v374, %v371
  %v381 = vpack.c.b16 %v375, %v372
  %v382 = vpack.c.b16 %v376, %v373
  %389 = vmatprep.subr.bf16.mxu0 0
  %390 = vmatpush1.bf16.msra.mxu0 %v202
  %391 = vmatprep.subr.bf16.mxu0 0
  %392 = vmatpush1.bf16.msra.mxu0 %v203
  %393 = vmatprep.subr.bf16.mxu0 0
  %394 = vmatpush1.bf16.msra.mxu0 %v204
  %395 = vmatprep.subr.bf16.mxu0 0
  %396 = vmatpush1.bf16.msra.mxu0 %v205
  %397 = vmatprep.subr.bf16.mxu0 0
  %398 = vmatpush1.bf16.msra.mxu0 %v206
  %399 = vmatprep.subr.bf16.mxu0 0
  %400 = vmatpush1.bf16.msra.mxu0 %v207
  %401 = vmatprep.subr.bf16.mxu0 0
  %402 = vmatpush1.bf16.msra.mxu0 %v208
  %403 = vmatprep.subr.bf16.mxu0 0
  %404 = vmatpush1.bf16.msra.mxu0 %v209
  %405 = vmatprep.subr.bf16.mxu0 0
  %406 = vmatpush1.bf16.msra.mxu0 %v210
  %407 = vmatprep.subr.bf16.mxu0 0
  %408 = vmatpush1.bf16.msra.mxu0 %v211
  %409 = vmatprep.subr.bf16.mxu0 0
  %410 = vmatpush1.bf16.msra.mxu0 %v212
  %411 = vmatprep.subr.bf16.mxu0 0
  %412 = vmatpush1.bf16.msra.mxu0 %v213
  %413 = vmatprep.subr.bf16.mxu0 0
  %414 = vmatpush1.bf16.msra.mxu0 %v214
  %415 = vmatprep.subr.bf16.mxu0 0
  %416 = vmatpush1.bf16.msra.mxu0 %v215
  %417 = vmatprep.subr.bf16.mxu0 0
  %418 = vmatpush1.bf16.msra.mxu0 %v216
  %419 = vmatprep.subr.bf16.mxu0 0
  %420 = vmatpush1.bf16.msra.mxu0 %v217
  %421 = vmatprep.mubr.bf16.mxu0 %v378
  %422 = vmatmul.mubr.bf16.gmra.mrb[0].mxu0 %v377
  %v423 = vpop.f32.mrb[0].mxu0
  %v424 = vadd.f32 0.0, %v423
  %v425 = vpop.f32.mrb[0].mxu0
  %v426 = vpop.f32.mrb[0].mxu0
  %v427 = vadd.f32 0.0, %v426
  %v428 = vpop.f32.mrb[0].mxu0
  %429 = vmatprep.mubr.bf16.mxu0 %v381
  %430 = vmatmul.mubr.bf16.gmra.mrb[0].mxu0 %v380
  %v431 = vpop.f32.mrb[0].mxu0
  %v432 = vadd.f32 0.0, %v431
  %v433 = vpop.f32.mrb[0].mxu0
  %v434 = vpop.f32.mrb[0].mxu0
  %v435 = vadd.f32 0.0, %v434
  %v436 = vpop.f32.mrb[0].mxu0
  %437 = vdwg.mxu0
  %438 = vmatprep.subr.bf16.mxu0 0
  %439 = vmatpush1.bf16.msra.mxu0 %v218
  %440 = vmatprep.subr.bf16.mxu0 0
  %441 = vmatpush1.bf16.msra.mxu0 %v219
  %442 = vmatprep.subr.bf16.mxu0 0
  %443 = vmatpush1.bf16.msra.mxu0 %v220
  %444 = vmatprep.subr.bf16.mxu0 0
  %445 = vmatpush1.bf16.msra.mxu0 %v221
  %446 = vmatprep.subr.bf16.mxu0 0
  %447 = vmatpush1.bf16.msra.mxu0 %v222
  %448 = vmatprep.subr.bf16.mxu0 0
  %449 = vmatpush1.bf16.msra.mxu0 %v223
  %450 = vmatprep.subr.bf16.mxu0 0
  %451 = vmatpush1.bf16.msra.mxu0 %v224
  %452 = vmatprep.subr.bf16.mxu0 0
  %453 = vmatpush1.bf16.msra.mxu0 %v225
  %454 = vmatprep.subr.bf16.mxu0 0
  %455 = vmatpush1.bf16.msra.mxu0 0
  %456 = vmatprep.subr.bf16.mxu0 0
  %457 = vmatpush1.bf16.msra.mxu0 0
  %458 = vmatprep.subr.bf16.mxu0 0
  %459 = vmatpush1.bf16.msra.mxu0 0
  %460 = vmatprep.subr.bf16.mxu0 0
  %461 = vmatpush1.bf16.msra.mxu0 0
  %462 = vmatprep.subr.bf16.mxu0 0
  %463 = vmatpush1.bf16.msra.mxu0 0
  %464 = vmatprep.subr.bf16.mxu0 0
  %465 = vmatpush1.bf16.msra.mxu0 0
  %466 = vmatprep.subr.bf16.mxu0 0
  %467 = vmatpush1.bf16.msra.mxu0 0
  %468 = vmatprep.subr.bf16.mxu0 0
  %469 = vmatpush1.bf16.msra.mxu0 0
  %470 = vmatprep.mubr.bf16.mxu0 0
  %471 = vmatmul.mubr.bf16.gmra.mrb[0].mxu0 %v379
  %v472 = vpop.f32.mrb[0].mxu0
  %v473 = vadd.f32 %v424, %v472
  %v474 = vpop.f32.mrb[0].mxu0
  %v475 = vpop.f32.mrb[0].mxu0
  %v476 = vadd.f32 %v427, %v475
  %v477 = vpop.f32.mrb[0].mxu0
  %478 = vmatprep.mubr.bf16.mxu0 0
  %479 = vmatmul.mubr.bf16.gmra.mrb[0].mxu0 %v382
  %v480 = vpop.f32.mrb[0].mxu0
  %v481 = vadd.f32 %v432, %v480
  %v482 = vpop.f32.mrb[0].mxu0
  %v483 = vpop.f32.mrb[0].mxu0
  %v484 = vadd.f32 %v435, %v483
  %v485 = vpop.f32.mrb[0].mxu0
  %486 = vdwg.mxu0
  %s487 = scalar_lea.vmem %s0, 96
  %v488 = vld [vmem:[%s487] sm:$0xff]
  %v489 = vld [vmem:[%s487 + $0x8] sm:$0xf]
  %v490 = vld [vmem:[%s487 + $0xc] sm:$0xff]
  %v491 = vld [vmem:[%s487 + $0x14] sm:$0xf]
  %v492 = vld [vmem:[%s487 + $0x18] sm:$0xff]
  %v493 = vld [vmem:[%s487 + $0x20] sm:$0xf]
  %v494 = vld [vmem:[%s487 + $0x24] sm:$0xff]
  %v495 = vld [vmem:[%s487 + $0x2c] sm:$0xf]
  %v504 = vunpack.c.l.b16 %v488
  %v505 = vunpack.c.h.b16 %v488
  %v506 = vunpack.c.l.b16 %v489
  %v507 = vunpack.c.l.b16 %v490
  %v508 = vunpack.c.h.b16 %v490
  %v509 = vunpack.c.l.b16 %v491
  %v510 = vunpack.c.l.b16 %v492
  %v511 = vunpack.c.h.b16 %v492
  %v512 = vunpack.c.l.b16 %v493
  %v513 = vunpack.c.l.b16 %v494
  %v514 = vunpack.c.h.b16 %v494
  %v515 = vunpack.c.l.b16 %v495
  %v516 = vpack.c.b16 %v507, %v504
  %v517 = vpack.c.b16 %v508, %v505
  %v518 = vpack.c.b16 %v509, %v506
  %v519 = vpack.c.b16 %v513, %v510
  %v520 = vpack.c.b16 %v514, %v511
  %v521 = vpack.c.b16 %v515, %v512
  %528 = vmatprep.subr.bf16.mxu0 0
  %529 = vmatpush1.bf16.msra.mxu0 %v202
  %530 = vmatprep.subr.bf16.mxu0 0
  %531 = vmatpush1.bf16.msra.mxu0 %v203
  %532 = vmatprep.subr.bf16.mxu0 0
  %533 = vmatpush1.bf16.msra.mxu0 %v204
  %534 = vmatprep.subr.bf16.mxu0 0
  %535 = vmatpush1.bf16.msra.mxu0 %v205
  %536 = vmatprep.subr.bf16.mxu0 0
  %537 = vmatpush1.bf16.msra.mxu0 %v206
  %538 = vmatprep.subr.bf16.mxu0 0
  %539 = vmatpush1.bf16.msra.mxu0 %v207
  %540 = vmatprep.subr.bf16.mxu0 0
  %541 = vmatpush1.bf16.msra.mxu0 %v208
  %542 = vmatprep.subr.bf16.mxu0 0
  %543 = vmatpush1.bf16.msra.mxu0 %v209
  %544 = vmatprep.subr.bf16.mxu0 0
  %545 = vmatpush1.bf16.msra.mxu0 %v210
  %546 = vmatprep.subr.bf16.mxu0 0
  %547 = vmatpush1.bf16.msra.mxu0 %v211
  %548 = vmatprep.subr.bf16.mxu0 0
  %549 = vmatpush1.bf16.msra.mxu0 %v212
  %550 = vmatprep.subr.bf16.mxu0 0
  %551 = vmatpush1.bf16.msra.mxu0 %v213
  %552 = vmatprep.subr.bf16.mxu0 0
  %553 = vmatpush1.bf16.msra.mxu0 %v214
  %554 = vmatprep.subr.bf16.mxu0 0
  %555 = vmatpush1.bf16.msra.mxu0 %v215
  %556 = vmatprep.subr.bf16.mxu0 0
  %557 = vmatpush1.bf16.msra.mxu0 %v216
  %558 = vmatprep.subr.bf16.mxu0 0
  %559 = vmatpush1.bf16.msra.mxu0 %v217
  %560 = vmatprep.mubr.bf16.mxu0 %v517
  %561 = vmatmul.mubr.bf16.gmra.mrb[0].mxu0 %v516
  %v562 = vpop.f32.mrb[0].mxu0
  %v563 = vadd.f32 0.0, %v562
  %v564 = vpop.f32.mrb[0].mxu0
  %v565 = vpop.f32.mrb[0].mxu0
  %v566 = vadd.f32 0.0, %v565
  %v567 = vpop.f32.mrb[0].mxu0
  %568 = vmatprep.mubr.bf16.mxu0 %v520
  %569 = vmatmul.mubr.bf16.gmra.mrb[0].mxu0 %v519
  %v570 = vpop.f32.mrb[0].mxu0
  %v571 = vadd.f32 0.0, %v570
  %v572 = vpop.f32.mrb[0].mxu0
  %v573 = vpop.f32.mrb[0].mxu0
  %v574 = vadd.f32 0.0, %v573
  %v575 = vpop.f32.mrb[0].mxu0
  %576 = vdwg.mxu0
  %577 = vmatprep.subr.bf16.mxu0 0
  %578 = vmatpush1.bf16.msra.mxu0 %v218
  %579 = vmatprep.subr.bf16.mxu0 0
  %580 = vmatpush1.bf16.msra.mxu0 %v219
  %581 = vmatprep.subr.bf16.mxu0 0
  %582 = vmatpush1.bf16.msra.mxu0 %v220
  %583 = vmatprep.subr.bf16.mxu0 0
  %584 = vmatpush1.bf16.msra.mxu0 %v221
  %585 = vmatprep.subr.bf16.mxu0 0
  %586 = vmatpush1.bf16.msra.mxu0 %v222
  %587 = vmatprep.subr.bf16.mxu0 0
  %588 = vmatpush1.bf16.msra.mxu0 %v223
  %589 = vmatprep.subr.bf16.mxu0 0
  %590 = vmatpush1.bf16.msra.mxu0 %v224
  %591 = vmatprep.subr.bf16.mxu0 0
  %592 = vmatpush1.bf16.msra.mxu0 %v225
  %593 = vmatprep.subr.bf16.mxu0 0
  %594 = vmatpush1.bf16.msra.mxu0 0
  %595 = vmatprep.subr.bf16.mxu0 0
  %596 = vmatpush1.bf16.msra.mxu0 0
  %597 = vmatprep.subr.bf16.mxu0 0
  %598 = vmatpush1.bf16.msra.mxu0 0
  %599 = vmatprep.subr.bf16.mxu0 0
  %600 = vmatpush1.bf16.msra.mxu0 0
  %601 = vmatprep.subr.bf16.mxu0 0
  %602 = vmatpush1.bf16.msra.mxu0 0
  %603 = vmatprep.subr.bf16.mxu0 0
  %604 = vmatpush1.bf16.msra.mxu0 0
  %605 = vmatprep.subr.bf16.mxu0 0
  %606 = vmatpush1.bf16.msra.mxu0 0
  %607 = vmatprep.subr.bf16.mxu0 0
  %608 = vmatpush1.bf16.msra.mxu0 0
  %609 = vmatprep.mubr.bf16.mxu0 0
  %610 = vmatmul.mubr.bf16.gmra.mrb[0].mxu0 %v518
  %v611 = vpop.f32.mrb[0].mxu0
  %v612 = vadd.f32 %v563, %v611
  %v613 = vpop.f32.mrb[0].mxu0
  %v614 = vpop.f32.mrb[0].mxu0
  %v615 = vadd.f32 %v566, %v614
  %v616 = vpop.f32.mrb[0].mxu0
  %617 = vmatprep.mubr.bf16.mxu0 0
  %618 = vmatmul.mubr.bf16.gmra.mrb[0].mxu0 %v521
  %v619 = vpop.f32.mrb[0].mxu0
  %v620 = vadd.f32 %v571, %v619
  %v621 = vpop.f32.mrb[0].mxu0
  %v622 = vpop.f32.mrb[0].mxu0
  %v623 = vadd.f32 %v574, %v622
  %v624 = vpop.f32.mrb[0].mxu0
  %625 = vdwg.mxu0
  %s626 = scalar_lea.vmem %s0, 144
  %v627 = vld [vmem:[%s626] sm:$0xff]
  %v628 = vld [vmem:[%s626 + $0x8] sm:$0xf]
  %v629 = vld [vmem:[%s626 + $0xc] sm:$0xff]
  %v630 = vld [vmem:[%s626 + $0x14] sm:$0xf]
  %v631 = vld [vmem:[%s626 + $0x18] sm:$0xff]
  %v632 = vld [vmem:[%s626 + $0x20] sm:$0xf]
  %v633 = vld [vmem:[%s626 + $0x24] sm:$0xff]
  %v634 = vld [vmem:[%s626 + $0x2c] sm:$0xf]
  %v643 = vunpack.c.l.b16 %v627
  %v644 = vunpack.c.h.b16 %v627
  %v645 = vunpack.c.l.b16 %v628
  %v646 = vunpack.c.l.b16 %v629
  %v647 = vunpack.c.h.b16 %v629
  %v648 = vunpack.c.l.b16 %v630
  %v649 = vunpack.c.l.b16 %v631
  %v650 = vunpack.c.h.b16 %v631
  %v651 = vunpack.c.l.b16 %v632
  %v652 = vunpack.c.l.b16 %v633
  %v653 = vunpack.c.h.b16 %v633
  %v654 = vunpack.c.l.b16 %v634
  %v655 = vpack.c.b16 %v646, %v643
  %v656 = vpack.c.b16 %v647, %v644
  %v657 = vpack.c.b16 %v648, %v645
  %v658 = vpack.c.b16 %v652, %v649
  %v659 = vpack.c.b16 %v653, %v650
  %v660 = vpack.c.b16 %v654, %v651
  %667 = vmatprep.subr.bf16.mxu0 0
  %668 = vmatpush1.bf16.msra.mxu0 %v202
  %669 = vmatprep.subr.bf16.mxu0 0
  %670 = vmatpush1.bf16.msra.mxu0 %v203
  %671 = vmatprep.subr.bf16.mxu0 0
  %672 = vmatpush1.bf16.msra.mxu0 %v204
  %673 = vmatprep.subr.bf16.mxu0 0
  %674 = vmatpush1.bf16.msra.mxu0 %v205
  %675 = vmatprep.subr.bf16.mxu0 0
  %676 = vmatpush1.bf16.msra.mxu0 %v206
  %677 = vmatprep.subr.bf16.mxu0 0
  %678 = vmatpush1.bf16.msra.mxu0 %v207
  %679 = vmatprep.subr.bf16.mxu0 0
  %680 = vmatpush1.bf16.msra.mxu0 %v208
  %681 = vmatprep.subr.bf16.mxu0 0
  %682 = vmatpush1.bf16.msra.mxu0 %v209
  %683 = vmatprep.subr.bf16.mxu0 0
  %684 = vmatpush1.bf16.msra.mxu0 %v210
  %685 = vmatprep.subr.bf16.mxu0 0
  %686 = vmatpush1.bf16.msra.mxu0 %v211
  %687 = vmatprep.subr.bf16.mxu0 0
  %688 = vmatpush1.bf16.msra.mxu0 %v212
  %689 = vmatprep.subr.bf16.mxu0 0
  %690 = vmatpush1.bf16.msra.mxu0 %v213
  %691 = vmatprep.subr.bf16.mxu0 0
  %692 = vmatpush1.bf16.msra.mxu0 %v214
  %693 = vmatprep.subr.bf16.mxu0 0
  %694 = vmatpush1.bf16.msra.mxu0 %v215
  %695 = vmatprep.subr.bf16.mxu0 0
  %696 = vmatpush1.bf16.msra.mxu0 %v216
  %697 = vmatprep.subr.bf16.mxu0 0
  %698 = vmatpush1.bf16.msra.mxu0 %v217
  %699 = vmatprep.mubr.bf16.mxu0 %v656
  %700 = vmatmul.mubr.bf16.gmra.mrb[0].mxu0 %v655
  %v701 = vpop.f32.mrb[0].mxu0
  %v702 = vadd.f32 0.0, %v701
  %v703 = vpop.f32.mrb[0].mxu0
  %v704 = vpop.f32.mrb[0].mxu0
  %v705 = vadd.f32 0.0, %v704
  %v706 = vpop.f32.mrb[0].mxu0
  %707 = vmatprep.mubr.bf16.mxu0 %v659
  %708 = vmatmul.mubr.bf16.gmra.mrb[0].mxu0 %v658
  %v709 = vpop.f32.mrb[0].mxu0
  %v710 = vadd.f32 0.0, %v709
  %v711 = vpop.f32.mrb[0].mxu0
  %v712 = vpop.f32.mrb[0].mxu0
  %v713 = vadd.f32 0.0, %v712
  %v714 = vpop.f32.mrb[0].mxu0
  %715 = vdwg.mxu0
  %716 = vmatprep.subr.bf16.mxu0 0
  %717 = vmatpush1.bf16.msra.mxu0 %v218
  %718 = vmatprep.subr.bf16.mxu0 0
  %719 = vmatpush1.bf16.msra.mxu0 %v219
  %720 = vmatprep.subr.bf16.mxu0 0
  %721 = vmatpush1.bf16.msra.mxu0 %v220
  %722 = vmatprep.subr.bf16.mxu0 0
  %723 = vmatpush1.bf16.msra.mxu0 %v221
  %724 = vmatprep.subr.bf16.mxu0 0
  %725 = vmatpush1.bf16.msra.mxu0 %v222
  %726 = vmatprep.subr.bf16.mxu0 0
  %727 = vmatpush1.bf16.msra.mxu0 %v223
  %728 = vmatprep.subr.bf16.mxu0 0
  %729 = vmatpush1.bf16.msra.mxu0 %v224
  %730 = vmatprep.subr.bf16.mxu0 0
  %731 = vmatpush1.bf16.msra.mxu0 %v225
  %732 = vmatprep.subr.bf16.mxu0 0
  %733 = vmatpush1.bf16.msra.mxu0 0
  %734 = vmatprep.subr.bf16.mxu0 0
  %735 = vmatpush1.bf16.msra.mxu0 0
  %736 = vmatprep.subr.bf16.mxu0 0
  %737 = vmatpush1.bf16.msra.mxu0 0
  %738 = vmatprep.subr.bf16.mxu0 0
  %739 = vmatpush1.bf16.msra.mxu0 0
  %740 = vmatprep.subr.bf16.mxu0 0
  %741 = vmatpush1.bf16.msra.mxu0 0
  %742 = vmatprep.subr.bf16.mxu0 0
  %743 = vmatpush1.bf16.msra.mxu0 0
  %744 = vmatprep.subr.bf16.mxu0 0
  %745 = vmatpush1.bf16.msra.mxu0 0
  %746 = vmatprep.subr.bf16.mxu0 0
  %747 = vmatpush1.bf16.msra.mxu0 0
  %748 = vmatprep.mubr.bf16.mxu0 0
  %749 = vmatmul.mubr.bf16.gmra.mrb[0].mxu0 %v657
  %v750 = vpop.f32.mrb[0].mxu0
  %v751 = vadd.f32 %v702, %v750
  %v752 = vpop.f32.mrb[0].mxu0
  %v753 = vpop.f32.mrb[0].mxu0
  %v754 = vadd.f32 %v705, %v753
  %v755 = vpop.f32.mrb[0].mxu0
  %756 = vmatprep.mubr.bf16.mxu0 0
  %757 = vmatmul.mubr.bf16.gmra.mrb[0].mxu0 %v660
  %v758 = vpop.f32.mrb[0].mxu0
  %v759 = vadd.f32 %v710, %v758
  %v760 = vpop.f32.mrb[0].mxu0
  %v761 = vpop.f32.mrb[0].mxu0
  %v762 = vadd.f32 %v713, %v761
  %v763 = vpop.f32.mrb[0].mxu0
  %764 = vdwg.mxu0
  %vm765 = vcmask 523264
  %v766 = vsel %vm765, %v334, 0.0
  %v767 = vsel %vm765, %v337, 0.0
  %v768 = vadd.f32 %v766, %v767
  %v769 = vsel %vm765, %v342, 0.0
  %v770 = vadd.f32 %v768, %v769
  %v771 = vsel %vm765, %v345, 0.0
  %v772 = vadd.f32 %v770, %v771
  %v773 = vrot.slane %v772, 4
  %v774 = vadd.f32 %v772, %v773
  %v775 = vrot.slane %v774, 2
  %v776 = vadd.f32 %v774, %v775
  %v777 = vrot.slane %v776, 1
  %v778 = vadd.f32 %v776, %v777
  %v779 = vadd.f32 %v778, 0.0
  %v780 = vsel %vm765, %v473, 0.0
  %v781 = vsel %vm765, %v476, 0.0
  %v782 = vadd.f32 %v780, %v781
  %v783 = vsel %vm765, %v481, 0.0
  %v784 = vadd.f32 %v782, %v783
  %v785 = vsel %vm765, %v484, 0.0
  %v786 = vadd.f32 %v784, %v785
  %v787 = vrot.slane %v786, 4
  %v788 = vadd.f32 %v786, %v787
  %v789 = vrot.slane %v788, 2
  %v790 = vadd.f32 %v788, %v789
  %v791 = vrot.slane %v790, 1
  %v792 = vadd.f32 %v790, %v791
  %v793 = vadd.f32 %v779, %v792
  %v794 = vsel %vm765, %v612, 0.0
  %v795 = vsel %vm765, %v615, 0.0
  %v796 = vadd.f32 %v794, %v795
  %v797 = vsel %vm765, %v620, 0.0
  %v798 = vadd.f32 %v796, %v797
  %v799 = vsel %vm765, %v623, 0.0
  %v800 = vadd.f32 %v798, %v799
  %v801 = vrot.slane %v800, 4
  %v802 = vadd.f32 %v800, %v801
  %v803 = vrot.slane %v802, 2
  %v804 = vadd.f32 %v802, %v803
  %v805 = vrot.slane %v804, 1
  %v806 = vadd.f32 %v804, %v805
  %v807 = vadd.f32 %v793, %v806
  %v808 = vsel %vm765, %v751, 0.0
  %v809 = vsel %vm765, %v754, 0.0
  %v810 = vadd.f32 %v808, %v809
  %v811 = vsel %vm765, %v759, 0.0
  %v812 = vadd.f32 %v810, %v811
  %v813 = vsel %vm765, %v762, 0.0
  %v814 = vadd.f32 %v812, %v813
  %v815 = vrot.slane %v814, 4
  %v816 = vadd.f32 %v814, %v815
  %v817 = vrot.slane %v816, 2
  %v818 = vadd.f32 %v816, %v817
  %v819 = vrot.slane %v818, 1
  %v820 = vadd.f32 %v818, %v819
  %v821 = vadd.f32 %v807, %v820
  %v822 = vmul.f32 %v334, %v334
  %v823 = vmul.f32 %v337, %v337
  %v824 = vmul.f32 %v342, %v342
  %v825 = vmul.f32 %v345, %v345
  %v826 = vsel %vm765, %v822, 0.0
  %v827 = vsel %vm765, %v823, 0.0
  %v828 = vadd.f32 %v826, %v827
  %v829 = vsel %vm765, %v824, 0.0
  %v830 = vadd.f32 %v828, %v829
  %v831 = vsel %vm765, %v825, 0.0
  %v832 = vadd.f32 %v830, %v831
  %v833 = vrot.slane %v832, 4
  %v834 = vadd.f32 %v832, %v833
  %v835 = vrot.slane %v834, 2
  %v836 = vadd.f32 %v834, %v835
  %v837 = vrot.slane %v836, 1
  %v838 = vadd.f32 %v836, %v837
  %v839 = vadd.f32 %v838, 0.0
  %v840 = vmul.f32 %v473, %v473
  %v841 = vmul.f32 %v476, %v476
  %v842 = vmul.f32 %v481, %v481
  %v843 = vmul.f32 %v484, %v484
  %v844 = vsel %vm765, %v840, 0.0
  %v845 = vsel %vm765, %v841, 0.0
  %v846 = vadd.f32 %v844, %v845
  %v847 = vsel %vm765, %v842, 0.0
  %v848 = vadd.f32 %v846, %v847
  %v849 = vsel %vm765, %v843, 0.0
  %v850 = vadd.f32 %v848, %v849
  %v851 = vrot.slane %v850, 4
  %v852 = vadd.f32 %v850, %v851
  %v853 = vrot.slane %v852, 2
  %v854 = vadd.f32 %v852, %v853
  %v855 = vrot.slane %v854, 1
  %v856 = vadd.f32 %v854, %v855
  %v857 = vadd.f32 %v839, %v856
  %v858 = vmul.f32 %v612, %v612
  %v859 = vmul.f32 %v615, %v615
  %v860 = vmul.f32 %v620, %v620
  %v861 = vmul.f32 %v623, %v623
  %v862 = vsel %vm765, %v858, 0.0
  %v863 = vsel %vm765, %v859, 0.0
  %v864 = vadd.f32 %v862, %v863
  %v865 = vsel %vm765, %v860, 0.0
  %v866 = vadd.f32 %v864, %v865
  %v867 = vsel %vm765, %v861, 0.0
  %v868 = vadd.f32 %v866, %v867
  %v869 = vrot.slane %v868, 4
  %v870 = vadd.f32 %v868, %v869
  %v871 = vrot.slane %v870, 2
  %v872 = vadd.f32 %v870, %v871
  %v873 = vrot.slane %v872, 1
  %v874 = vadd.f32 %v872, %v873
  %v875 = vadd.f32 %v857, %v874
  %v876 = vmul.f32 %v751, %v751
  %v877 = vmul.f32 %v754, %v754
  %v878 = vmul.f32 %v759, %v759
  %v879 = vmul.f32 %v762, %v762
  %v880 = vsel %vm765, %v876, 0.0
  %v881 = vsel %vm765, %v877, 0.0
  %v882 = vadd.f32 %v880, %v881
  %v883 = vsel %vm765, %v878, 0.0
  %v884 = vadd.f32 %v882, %v883
  %v885 = vsel %vm765, %v879, 0.0
  %v886 = vadd.f32 %v884, %v885
  %v887 = vrot.slane %v886, 4
  %v888 = vadd.f32 %v886, %v887
  %v889 = vrot.slane %v888, 2
  %v890 = vadd.f32 %v888, %v889
  %v891 = vrot.slane %v890, 1
  %v892 = vadd.f32 %v890, %v891
  %v893 = vadd.f32 %v875, %v892
  %v894 = vmul.f32 %v821, 0.0078125
  %v895 = vmul.f32 %v893, 0.0078125
  %v896 = vmul.f32 %v894, %v894
  %v897 = vsub.f32 %v895, %v896
  %v898 = vmax.f32 %v897, 0.0
  %v899 = vadd.f32 %v898, 1e-05
  %v900 = vrsqrt.pop %v899
  %v901 = vld [vmem:[%s2] sm:$0x1]
  %v902 = vmul.f32 %v901, %v900
  %v903 = vld [vmem:[%s3] sm:$0x1]
  %v904 = vmul.f32 %v894, %v902
  %v905 = vsub.f32 %v903, %v904
  %v907 = vlaneseq
  %v908 = vshrl.u32 %v907, 7
  %v909 = vsub.s32 0, %v908
  %v910 = vrot.slane %v902, %v909
  %v912 = vmul.f32 %v334, %v910
  %v913 = vmul.f32 %v337, %v910
  %v914 = vmul.f32 %v342, %v910
  %v915 = vmul.f32 %v345, %v910
  %v917 = vlaneseq
  %v918 = vshrl.u32 %v917, 7
  %v919 = vsub.s32 0, %v918
  %v920 = vrot.slane %v905, %v919
  %v922 = vadd.f32 %v912, %v920
  %v923 = vadd.f32 %v913, %v920
  %v924 = vadd.f32 %v914, %v920
  %v925 = vadd.f32 %v915, %v920
  %v926 = vmax.f32 %v922, 0.0
  %v927 = vmax.f32 %v923, 0.0
  %v928 = vmax.f32 %v924, 0.0
  %v929 = vmax.f32 %v925, 0.0
  %v930 = vmul.f32 %v473, %v910
  %v931 = vmul.f32 %v476, %v910
  %v932 = vmul.f32 %v481, %v910
  %v933 = vmul.f32 %v484, %v910
  %v934 = vadd.f32 %v930, %v920
  %v935 = vadd.f32 %v931, %v920
  %v936 = vadd.f32 %v932, %v920
  %v937 = vadd.f32 %v933, %v920
  %v938 = vmax.f32 %v934, 0.0
  %v939 = vmax.f32 %v935, 0.0
  %v940 = vmax.f32 %v936, 0.0
  %v941 = vmax.f32 %v937, 0.0
  %v942 = vmul.f32 %v612, %v910
  %v943 = vmul.f32 %v615, %v910
  %v944 = vmul.f32 %v620, %v910
  %v945 = vmul.f32 %v623, %v910
  %v946 = vadd.f32 %v942, %v920
  %v947 = vadd.f32 %v943, %v920
  %v948 = vadd.f32 %v944, %v920
  %v949 = vadd.f32 %v945, %v920
  %v950 = vmax.f32 %v946, 0.0
  %v951 = vmax.f32 %v947, 0.0
  %v952 = vmax.f32 %v948, 0.0
  %v953 = vmax.f32 %v949, 0.0
  %v954 = vmul.f32 %v751, %v910
  %v955 = vmul.f32 %v754, %v910
  %v956 = vmul.f32 %v759, %v910
  %v957 = vmul.f32 %v762, %v910
  %v958 = vadd.f32 %v954, %v920
  %v959 = vadd.f32 %v955, %v920
  %v960 = vadd.f32 %v956, %v920
  %v961 = vadd.f32 %v957, %v920
  %v962 = vmax.f32 %v958, 0.0
  %v963 = vmax.f32 %v959, 0.0
  %v964 = vmax.f32 %v960, 0.0
  %v965 = vmax.f32 %v961, 0.0
  %v966 = vmax.f32 %v926, %v938
  %v967 = vmax.f32 %v927, %v939
  %v968 = vmax.f32 %v928, %v940
  %v969 = vmax.f32 %v929, %v941
  %v970 = vmax.f32 %v950, %v962
  %v971 = vmax.f32 %v951, %v963
  %v972 = vmax.f32 %v952, %v964
  %v973 = vmax.f32 %v953, %v965
  %v974 = vmax.f32 %v966, %v970
  %v975 = vmax.f32 %v967, %v971
  %v976 = vmax.f32 %v968, %v972
  %v977 = vmax.f32 %v969, %v973
  %978 = vst.msk [vmem:[%s4] sm:$0xff] %vm765, %v974
  %979 = vst.msk [vmem:[%s4 + $0x8] sm:$0xff] %vm765, %v975
  %980 = vst.msk [vmem:[%s4 + $0x10] sm:$0xff] %vm765, %v976
  %981 = vst.msk [vmem:[%s4 + $0x18] sm:$0xff] %vm765, %v977
  // Predicated region
  $region18: #{cl_forward.5} parent=0 // pred_check
    _
  $region19: #{cl_forward.5} parent=0 // pred_check_branch
    %983 = sbr.rel (0) target = $region21
  $region20: #{cl_forward.5} parent=0 // pred_region
    _
  $region21: #{cl_forward.5} parent=0 // pred_fallthru
    _
  // Predicated region
  $region22: #{cl_forward.5} parent=0 // pred_check
    _
  $region23: #{cl_forward.5} parent=0 // pred_check_branch
    %985 = sbr.rel (0) target = $region25
  $region24: #{cl_forward.5} parent=0 // pred_region
    _
  $region25: #{cl_forward.5} parent=0 // pred_fallthru
    _

// kernel: cl_forward.6
$region0: #{cl_forward.6}
  #allocation0 [shape = 'u32[]', space=smem, size = 0x4, offset = 0x4, fixed_abs, tag = 'smem constant byte address 0x4 - core index']
  #allocation1 [shape = 'u32[144,128]{1,0:T(1,128)}', space=vmem, size = 0x12000, scoped, tag = 'internal scratch']
  %s0 = inlined_call_operand.vmem [shape: bf16[4,8,640], index: 0, kind: input, shape index: {}]
  %s1 = inlined_call_operand.vmem [shape: bf16[640,128], index: 1, kind: input, shape index: {}]
  %s2 = inlined_call_operand.vmem [shape: f32[1,128], index: 2, kind: input, shape index: {}]
  %s3 = inlined_call_operand.vmem [shape: f32[1,128], index: 3, kind: input, shape index: {}]
  %s4 = inlined_call_operand.vmem [shape: f32[8,128], index: 4, kind: output, shape index: {}]
  %s5 = sld [smem:[#allocation0]]
  $region26: #{cl_forward.6} parent=0
    _
  %s7 = ssub.s32 1, %s5
  %s8 = scalar_select 0, %s7, %s5
  // Predicated region
  $region2: #{cl_forward.6} parent=0 // pred_check
    _
  $region3: #{cl_forward.6} parent=0 // pred_check_branch
    %10 = sbr.rel (0) target = $region5
  $region4: #{cl_forward.6} parent=0 // pred_region
    _
  $region5: #{cl_forward.6} parent=0 // pred_fallthru
    _
  // Predicated region
  $region6: #{cl_forward.6} parent=0 // pred_check
    _
  $region7: #{cl_forward.6} parent=0 // pred_check_branch
    %12 = sbr.rel (0) target = $region9
  $region8: #{cl_forward.6} parent=0 // pred_region
    _
  $region9: #{cl_forward.6} parent=0 // pred_fallthru
    _
  // Predicated region
  $region10: #{cl_forward.6} parent=0 // pred_check
    _
  $region11: #{cl_forward.6} parent=0 // pred_check_branch
    %14 = sbr.rel (0) target = $region13
  $region12: #{cl_forward.6} parent=0 // pred_region
    _
  $region13: #{cl_forward.6} parent=0 // pred_fallthru
    _
  // Predicated region
  $region14: #{cl_forward.6} parent=0 // pred_check
    _
  $region15: #{cl_forward.6} parent=0 // pred_check_branch
    %16 = sbr.rel (0) target = $region17
  $region16: #{cl_forward.6} parent=0 // pred_region
    _
  $region17: #{cl_forward.6} parent=0 // pred_fallthru
    _
  %v18 = vld [vmem:[%s1] sm:$0xf]
  %v19 = vld [vmem:[%s1 + $0x4] sm:$0xf]
  %v20 = vld [vmem:[%s1 + $0x8] sm:$0xf]
  %v21 = vld [vmem:[%s1 + $0xc] sm:$0xf]
  %v22 = vld [vmem:[%s1 + $0x10] sm:$0xf]
  %v23 = vld [vmem:[%s1 + $0x14] sm:$0xf]
  %v24 = vld [vmem:[%s1 + $0x18] sm:$0xf]
  %v25 = vld [vmem:[%s1 + $0x1c] sm:$0xf]
  %v26 = vld [vmem:[%s1 + $0x20] sm:$0xf]
  %v27 = vld [vmem:[%s1 + $0x24] sm:$0xf]
  %v28 = vld [vmem:[%s1 + $0x28] sm:$0xf]
  %v29 = vld [vmem:[%s1 + $0x2c] sm:$0xf]
  %v30 = vld [vmem:[%s1 + $0x30] sm:$0xf]
  %v31 = vld [vmem:[%s1 + $0x34] sm:$0xf]
  %v32 = vld [vmem:[%s1 + $0x38] sm:$0xf]
  %v33 = vld [vmem:[%s1 + $0x3c] sm:$0xf]
  %v34 = vld [vmem:[%s1 + $0x40] sm:$0xf]
  %v35 = vld [vmem:[%s1 + $0x44] sm:$0xf]
  %v36 = vld [vmem:[%s1 + $0x48] sm:$0xf]
  %v37 = vld [vmem:[%s1 + $0x4c] sm:$0xf]
  %v38 = vld [vmem:[%s1 + $0x50] sm:$0xf]
  %v39 = vld [vmem:[%s1 + $0x54] sm:$0xf]
  %v40 = vld [vmem:[%s1 + $0x58] sm:$0xf]
  %v41 = vld [vmem:[%s1 + $0x5c] sm:$0xf]
  %v42 = vld [vmem:[%s1 + $0x60] sm:$0xf]
  %v43 = vld [vmem:[%s1 + $0x64] sm:$0xf]
  %v44 = vld [vmem:[%s1 + $0x68] sm:$0xf]
  %v45 = vld [vmem:[%s1 + $0x6c] sm:$0xf]
  %v46 = vld [vmem:[%s1 + $0x70] sm:$0xf]
  %v47 = vld [vmem:[%s1 + $0x74] sm:$0xf]
  %v48 = vld [vmem:[%s1 + $0x78] sm:$0xf]
  %v49 = vld [vmem:[%s1 + $0x7c] sm:$0xf]
  %v50 = vld [vmem:[%s1 + $0x80] sm:$0xf]
  %v51 = vld [vmem:[%s1 + $0x84] sm:$0xf]
  %v52 = vld [vmem:[%s1 + $0x88] sm:$0xf]
  %v53 = vld [vmem:[%s1 + $0x8c] sm:$0xf]
  %v54 = vld [vmem:[%s1 + $0x90] sm:$0xf]
  %v55 = vld [vmem:[%s1 + $0x94] sm:$0xf]
  %v56 = vld [vmem:[%s1 + $0x98] sm:$0xf]
  %v57 = vld [vmem:[%s1 + $0x9c] sm:$0xf]
  %v58 = vld [vmem:[%s1 + $0xa0] sm:$0xf]
  %v59 = vld [vmem:[%s1 + $0xa4] sm:$0xf]
  %v60 = vld [vmem:[%s1 + $0xa8] sm:$0xf]
  %v61 = vld [vmem:[%s1 + $0xac] sm:$0xf]
  %v62 = vld [vmem:[%s1 + $0xb0] sm:$0xf]
  %v63 = vld [vmem:[%s1 + $0xb4] sm:$0xf]
  %v64 = vld [vmem:[%s1 + $0xb8] sm:$0xf]
  %v65 = vld [vmem:[%s1 + $0xbc] sm:$0xf]
  %v66 = vld [vmem:[%s1 + $0xc0] sm:$0xf]
  %v67 = vld [vmem:[%s1 + $0xc4] sm:$0xf]
  %v68 = vld [vmem:[%s1 + $0xc8] sm:$0xf]
  %v69 = vld [vmem:[%s1 + $0xcc] sm:$0xf]
  %v70 = vld [vmem:[%s1 + $0xd0] sm:$0xf]
  %v71 = vld [vmem:[%s1 + $0xd4] sm:$0xf]
  %v72 = vld [vmem:[%s1 + $0xd8] sm:$0xf]
  %v73 = vld [vmem:[%s1 + $0xdc] sm:$0xf]
  %v74 = vld [vmem:[%s1 + $0xe0] sm:$0xf]
  %v75 = vld [vmem:[%s1 + $0xe4] sm:$0xf]
  %v76 = vld [vmem:[%s1 + $0xe8] sm:$0xf]
  %v77 = vld [vmem:[%s1 + $0xec] sm:$0xf]
  %v78 = vld [vmem:[%s1 + $0xf0] sm:$0xf]
  %v79 = vld [vmem:[%s1 + $0xf4] sm:$0xf]
  %v80 = vld [vmem:[%s1 + $0xf8] sm:$0xf]
  %v81 = vld [vmem:[%s1 + $0xfc] sm:$0xf]
  %v82 = vld [vmem:[%s1 + $0x100] sm:$0xf]
  %v83 = vld [vmem:[%s1 + $0x104] sm:$0xf]
  %v84 = vld [vmem:[%s1 + $0x108] sm:$0xf]
  %v85 = vld [vmem:[%s1 + $0x10c] sm:$0xf]
  %v86 = vld [vmem:[%s1 + $0x110] sm:$0xf]
  %v87 = vld [vmem:[%s1 + $0x114] sm:$0xf]
  %v88 = vld [vmem:[%s1 + $0x118] sm:$0xf]
  %v89 = vld [vmem:[%s1 + $0x11c] sm:$0xf]
  %v90 = vld [vmem:[%s1 + $0x120] sm:$0xf]
  %v91 = vld [vmem:[%s1 + $0x124] sm:$0xf]
  %v92 = vld [vmem:[%s1 + $0x128] sm:$0xf]
  %v93 = vld [vmem:[%s1 + $0x12c] sm:$0xf]
  %v94 = vld [vmem:[%s1 + $0x130] sm:$0xf]
  %v95 = vld [vmem:[%s1 + $0x134] sm:$0xf]
  %v96 = vld [vmem:[%s1 + $0x138] sm:$0xf]
  %v97 = vld [vmem:[%s1 + $0x13c] sm:$0xf]
  %v98 = vld [vmem:[%s0] sm:$0xff]
  %v99 = vld [vmem:[%s0 + $0x8] sm:$0xff]
  %v100 = vld [vmem:[%s0 + $0x10] sm:$0xf]
  %v104 = vunpack.c.l.b16 %v98
  %v105 = vunpack.c.h.b16 %v98
  %v106 = vunpack.c.l.b16 %v99
  %v107 = vunpack.c.h.b16 %v99
  %v108 = vunpack.c.l.b16 %v100
  %v109 = vpack.c.b16 %v104, %v104
  %v110 = vpack.c.b16 %v105, %v105
  %v111 = vpack.c.b16 %v106, %v106
  %v112 = vpack.c.b16 %v107, %v107
  %v113 = vpack.c.b16 %v108, %v108
  %v199 = vunpack.c.l.b16 %v18
  %v200 = vunpack.c.l.b16 %v19
  %v201 = vunpack.c.l.b16 %v20
  %v202 = vunpack.c.l.b16 %v21
  %v203 = vunpack.c.l.b16 %v22
  %v204 = vunpack.c.l.b16 %v23
  %v205 = vunpack.c.l.b16 %v24
  %v206 = vunpack.c.l.b16 %v25
  %v207 = vunpack.c.l.b16 %v26
  %v208 = vunpack.c.l.b16 %v27
  %v209 = vunpack.c.l.b16 %v28
  %v210 = vunpack.c.l.b16 %v29
  %v211 = vunpack.c.l.b16 %v30
  %v212 = vunpack.c.l.b16 %v31
  %v213 = vunpack.c.l.b16 %v32
  %v214 = vunpack.c.l.b16 %v33
  %v215 = vunpack.c.l.b16 %v34
  %v216 = vunpack.c.l.b16 %v35
  %v217 = vunpack.c.l.b16 %v36
  %v218 = vunpack.c.l.b16 %v37
  %v219 = vunpack.c.l.b16 %v38
  %v220 = vunpack.c.l.b16 %v39
  %v221 = vunpack.c.l.b16 %v40
  %v222 = vunpack.c.l.b16 %v41
  %v223 = vunpack.c.l.b16 %v42
  %v224 = vunpack.c.l.b16 %v43
  %v225 = vunpack.c.l.b16 %v44
  %v226 = vunpack.c.l.b16 %v45
  %v227 = vunpack.c.l.b16 %v46
  %v228 = vunpack.c.l.b16 %v47
  %v229 = vunpack.c.l.b16 %v48
  %v230 = vunpack.c.l.b16 %v49
  %v231 = vunpack.c.l.b16 %v50
  %v232 = vunpack.c.l.b16 %v51
  %v233 = vunpack.c.l.b16 %v52
  %v234 = vunpack.c.l.b16 %v53
  %v235 = vunpack.c.l.b16 %v54
  %v236 = vunpack.c.l.b16 %v55
  %v237 = vunpack.c.l.b16 %v56
  %v238 = vunpack.c.l.b16 %v57
  %v239 = vunpack.c.l.b16 %v58
  %v240 = vunpack.c.l.b16 %v59
  %v241 = vunpack.c.l.b16 %v60
  %v242 = vunpack.c.l.b16 %v61
  %v243 = vunpack.c.l.b16 %v62
  %v244 = vunpack.c.l.b16 %v63
  %v245 = vunpack.c.l.b16 %v64
  %v246 = vunpack.c.l.b16 %v65
  %v247 = vunpack.c.l.b16 %v66
  %v248 = vunpack.c.l.b16 %v67
  %v249 = vunpack.c.l.b16 %v68
  %v250 = vunpack.c.l.b16 %v69
  %v251 = vunpack.c.l.b16 %v70
  %v252 = vunpack.c.l.b16 %v71
  %v253 = vunpack.c.l.b16 %v72
  %v254 = vunpack.c.l.b16 %v73
  %v255 = vunpack.c.l.b16 %v74
  %v256 = vunpack.c.l.b16 %v75
  %v257 = vunpack.c.l.b16 %v76
  %v258 = vunpack.c.l.b16 %v77
  %v259 = vunpack.c.l.b16 %v78
  %v260 = vunpack.c.l.b16 %v79
  %v261 = vunpack.c.l.b16 %v80
  %v262 = vunpack.c.l.b16 %v81
  %v263 = vunpack.c.l.b16 %v82
  %v264 = vunpack.c.l.b16 %v83
  %v265 = vunpack.c.l.b16 %v84
  %v266 = vunpack.c.l.b16 %v85
  %v267 = vunpack.c.l.b16 %v86
  %v268 = vunpack.c.l.b16 %v87
  %v269 = vunpack.c.l.b16 %v88
  %v270 = vunpack.c.l.b16 %v89
  %v271 = vunpack.c.l.b16 %v90
  %v272 = vunpack.c.l.b16 %v91
  %v273 = vunpack.c.l.b16 %v92
  %v274 = vunpack.c.l.b16 %v93
  %v275 = vunpack.c.l.b16 %v94
  %v276 = vunpack.c.l.b16 %v95
  %v277 = vunpack.c.l.b16 %v96
  %v278 = vunpack.c.l.b16 %v97
  %v279 = vpack.c.b16 %v200, %v199
  %v280 = vpack.c.b16 %v202, %v201
  %v281 = vpack.c.b16 %v204, %v203
  %v282 = vpack.c.b16 %v206, %v205
  %v283 = vpack.c.b16 %v208, %v207
  %v284 = vpack.c.b16 %v210, %v209
  %v285 = vpack.c.b16 %v212, %v211
  %v286 = vpack.c.b16 %v214, %v213
  %v287 = vpack.c.b16 %v216, %v215
  %v288 = vpack.c.b16 %v218, %v217
  %v289 = vpack.c.b16 %v220, %v219
  %v290 = vpack.c.b16 %v222, %v221
  %v291 = vpack.c.b16 %v224, %v223
  %v292 = vpack.c.b16 %v226, %v225
  %v293 = vpack.c.b16 %v228, %v227
  %v294 = vpack.c.b16 %v230, %v229
  %v295 = vpack.c.b16 %v232, %v231
  %v296 = vpack.c.b16 %v234, %v233
  %v297 = vpack.c.b16 %v236, %v235
  %v298 = vpack.c.b16 %v238, %v237
  %v299 = vpack.c.b16 %v240, %v239
  %v300 = vpack.c.b16 %v242, %v241
  %v301 = vpack.c.b16 %v244, %v243
  %v302 = vpack.c.b16 %v246, %v245
  %v303 = vpack.c.b16 %v248, %v247
  %v304 = vpack.c.b16 %v250, %v249
  %v305 = vpack.c.b16 %v252, %v251
  %v306 = vpack.c.b16 %v254, %v253
  %v307 = vpack.c.b16 %v256, %v255
  %v308 = vpack.c.b16 %v258, %v257
  %v309 = vpack.c.b16 %v260, %v259
  %v310 = vpack.c.b16 %v262, %v261
  %v311 = vpack.c.b16 %v264, %v263
  %v312 = vpack.c.b16 %v266, %v265
  %v313 = vpack.c.b16 %v268, %v267
  %v314 = vpack.c.b16 %v270, %v269
  %v315 = vpack.c.b16 %v272, %v271
  %v316 = vpack.c.b16 %v274, %v273
  %v317 = vpack.c.b16 %v276, %v275
  %v318 = vpack.c.b16 %v278, %v277
  %359 = vmatprep.subr.bf16.mxu0 0
  %360 = vmatpush1.bf16.msra.mxu0 %v279
  %361 = vmatprep.subr.bf16.mxu0 0
  %362 = vmatpush1.bf16.msra.mxu0 %v280
  %363 = vmatprep.subr.bf16.mxu0 0
  %364 = vmatpush1.bf16.msra.mxu0 %v281
  %365 = vmatprep.subr.bf16.mxu0 0
  %366 = vmatpush1.bf16.msra.mxu0 %v282
  %367 = vmatprep.subr.bf16.mxu0 0
  %368 = vmatpush1.bf16.msra.mxu0 %v283
  %369 = vmatprep.subr.bf16.mxu0 0
  %370 = vmatpush1.bf16.msra.mxu0 %v284
  %371 = vmatprep.subr.bf16.mxu0 0
  %372 = vmatpush1.bf16.msra.mxu0 %v285
  %373 = vmatprep.subr.bf16.mxu0 0
  %374 = vmatpush1.bf16.msra.mxu0 %v286
  %375 = vmatprep.subr.bf16.mxu0 0
  %376 = vmatpush1.bf16.msra.mxu0 %v287
  %377 = vmatprep.subr.bf16.mxu0 0
  %378 = vmatpush1.bf16.msra.mxu0 %v288
  %379 = vmatprep.subr.bf16.mxu0 0
  %380 = vmatpush1.bf16.msra.mxu0 %v289
  %381 = vmatprep.subr.bf16.mxu0 0
  %382 = vmatpush1.bf16.msra.mxu0 %v290
  %383 = vmatprep.subr.bf16.mxu0 0
  %384 = vmatpush1.bf16.msra.mxu0 %v291
  %385 = vmatprep.subr.bf16.mxu0 0
  %386 = vmatpush1.bf16.msra.mxu0 %v292
  %387 = vmatprep.subr.bf16.mxu0 0
  %388 = vmatpush1.bf16.msra.mxu0 %v293
  %389 = vmatprep.subr.bf16.mxu0 0
  %390 = vmatpush1.bf16.msra.mxu0 %v294
  %391 = vmatprep.mubr.bf16.mxu0 %v110
  %392 = vmatmul.mubr.bf16.gmra.mrb[0].mxu0 %v109
  %v393 = vpop.f32.mrb[0].mxu0
  %v394 = vadd.f32 0.0, %v393
  %v395 = vpop.f32.mrb[0].mxu0
  %v396 = vpop.f32.mrb[0].mxu0
  %v397 = vpop.f32.mrb[0].mxu0
  %398 = vdwg.mxu0
  %399 = vmatprep.subr.bf16.mxu0 0
  %400 = vmatpush1.bf16.msra.mxu0 %v295
  %401 = vmatprep.subr.bf16.mxu0 0
  %402 = vmatpush1.bf16.msra.mxu0 %v296
  %403 = vmatprep.subr.bf16.mxu0 0
  %404 = vmatpush1.bf16.msra.mxu0 %v297
  %405 = vmatprep.subr.bf16.mxu0 0
  %406 = vmatpush1.bf16.msra.mxu0 %v298
  %407 = vmatprep.subr.bf16.mxu0 0
  %408 = vmatpush1.bf16.msra.mxu0 %v299
  %409 = vmatprep.subr.bf16.mxu0 0
  %410 = vmatpush1.bf16.msra.mxu0 %v300
  %411 = vmatprep.subr.bf16.mxu0 0
  %412 = vmatpush1.bf16.msra.mxu0 %v301
  %413 = vmatprep.subr.bf16.mxu0 0
  %414 = vmatpush1.bf16.msra.mxu0 %v302
  %415 = vmatprep.subr.bf16.mxu0 0
  %416 = vmatpush1.bf16.msra.mxu0 %v303
  %417 = vmatprep.subr.bf16.mxu0 0
  %418 = vmatpush1.bf16.msra.mxu0 %v304
  %419 = vmatprep.subr.bf16.mxu0 0
  %420 = vmatpush1.bf16.msra.mxu0 %v305
  %421 = vmatprep.subr.bf16.mxu0 0
  %422 = vmatpush1.bf16.msra.mxu0 %v306
  %423 = vmatprep.subr.bf16.mxu0 0
  %424 = vmatpush1.bf16.msra.mxu0 %v307
  %425 = vmatprep.subr.bf16.mxu0 0
  %426 = vmatpush1.bf16.msra.mxu0 %v308
  %427 = vmatprep.subr.bf16.mxu0 0
  %428 = vmatpush1.bf16.msra.mxu0 %v309
  %429 = vmatprep.subr.bf16.mxu0 0
  %430 = vmatpush1.bf16.msra.mxu0 %v310
  %431 = vmatprep.mubr.bf16.mxu0 %v112
  %432 = vmatmul.mubr.bf16.gmra.mrb[0].mxu0 %v111
  %v433 = vpop.f32.mrb[0].mxu0
  %v434 = vadd.f32 %v394, %v433
  %v435 = vpop.f32.mrb[0].mxu0
  %v436 = vpop.f32.mrb[0].mxu0
  %v437 = vpop.f32.mrb[0].mxu0
  %438 = vdwg.mxu0
  %439 = vmatprep.subr.bf16.mxu0 0
  %440 = vmatpush1.bf16.msra.mxu0 %v311
  %441 = vmatprep.subr.bf16.mxu0 0
  %442 = vmatpush1.bf16.msra.mxu0 %v312
  %443 = vmatprep.subr.bf16.mxu0 0
  %444 = vmatpush1.bf16.msra.mxu0 %v313
  %445 = vmatprep.subr.bf16.mxu0 0
  %446 = vmatpush1.bf16.msra.mxu0 %v314
  %447 = vmatprep.subr.bf16.mxu0 0
  %448 = vmatpush1.bf16.msra.mxu0 %v315
  %449 = vmatprep.subr.bf16.mxu0 0
  %450 = vmatpush1.bf16.msra.mxu0 %v316
  %451 = vmatprep.subr.bf16.mxu0 0
  %452 = vmatpush1.bf16.msra.mxu0 %v317
  %453 = vmatprep.subr.bf16.mxu0 0
  %454 = vmatpush1.bf16.msra.mxu0 %v318
  %455 = vmatprep.subr.bf16.mxu0 0
  %456 = vmatpush1.bf16.msra.mxu0 0
  %457 = vmatprep.subr.bf16.mxu0 0
  %458 = vmatpush1.bf16.msra.mxu0 0
  %459 = vmatprep.subr.bf16.mxu0 0
  %460 = vmatpush1.bf16.msra.mxu0 0
  %461 = vmatprep.subr.bf16.mxu0 0
  %462 = vmatpush1.bf16.msra.mxu0 0
  %463 = vmatprep.subr.bf16.mxu0 0
  %464 = vmatpush1.bf16.msra.mxu0 0
  %465 = vmatprep.subr.bf16.mxu0 0
  %466 = vmatpush1.bf16.msra.mxu0 0
  %467 = vmatprep.subr.bf16.mxu0 0
  %468 = vmatpush1.bf16.msra.mxu0 0
  %469 = vmatprep.subr.bf16.mxu0 0
  %470 = vmatpush1.bf16.msra.mxu0 0
  %471 = vmatprep.mubr.bf16.mxu0 0
  %472 = vmatmul.mubr.bf16.gmra.mrb[0].mxu0 %v113
  %v473 = vpop.f32.mrb[0].mxu0
  %v474 = vadd.f32 %v434, %v473
  %v475 = vpop.f32.mrb[0].mxu0
  %v476 = vpop.f32.mrb[0].mxu0
  %v477 = vpop.f32.mrb[0].mxu0
  %478 = vdwg.mxu0
  %s479 = scalar_lea.vmem %s0, 20
  %v480 = vld [vmem:[%s479] sm:$0xff]
  %v481 = vld [vmem:[%s479 + $0x8] sm:$0xff]
  %v482 = vld [vmem:[%s479 + $0x10] sm:$0xf]
  %v486 = vunpack.c.l.b16 %v480
  %v487 = vunpack.c.h.b16 %v480
  %v488 = vunpack.c.l.b16 %v481
  %v489 = vunpack.c.h.b16 %v481
  %v490 = vunpack.c.l.b16 %v482
  %v491 = vpack.c.b16 %v486, %v486
  %v492 = vpack.c.b16 %v487, %v487
  %v493 = vpack.c.b16 %v488, %v488
  %v494 = vpack.c.b16 %v489, %v489
  %v495 = vpack.c.b16 %v490, %v490
  %501 = vmatprep.subr.bf16.mxu0 0
  %502 = vmatpush1.bf16.msra.mxu0 %v279
  %503 = vmatprep.subr.bf16.mxu0 0
  %504 = vmatpush1.bf16.msra.mxu0 %v280
  %505 = vmatprep.subr.bf16.mxu0 0
  %506 = vmatpush1.bf16.msra.mxu0 %v281
  %507 = vmatprep.subr.bf16.mxu0 0
  %508 = vmatpush1.bf16.msra.mxu0 %v282
  %509 = vmatprep.subr.bf16.mxu0 0
  %510 = vmatpush1.bf16.msra.mxu0 %v283
  %511 = vmatprep.subr.bf16.mxu0 0
  %512 = vmatpush1.bf16.msra.mxu0 %v284
  %513 = vmatprep.subr.bf16.mxu0 0
  %514 = vmatpush1.bf16.msra.mxu0 %v285
  %515 = vmatprep.subr.bf16.mxu0 0
  %516 = vmatpush1.bf16.msra.mxu0 %v286
  %517 = vmatprep.subr.bf16.mxu0 0
  %518 = vmatpush1.bf16.msra.mxu0 %v287
  %519 = vmatprep.subr.bf16.mxu0 0
  %520 = vmatpush1.bf16.msra.mxu0 %v288
  %521 = vmatprep.subr.bf16.mxu0 0
  %522 = vmatpush1.bf16.msra.mxu0 %v289
  %523 = vmatprep.subr.bf16.mxu0 0
  %524 = vmatpush1.bf16.msra.mxu0 %v290
  %525 = vmatprep.subr.bf16.mxu0 0
  %526 = vmatpush1.bf16.msra.mxu0 %v291
  %527 = vmatprep.subr.bf16.mxu0 0
  %528 = vmatpush1.bf16.msra.mxu0 %v292
  %529 = vmatprep.subr.bf16.mxu0 0
  %530 = vmatpush1.bf16.msra.mxu0 %v293
  %531 = vmatprep.subr.bf16.mxu0 0
  %532 = vmatpush1.bf16.msra.mxu0 %v294
  %533 = vmatprep.mubr.bf16.mxu0 %v492
  %534 = vmatmul.mubr.bf16.gmra.mrb[0].mxu0 %v491
  %v535 = vpop.f32.mrb[0].mxu0
  %v536 = vadd.f32 0.0, %v535
  %v537 = vpop.f32.mrb[0].mxu0
  %v538 = vpop.f32.mrb[0].mxu0
  %v539 = vpop.f32.mrb[0].mxu0
  %540 = vdwg.mxu0
  %541 = vmatprep.subr.bf16.mxu0 0
  %542 = vmatpush1.bf16.msra.mxu0 %v295
  %543 = vmatprep.subr.bf16.mxu0 0
  %544 = vmatpush1.bf16.msra.mxu0 %v296
  %545 = vmatprep.subr.bf16.mxu0 0
  %546 = vmatpush1.bf16.msra.mxu0 %v297
  %547 = vmatprep.subr.bf16.mxu0 0
  %548 = vmatpush1.bf16.msra.mxu0 %v298
  %549 = vmatprep.subr.bf16.mxu0 0
  %550 = vmatpush1.bf16.msra.mxu0 %v299
  %551 = vmatprep.subr.bf16.mxu0 0
  %552 = vmatpush1.bf16.msra.mxu0 %v300
  %553 = vmatprep.subr.bf16.mxu0 0
  %554 = vmatpush1.bf16.msra.mxu0 %v301
  %555 = vmatprep.subr.bf16.mxu0 0
  %556 = vmatpush1.bf16.msra.mxu0 %v302
  %557 = vmatprep.subr.bf16.mxu0 0
  %558 = vmatpush1.bf16.msra.mxu0 %v303
  %559 = vmatprep.subr.bf16.mxu0 0
  %560 = vmatpush1.bf16.msra.mxu0 %v304
  %561 = vmatprep.subr.bf16.mxu0 0
  %562 = vmatpush1.bf16.msra.mxu0 %v305
  %563 = vmatprep.subr.bf16.mxu0 0
  %564 = vmatpush1.bf16.msra.mxu0 %v306
  %565 = vmatprep.subr.bf16.mxu0 0
  %566 = vmatpush1.bf16.msra.mxu0 %v307
  %567 = vmatprep.subr.bf16.mxu0 0
  %568 = vmatpush1.bf16.msra.mxu0 %v308
  %569 = vmatprep.subr.bf16.mxu0 0
  %570 = vmatpush1.bf16.msra.mxu0 %v309
  %571 = vmatprep.subr.bf16.mxu0 0
  %572 = vmatpush1.bf16.msra.mxu0 %v310
  %573 = vmatprep.mubr.bf16.mxu0 %v494
  %574 = vmatmul.mubr.bf16.gmra.mrb[0].mxu0 %v493
  %v575 = vpop.f32.mrb[0].mxu0
  %v576 = vadd.f32 %v536, %v575
  %v577 = vpop.f32.mrb[0].mxu0
  %v578 = vpop.f32.mrb[0].mxu0
  %v579 = vpop.f32.mrb[0].mxu0
  %580 = vdwg.mxu0
  %581 = vmatprep.subr.bf16.mxu0 0
  %582 = vmatpush1.bf16.msra.mxu0 %v311
  %583 = vmatprep.subr.bf16.mxu0 0
  %584 = vmatpush1.bf16.msra.mxu0 %v312
  %585 = vmatprep.subr.bf16.mxu0 0
  %586 = vmatpush1.bf16.msra.mxu0 %v313
  %587 = vmatprep.subr.bf16.mxu0 0
  %588 = vmatpush1.bf16.msra.mxu0 %v314
  %589 = vmatprep.subr.bf16.mxu0 0
  %590 = vmatpush1.bf16.msra.mxu0 %v315
  %591 = vmatprep.subr.bf16.mxu0 0
  %592 = vmatpush1.bf16.msra.mxu0 %v316
  %593 = vmatprep.subr.bf16.mxu0 0
  %594 = vmatpush1.bf16.msra.mxu0 %v317
  %595 = vmatprep.subr.bf16.mxu0 0
  %596 = vmatpush1.bf16.msra.mxu0 %v318
  %597 = vmatprep.subr.bf16.mxu0 0
  %598 = vmatpush1.bf16.msra.mxu0 0
  %599 = vmatprep.subr.bf16.mxu0 0
  %600 = vmatpush1.bf16.msra.mxu0 0
  %601 = vmatprep.subr.bf16.mxu0 0
  %602 = vmatpush1.bf16.msra.mxu0 0
  %603 = vmatprep.subr.bf16.mxu0 0
  %604 = vmatpush1.bf16.msra.mxu0 0
  %605 = vmatprep.subr.bf16.mxu0 0
  %606 = vmatpush1.bf16.msra.mxu0 0
  %607 = vmatprep.subr.bf16.mxu0 0
  %608 = vmatpush1.bf16.msra.mxu0 0
  %609 = vmatprep.subr.bf16.mxu0 0
  %610 = vmatpush1.bf16.msra.mxu0 0
  %611 = vmatprep.subr.bf16.mxu0 0
  %612 = vmatpush1.bf16.msra.mxu0 0
  %613 = vmatprep.mubr.bf16.mxu0 0
  %614 = vmatmul.mubr.bf16.gmra.mrb[0].mxu0 %v495
  %v615 = vpop.f32.mrb[0].mxu0
  %v616 = vadd.f32 %v576, %v615
  %v617 = vpop.f32.mrb[0].mxu0
  %v618 = vpop.f32.mrb[0].mxu0
  %v619 = vpop.f32.mrb[0].mxu0
  %620 = vdwg.mxu0
  %s621 = scalar_lea.vmem %s0, 40
  %v622 = vld [vmem:[%s621] sm:$0xff]
  %v623 = vld [vmem:[%s621 + $0x8] sm:$0xff]
  %v624 = vld [vmem:[%s621 + $0x10] sm:$0xf]
  %v628 = vunpack.c.l.b16 %v622
  %v629 = vunpack.c.h.b16 %v622
  %v630 = vunpack.c.l.b16 %v623
  %v631 = vunpack.c.h.b16 %v623
  %v632 = vunpack.c.l.b16 %v624
  %v633 = vpack.c.b16 %v628, %v628
  %v634 = vpack.c.b16 %v629, %v629
  %v635 = vpack.c.b16 %v630, %v630
  %v636 = vpack.c.b16 %v631, %v631
  %v637 = vpack.c.b16 %v632, %v632
  %643 = vmatprep.subr.bf16.mxu0 0
  %644 = vmatpush1.bf16.msra.mxu0 %v279
  %645 = vmatprep.subr.bf16.mxu0 0
  %646 = vmatpush1.bf16.msra.mxu0 %v280
  %647 = vmatprep.subr.bf16.mxu0 0
  %648 = vmatpush1.bf16.msra.mxu0 %v281
  %649 = vmatprep.subr.bf16.mxu0 0
  %650 = vmatpush1.bf16.msra.mxu0 %v282
  %651 = vmatprep.subr.bf16.mxu0 0
  %652 = vmatpush1.bf16.msra.mxu0 %v283
  %653 = vmatprep.subr.bf16.mxu0 0
  %654 = vmatpush1.bf16.msra.mxu0 %v284
  %655 = vmatprep.subr.bf16.mxu0 0
  %656 = vmatpush1.bf16.msra.mxu0 %v285
  %657 = vmatprep.subr.bf16.mxu0 0
  %658 = vmatpush1.bf16.msra.mxu0 %v286
  %659 = vmatprep.subr.bf16.mxu0 0
  %660 = vmatpush1.bf16.msra.mxu0 %v287
  %661 = vmatprep.subr.bf16.mxu0 0
  %662 = vmatpush1.bf16.msra.mxu0 %v288
  %663 = vmatprep.subr.bf16.mxu0 0
  %664 = vmatpush1.bf16.msra.mxu0 %v289
  %665 = vmatprep.subr.bf16.mxu0 0
  %666 = vmatpush1.bf16.msra.mxu0 %v290
  %667 = vmatprep.subr.bf16.mxu0 0
  %668 = vmatpush1.bf16.msra.mxu0 %v291
  %669 = vmatprep.subr.bf16.mxu0 0
  %670 = vmatpush1.bf16.msra.mxu0 %v292
  %671 = vmatprep.subr.bf16.mxu0 0
  %672 = vmatpush1.bf16.msra.mxu0 %v293
  %673 = vmatprep.subr.bf16.mxu0 0
  %674 = vmatpush1.bf16.msra.mxu0 %v294
  %675 = vmatprep.mubr.bf16.mxu0 %v634
  %676 = vmatmul.mubr.bf16.gmra.mrb[0].mxu0 %v633
  %v677 = vpop.f32.mrb[0].mxu0
  %v678 = vadd.f32 0.0, %v677
  %v679 = vpop.f32.mrb[0].mxu0
  %v680 = vpop.f32.mrb[0].mxu0
  %v681 = vpop.f32.mrb[0].mxu0
  %682 = vdwg.mxu0
  %683 = vmatprep.subr.bf16.mxu0 0
  %684 = vmatpush1.bf16.msra.mxu0 %v295
  %685 = vmatprep.subr.bf16.mxu0 0
  %686 = vmatpush1.bf16.msra.mxu0 %v296
  %687 = vmatprep.subr.bf16.mxu0 0
  %688 = vmatpush1.bf16.msra.mxu0 %v297
  %689 = vmatprep.subr.bf16.mxu0 0
  %690 = vmatpush1.bf16.msra.mxu0 %v298
  %691 = vmatprep.subr.bf16.mxu0 0
  %692 = vmatpush1.bf16.msra.mxu0 %v299
  %693 = vmatprep.subr.bf16.mxu0 0
  %694 = vmatpush1.bf16.msra.mxu0 %v300
  %695 = vmatprep.subr.bf16.mxu0 0
  %696 = vmatpush1.bf16.msra.mxu0 %v301
  %697 = vmatprep.subr.bf16.mxu0 0
  %698 = vmatpush1.bf16.msra.mxu0 %v302
  %699 = vmatprep.subr.bf16.mxu0 0
  %700 = vmatpush1.bf16.msra.mxu0 %v303
  %701 = vmatprep.subr.bf16.mxu0 0
  %702 = vmatpush1.bf16.msra.mxu0 %v304
  %703 = vmatprep.subr.bf16.mxu0 0
  %704 = vmatpush1.bf16.msra.mxu0 %v305
  %705 = vmatprep.subr.bf16.mxu0 0
  %706 = vmatpush1.bf16.msra.mxu0 %v306
  %707 = vmatprep.subr.bf16.mxu0 0
  %708 = vmatpush1.bf16.msra.mxu0 %v307
  %709 = vmatprep.subr.bf16.mxu0 0
  %710 = vmatpush1.bf16.msra.mxu0 %v308
  %711 = vmatprep.subr.bf16.mxu0 0
  %712 = vmatpush1.bf16.msra.mxu0 %v309
  %713 = vmatprep.subr.bf16.mxu0 0
  %714 = vmatpush1.bf16.msra.mxu0 %v310
  %715 = vmatprep.mubr.bf16.mxu0 %v636
  %716 = vmatmul.mubr.bf16.gmra.mrb[0].mxu0 %v635
  %v717 = vpop.f32.mrb[0].mxu0
  %v718 = vadd.f32 %v678, %v717
  %v719 = vpop.f32.mrb[0].mxu0
  %v720 = vpop.f32.mrb[0].mxu0
  %v721 = vpop.f32.mrb[0].mxu0
  %722 = vdwg.mxu0
  %723 = vmatprep.subr.bf16.mxu0 0
  %724 = vmatpush1.bf16.msra.mxu0 %v311
  %725 = vmatprep.subr.bf16.mxu0 0
  %726 = vmatpush1.bf16.msra.mxu0 %v312
  %727 = vmatprep.subr.bf16.mxu0 0
  %728 = vmatpush1.bf16.msra.mxu0 %v313
  %729 = vmatprep.subr.bf16.mxu0 0
  %730 = vmatpush1.bf16.msra.mxu0 %v314
  %731 = vmatprep.subr.bf16.mxu0 0
  %732 = vmatpush1.bf16.msra.mxu0 %v315
  %733 = vmatprep.subr.bf16.mxu0 0
  %734 = vmatpush1.bf16.msra.mxu0 %v316
  %735 = vmatprep.subr.bf16.mxu0 0
  %736 = vmatpush1.bf16.msra.mxu0 %v317
  %737 = vmatprep.subr.bf16.mxu0 0
  %738 = vmatpush1.bf16.msra.mxu0 %v318
  %739 = vmatprep.subr.bf16.mxu0 0
  %740 = vmatpush1.bf16.msra.mxu0 0
  %741 = vmatprep.subr.bf16.mxu0 0
  %742 = vmatpush1.bf16.msra.mxu0 0
  %743 = vmatprep.subr.bf16.mxu0 0
  %744 = vmatpush1.bf16.msra.mxu0 0
  %745 = vmatprep.subr.bf16.mxu0 0
  %746 = vmatpush1.bf16.msra.mxu0 0
  %747 = vmatprep.subr.bf16.mxu0 0
  %748 = vmatpush1.bf16.msra.mxu0 0
  %749 = vmatprep.subr.bf16.mxu0 0
  %750 = vmatpush1.bf16.msra.mxu0 0
  %751 = vmatprep.subr.bf16.mxu0 0
  %752 = vmatpush1.bf16.msra.mxu0 0
  %753 = vmatprep.subr.bf16.mxu0 0
  %754 = vmatpush1.bf16.msra.mxu0 0
  %755 = vmatprep.mubr.bf16.mxu0 0
  %756 = vmatmul.mubr.bf16.gmra.mrb[0].mxu0 %v637
  %v757 = vpop.f32.mrb[0].mxu0
  %v758 = vadd.f32 %v718, %v757
  %v759 = vpop.f32.mrb[0].mxu0
  %v760 = vpop.f32.mrb[0].mxu0
  %v761 = vpop.f32.mrb[0].mxu0
  %762 = vdwg.mxu0
  %s763 = scalar_lea.vmem %s0, 60
  %v764 = vld [vmem:[%s763] sm:$0xff]
  %v765 = vld [vmem:[%s763 + $0x8] sm:$0xff]
  %v766 = vld [vmem:[%s763 + $0x10] sm:$0xf]
  %v770 = vunpack.c.l.b16 %v764
  %v771 = vunpack.c.h.b16 %v764
  %v772 = vunpack.c.l.b16 %v765
  %v773 = vunpack.c.h.b16 %v765
  %v774 = vunpack.c.l.b16 %v766
  %v775 = vpack.c.b16 %v770, %v770
  %v776 = vpack.c.b16 %v771, %v771
  %v777 = vpack.c.b16 %v772, %v772
  %v778 = vpack.c.b16 %v773, %v773
  %v779 = vpack.c.b16 %v774, %v774
  %785 = vmatprep.subr.bf16.mxu0 0
  %786 = vmatpush1.bf16.msra.mxu0 %v279
  %787 = vmatprep.subr.bf16.mxu0 0
  %788 = vmatpush1.bf16.msra.mxu0 %v280
  %789 = vmatprep.subr.bf16.mxu0 0
  %790 = vmatpush1.bf16.msra.mxu0 %v281
  %791 = vmatprep.subr.bf16.mxu0 0
  %792 = vmatpush1.bf16.msra.mxu0 %v282
  %793 = vmatprep.subr.bf16.mxu0 0
  %794 = vmatpush1.bf16.msra.mxu0 %v283
  %795 = vmatprep.subr.bf16.mxu0 0
  %796 = vmatpush1.bf16.msra.mxu0 %v284
  %797 = vmatprep.subr.bf16.mxu0 0
  %798 = vmatpush1.bf16.msra.mxu0 %v285
  %799 = vmatprep.subr.bf16.mxu0 0
  %800 = vmatpush1.bf16.msra.mxu0 %v286
  %801 = vmatprep.subr.bf16.mxu0 0
  %802 = vmatpush1.bf16.msra.mxu0 %v287
  %803 = vmatprep.subr.bf16.mxu0 0
  %804 = vmatpush1.bf16.msra.mxu0 %v288
  %805 = vmatprep.subr.bf16.mxu0 0
  %806 = vmatpush1.bf16.msra.mxu0 %v289
  %807 = vmatprep.subr.bf16.mxu0 0
  %808 = vmatpush1.bf16.msra.mxu0 %v290
  %809 = vmatprep.subr.bf16.mxu0 0
  %810 = vmatpush1.bf16.msra.mxu0 %v291
  %811 = vmatprep.subr.bf16.mxu0 0
  %812 = vmatpush1.bf16.msra.mxu0 %v292
  %813 = vmatprep.subr.bf16.mxu0 0
  %814 = vmatpush1.bf16.msra.mxu0 %v293
  %815 = vmatprep.subr.bf16.mxu0 0
  %816 = vmatpush1.bf16.msra.mxu0 %v294
  %817 = vmatprep.mubr.bf16.mxu0 %v776
  %818 = vmatmul.mubr.bf16.gmra.mrb[0].mxu0 %v775
  %v819 = vpop.f32.mrb[0].mxu0
  %v820 = vadd.f32 0.0, %v819
  %v821 = vpop.f32.mrb[0].mxu0
  %v822 = vpop.f32.mrb[0].mxu0
  %v823 = vpop.f32.mrb[0].mxu0
  %824 = vdwg.mxu0
  %825 = vmatprep.subr.bf16.mxu0 0
  %826 = vmatpush1.bf16.msra.mxu0 %v295
  %827 = vmatprep.subr.bf16.mxu0 0
  %828 = vmatpush1.bf16.msra.mxu0 %v296
  %829 = vmatprep.subr.bf16.mxu0 0
  %830 = vmatpush1.bf16.msra.mxu0 %v297
  %831 = vmatprep.subr.bf16.mxu0 0
  %832 = vmatpush1.bf16.msra.mxu0 %v298
  %833 = vmatprep.subr.bf16.mxu0 0
  %834 = vmatpush1.bf16.msra.mxu0 %v299
  %835 = vmatprep.subr.bf16.mxu0 0
  %836 = vmatpush1.bf16.msra.mxu0 %v300
  %837 = vmatprep.subr.bf16.mxu0 0
  %838 = vmatpush1.bf16.msra.mxu0 %v301
  %839 = vmatprep.subr.bf16.mxu0 0
  %840 = vmatpush1.bf16.msra.mxu0 %v302
  %841 = vmatprep.subr.bf16.mxu0 0
  %842 = vmatpush1.bf16.msra.mxu0 %v303
  %843 = vmatprep.subr.bf16.mxu0 0
  %844 = vmatpush1.bf16.msra.mxu0 %v304
  %845 = vmatprep.subr.bf16.mxu0 0
  %846 = vmatpush1.bf16.msra.mxu0 %v305
  %847 = vmatprep.subr.bf16.mxu0 0
  %848 = vmatpush1.bf16.msra.mxu0 %v306
  %849 = vmatprep.subr.bf16.mxu0 0
  %850 = vmatpush1.bf16.msra.mxu0 %v307
  %851 = vmatprep.subr.bf16.mxu0 0
  %852 = vmatpush1.bf16.msra.mxu0 %v308
  %853 = vmatprep.subr.bf16.mxu0 0
  %854 = vmatpush1.bf16.msra.mxu0 %v309
  %855 = vmatprep.subr.bf16.mxu0 0
  %856 = vmatpush1.bf16.msra.mxu0 %v310
  %857 = vmatprep.mubr.bf16.mxu0 %v778
  %858 = vmatmul.mubr.bf16.gmra.mrb[0].mxu0 %v777
  %v859 = vpop.f32.mrb[0].mxu0
  %v860 = vadd.f32 %v820, %v859
  %v861 = vpop.f32.mrb[0].mxu0
  %v862 = vpop.f32.mrb[0].mxu0
  %v863 = vpop.f32.mrb[0].mxu0
  %864 = vdwg.mxu0
  %865 = vmatprep.subr.bf16.mxu0 0
  %866 = vmatpush1.bf16.msra.mxu0 %v311
  %867 = vmatprep.subr.bf16.mxu0 0
  %868 = vmatpush1.bf16.msra.mxu0 %v312
  %869 = vmatprep.subr.bf16.mxu0 0
  %870 = vmatpush1.bf16.msra.mxu0 %v313
  %871 = vmatprep.subr.bf16.mxu0 0
  %872 = vmatpush1.bf16.msra.mxu0 %v314
  %873 = vmatprep.subr.bf16.mxu0 0
  %874 = vmatpush1.bf16.msra.mxu0 %v315
  %875 = vmatprep.subr.bf16.mxu0 0
  %876 = vmatpush1.bf16.msra.mxu0 %v316
  %877 = vmatprep.subr.bf16.mxu0 0
  %878 = vmatpush1.bf16.msra.mxu0 %v317
  %879 = vmatprep.subr.bf16.mxu0 0
  %880 = vmatpush1.bf16.msra.mxu0 %v318
  %881 = vmatprep.subr.bf16.mxu0 0
  %882 = vmatpush1.bf16.msra.mxu0 0
  %883 = vmatprep.subr.bf16.mxu0 0
  %884 = vmatpush1.bf16.msra.mxu0 0
  %885 = vmatprep.subr.bf16.mxu0 0
  %886 = vmatpush1.bf16.msra.mxu0 0
  %887 = vmatprep.subr.bf16.mxu0 0
  %888 = vmatpush1.bf16.msra.mxu0 0
  %889 = vmatprep.subr.bf16.mxu0 0
  %890 = vmatpush1.bf16.msra.mxu0 0
  %891 = vmatprep.subr.bf16.mxu0 0
  %892 = vmatpush1.bf16.msra.mxu0 0
  %893 = vmatprep.subr.bf16.mxu0 0
  %894 = vmatpush1.bf16.msra.mxu0 0
  %895 = vmatprep.subr.bf16.mxu0 0
  %896 = vmatpush1.bf16.msra.mxu0 0
  %897 = vmatprep.mubr.bf16.mxu0 0
  %898 = vmatmul.mubr.bf16.gmra.mrb[0].mxu0 %v779
  %v899 = vpop.f32.mrb[0].mxu0
  %v900 = vadd.f32 %v860, %v899
  %v901 = vpop.f32.mrb[0].mxu0
  %v902 = vpop.f32.mrb[0].mxu0
  %v903 = vpop.f32.mrb[0].mxu0
  %904 = vdwg.mxu0
  %v905 = vrot.slane %v474, 4
  %v906 = vadd.f32 %v474, %v905
  %v907 = vrot.slane %v906, 2
  %v908 = vadd.f32 %v906, %v907
  %v909 = vrot.slane %v908, 1
  %v910 = vadd.f32 %v908, %v909
  %v911 = vadd.f32 %v910, 0.0
  %v912 = vrot.slane %v616, 4
  %v913 = vadd.f32 %v616, %v912
  %v914 = vrot.slane %v913, 2
  %v915 = vadd.f32 %v913, %v914
  %v916 = vrot.slane %v915, 1
  %v917 = vadd.f32 %v915, %v916
  %v918 = vadd.f32 %v911, %v917
  %v919 = vrot.slane %v758, 4
  %v920 = vadd.f32 %v758, %v919
  %v921 = vrot.slane %v920, 2
  %v922 = vadd.f32 %v920, %v921
  %v923 = vrot.slane %v922, 1
  %v924 = vadd.f32 %v922, %v923
  %v925 = vadd.f32 %v918, %v924
  %v926 = vrot.slane %v900, 4
  %v927 = vadd.f32 %v900, %v926
  %v928 = vrot.slane %v927, 2
  %v929 = vadd.f32 %v927, %v928
  %v930 = vrot.slane %v929, 1
  %v931 = vadd.f32 %v929, %v930
  %v932 = vadd.f32 %v925, %v931
  %v933 = vmul.f32 %v474, %v474
  %v934 = vrot.slane %v933, 4
  %v935 = vadd.f32 %v933, %v934
  %v936 = vrot.slane %v935, 2
  %v937 = vadd.f32 %v935, %v936
  %v938 = vrot.slane %v937, 1
  %v939 = vadd.f32 %v937, %v938
  %v940 = vadd.f32 %v939, 0.0
  %v941 = vmul.f32 %v616, %v616
  %v942 = vrot.slane %v941, 4
  %v943 = vadd.f32 %v941, %v942
  %v944 = vrot.slane %v943, 2
  %v945 = vadd.f32 %v943, %v944
  %v946 = vrot.slane %v945, 1
  %v947 = vadd.f32 %v945, %v946
  %v948 = vadd.f32 %v940, %v947
  %v949 = vmul.f32 %v758, %v758
  %v950 = vrot.slane %v949, 4
  %v951 = vadd.f32 %v949, %v950
  %v952 = vrot.slane %v951, 2
  %v953 = vadd.f32 %v951, %v952
  %v954 = vrot.slane %v953, 1
  %v955 = vadd.f32 %v953, %v954
  %v956 = vadd.f32 %v948, %v955
  %v957 = vmul.f32 %v900, %v900
  %v958 = vrot.slane %v957, 4
  %v959 = vadd.f32 %v957, %v958
  %v960 = vrot.slane %v959, 2
  %v961 = vadd.f32 %v959, %v960
  %v962 = vrot.slane %v961, 1
  %v963 = vadd.f32 %v961, %v962
  %v964 = vadd.f32 %v956, %v963
  %v965 = vmul.f32 %v932, 0.03125
  %v966 = vmul.f32 %v964, 0.03125
  %v967 = vmul.f32 %v965, %v965
  %v968 = vsub.f32 %v966, %v967
  %v969 = vmax.f32 %v968, 0.0
  %v970 = vadd.f32 %v969, 1e-05
  %v971 = vrsqrt.pop %v970
  %v972 = vld [vmem:[%s2] sm:$0x1]
  %v973 = vmul.f32 %v972, %v971
  %v974 = vld [vmem:[%s3] sm:$0x1]
  %v975 = vmul.f32 %v965, %v973
  %v976 = vsub.f32 %v974, %v975
  %v978 = vlaneseq
  %v979 = vshrl.u32 %v978, 7
  %v980 = vsub.s32 0, %v979
  %v981 = vrot.slane %v973, %v980
  %v983 = vmul.f32 %v474, %v981
  %v985 = vlaneseq
  %v986 = vshrl.u32 %v985, 7
  %v987 = vsub.s32 0, %v986
  %v988 = vrot.slane %v976, %v987
  %v990 = vadd.f32 %v983, %v988
  %v991 = vmax.f32 %v990, 0.0
  %v992 = vmul.f32 %v616, %v981
  %v993 = vadd.f32 %v992, %v988
  %v994 = vmax.f32 %v993, 0.0
  %v995 = vmul.f32 %v758, %v981
  %v996 = vadd.f32 %v995, %v988
  %v997 = vmax.f32 %v996, 0.0
  %v998 = vmul.f32 %v900, %v981
  %v999 = vadd.f32 %v998, %v988
  %v1000 = vmax.f32 %v999, 0.0
  %v1001 = vmax.f32 %v991, %v994
  %v1002 = vmax.f32 %v997, %v1000
  %v1003 = vmax.f32 %v1001, %v1002
  %1004 = vst [vmem:[%s4] sm:$0xff] %v1003
  // Predicated region
  $region18: #{cl_forward.6} parent=0 // pred_check
    _
  $region19: #{cl_forward.6} parent=0 // pred_check_branch
    %1006 = sbr.rel (0) target = $region21
  $region20: #{cl_forward.6} parent=0 // pred_region
    _
  $region21: #{cl_forward.6} parent=0 // pred_fallthru
    _
  // Predicated region
  $region22: #{cl_forward.6} parent=0 // pred_check
    _
  $region23: #{cl_forward.6} parent=0 // pred_check_branch
    %1008 = sbr.rel (0) target = $region25
  $region24: #{cl_forward.6} parent=0 // pred_region
    _
  $region25: #{cl_forward.6} parent=0 // pred_fallthru
    _

// kernel: cl_forward.7
$region0: #{cl_forward.7}
  #allocation0 [shape = 'u32[]', space=smem, size = 0x4, offset = 0x4, fixed_abs, tag = 'smem constant byte address 0x4 - core index']
  #allocation1 [shape = 'u32[144,128]{1,0:T(1,128)}', space=vmem, size = 0x12000, scoped, tag = 'internal scratch']
  %s0 = inlined_call_operand.vmem [shape: bf16[4,2,1152], index: 0, kind: input, shape index: {}]
  %s1 = inlined_call_operand.vmem [shape: bf16[1152,256], index: 1, kind: input, shape index: {}]
  %s2 = inlined_call_operand.vmem [shape: f32[1,256], index: 2, kind: input, shape index: {}]
  %s3 = inlined_call_operand.vmem [shape: f32[1,256], index: 3, kind: input, shape index: {}]
  %s4 = inlined_call_operand.vmem [shape: f32[256,32], index: 4, kind: input, shape index: {}]
  %s5 = inlined_call_operand.vmem [shape: f32[1,32], index: 5, kind: input, shape index: {}]
  %s6 = inlined_call_operand.vmem [shape: f32[32,32], index: 6, kind: input, shape index: {}]
  %s7 = inlined_call_operand.vmem [shape: f32[32,32], index: 7, kind: input, shape index: {}]
  %s8 = inlined_call_operand.vmem [shape: f32[2,32], index: 8, kind: output, shape index: {0}]
  %s9 = inlined_call_operand.vmem [shape: f32[2,32], index: 9, kind: output, shape index: {1}]
  %10 = xla_tuple %s8, %s9
  %s11 = sld [smem:[#allocation0]]
  $region50: #{cl_forward.7} parent=0
    _
  %s13 = ssub.s32 1, %s11
  %s14 = scalar_select 0, %s13, %s11
  // Predicated region
  $region2: #{cl_forward.7} parent=0 // pred_check
    _
  $region3: #{cl_forward.7} parent=0 // pred_check_branch
    %16 = sbr.rel (0) target = $region5
  $region4: #{cl_forward.7} parent=0 // pred_region
    _
  $region5: #{cl_forward.7} parent=0 // pred_fallthru
    _
  // Predicated region
  $region6: #{cl_forward.7} parent=0 // pred_check
    _
  $region7: #{cl_forward.7} parent=0 // pred_check_branch
    %18 = sbr.rel (0) target = $region9
  $region8: #{cl_forward.7} parent=0 // pred_region
    _
  $region9: #{cl_forward.7} parent=0 // pred_fallthru
    _
  // Predicated region
  $region10: #{cl_forward.7} parent=0 // pred_check
    _
  $region11: #{cl_forward.7} parent=0 // pred_check_branch
    %20 = sbr.rel (0) target = $region13
  $region12: #{cl_forward.7} parent=0 // pred_region
    _
  $region13: #{cl_forward.7} parent=0 // pred_fallthru
    _
  // Predicated region
  $region14: #{cl_forward.7} parent=0 // pred_check
    _
  $region15: #{cl_forward.7} parent=0 // pred_check_branch
    %22 = sbr.rel (0) target = $region17
  $region16: #{cl_forward.7} parent=0 // pred_region
    _
  $region17: #{cl_forward.7} parent=0 // pred_fallthru
    _
  // Predicated region
  $region18: #{cl_forward.7} parent=0 // pred_check
    _
  $region19: #{cl_forward.7} parent=0 // pred_check_branch
    %24 = sbr.rel (0) target = $region21
  $region20: #{cl_forward.7} parent=0 // pred_region
    _
  $region21: #{cl_forward.7} parent=0 // pred_fallthru
    _
  // Predicated region
  $region22: #{cl_forward.7} parent=0 // pred_check
    _
  $region23: #{cl_forward.7} parent=0 // pred_check_branch
    %26 = sbr.rel (0) target = $region25
  $region24: #{cl_forward.7} parent=0 // pred_region
    _
  $region25: #{cl_forward.7} parent=0 // pred_fallthru
    _
  // Predicated region
  $region26: #{cl_forward.7} parent=0 // pred_check
    _
  $region27: #{cl_forward.7} parent=0 // pred_check_branch
    %28 = sbr.rel (0) target = $region29
  $region28: #{cl_forward.7} parent=0 // pred_region
    _
  $region29: #{cl_forward.7} parent=0 // pred_fallthru
    _
  // Predicated region
  $region30: #{cl_forward.7} parent=0 // pred_check
    _
  $region31: #{cl_forward.7} parent=0 // pred_check_branch
    %30 = sbr.rel (0) target = $region33
  $region32: #{cl_forward.7} parent=0 // pred_region
    _
  $region33: #{cl_forward.7} parent=0 // pred_fallthru
    _
  %v32 = vld [vmem:[%s1] sm:$0xff]
  %v33 = vld [vmem:[%s1 + $0x8] sm:$0xff]
  %v34 = vld [vmem:[%s1 + $0x10] sm:$0xff]
  %v35 = vld [vmem:[%s1 + $0x18] sm:$0xff]
  %v36 = vld [vmem:[%s1 + $0x20] sm:$0xff]
  %v37 = vld [vmem:[%s1 + $0x28] sm:$0xff]
  %v38 = vld [vmem:[%s1 + $0x30] sm:$0xff]
  %v39 = vld [vmem:[%s1 + $0x38] sm:$0xff]
  %v40 = vld [vmem:[%s1 + $0x40] sm:$0xff]
  %v41 = vld [vmem:[%s1 + $0x48] sm:$0xff]
  %v42 = vld [vmem:[%s1 + $0x50] sm:$0xff]
  %v43 = vld [vmem:[%s1 + $0x58] sm:$0xff]
  %v44 = vld [vmem:[%s1 + $0x60] sm:$0xff]
  %v45 = vld [vmem:[%s1 + $0x68] sm:$0xff]
  %v46 = vld [vmem:[%s1 + $0x70] sm:$0xff]
  %v47 = vld [vmem:[%s1 + $0x78] sm:$0xff]
  %v48 = vld [vmem:[%s1 + $0x80] sm:$0xff]
  %v49 = vld [vmem:[%s1 + $0x88] sm:$0xff]
  %v50 = vld [vmem:[%s1 + $0x90] sm:$0xff]
  %v51 = vld [vmem:[%s1 + $0x98] sm:$0xff]
  %v52 = vld [vmem:[%s1 + $0xa0] sm:$0xff]
  %v53 = vld [vmem:[%s1 + $0xa8] sm:$0xff]
  %v54 = vld [vmem:[%s1 + $0xb0] sm:$0xff]
  %v55 = vld [vmem:[%s1 + $0xb8] sm:$0xff]
  %v56 = vld [vmem:[%s1 + $0xc0] sm:$0xff]
  %v57 = vld [vmem:[%s1 + $0xc8] sm:$0xff]
  %v58 = vld [vmem:[%s1 + $0xd0] sm:$0xff]
  %v59 = vld [vmem:[%s1 + $0xd8] sm:$0xff]
  %v60 = vld [vmem:[%s1 + $0xe0] sm:$0xff]
  %v61 = vld [vmem:[%s1 + $0xe8] sm:$0xff]
  %v62 = vld [vmem:[%s1 + $0xf0] sm:$0xff]
  %v63 = vld [vmem:[%s1 + $0xf8] sm:$0xff]
  %v64 = vld [vmem:[%s1 + $0x100] sm:$0xff]
  %v65 = vld [vmem:[%s1 + $0x108] sm:$0xff]
  %v66 = vld [vmem:[%s1 + $0x110] sm:$0xff]
  %v67 = vld [vmem:[%s1 + $0x118] sm:$0xff]
  %v68 = vld [vmem:[%s1 + $0x120] sm:$0xff]
  %v69 = vld [vmem:[%s1 + $0x128] sm:$0xff]
  %v70 = vld [vmem:[%s1 + $0x130] sm:$0xff]
  %v71 = vld [vmem:[%s1 + $0x138] sm:$0xff]
  %v72 = vld [vmem:[%s1 + $0x140] sm:$0xff]
  %v73 = vld [vmem:[%s1 + $0x148] sm:$0xff]
  %v74 = vld [vmem:[%s1 + $0x150] sm:$0xff]
  %v75 = vld [vmem:[%s1 + $0x158] sm:$0xff]
  %v76 = vld [vmem:[%s1 + $0x160] sm:$0xff]
  %v77 = vld [vmem:[%s1 + $0x168] sm:$0xff]
  %v78 = vld [vmem:[%s1 + $0x170] sm:$0xff]
  %v79 = vld [vmem:[%s1 + $0x178] sm:$0xff]
  %v80 = vld [vmem:[%s1 + $0x180] sm:$0xff]
  %v81 = vld [vmem:[%s1 + $0x188] sm:$0xff]
  %v82 = vld [vmem:[%s1 + $0x190] sm:$0xff]
  %v83 = vld [vmem:[%s1 + $0x198] sm:$0xff]
  %v84 = vld [vmem:[%s1 + $0x1a0] sm:$0xff]
  %v85 = vld [vmem:[%s1 + $0x1a8] sm:$0xff]
  %v86 = vld [vmem:[%s1 + $0x1b0] sm:$0xff]
  %v87 = vld [vmem:[%s1 + $0x1b8] sm:$0xff]
  %v88 = vld [vmem:[%s1 + $0x1c0] sm:$0xff]
  %v89 = vld [vmem:[%s1 + $0x1c8] sm:$0xff]
  %v90 = vld [vmem:[%s1 + $0x1d0] sm:$0xff]
  %v91 = vld [vmem:[%s1 + $0x1d8] sm:$0xff]
  %v92 = vld [vmem:[%s1 + $0x1e0] sm:$0xff]
  %v93 = vld [vmem:[%s1 + $0x1e8] sm:$0xff]
  %v94 = vld [vmem:[%s1 + $0x1f0] sm:$0xff]
  %v95 = vld [vmem:[%s1 + $0x1f8] sm:$0xff]
  %v96 = vld [vmem:[%s1 + $0x200] sm:$0xff]
  %v97 = vld [vmem:[%s1 + $0x208] sm:$0xff]
  %v98 = vld [vmem:[%s1 + $0x210] sm:$0xff]
  %v99 = vld [vmem:[%s1 + $0x218] sm:$0xff]
  %v100 = vld [vmem:[%s1 + $0x220] sm:$0xff]
  %v101 = vld [vmem:[%s1 + $0x228] sm:$0xff]
  %v102 = vld [vmem:[%s1 + $0x230] sm:$0xff]
  %v103 = vld [vmem:[%s1 + $0x238] sm:$0xff]
  %v104 = vld [vmem:[%s1 + $0x240] sm:$0xff]
  %v105 = vld [vmem:[%s1 + $0x248] sm:$0xff]
  %v106 = vld [vmem:[%s1 + $0x250] sm:$0xff]
  %v107 = vld [vmem:[%s1 + $0x258] sm:$0xff]
  %v108 = vld [vmem:[%s1 + $0x260] sm:$0xff]
  %v109 = vld [vmem:[%s1 + $0x268] sm:$0xff]
  %v110 = vld [vmem:[%s1 + $0x270] sm:$0xff]
  %v111 = vld [vmem:[%s1 + $0x278] sm:$0xff]
  %v112 = vld [vmem:[%s1 + $0x280] sm:$0xff]
  %v113 = vld [vmem:[%s1 + $0x288] sm:$0xff]
  %v114 = vld [vmem:[%s1 + $0x290] sm:$0xff]
  %v115 = vld [vmem:[%s1 + $0x298] sm:$0xff]
  %v116 = vld [vmem:[%s1 + $0x2a0] sm:$0xff]
  %v117 = vld [vmem:[%s1 + $0x2a8] sm:$0xff]
  %v118 = vld [vmem:[%s1 + $0x2b0] sm:$0xff]
  %v119 = vld [vmem:[%s1 + $0x2b8] sm:$0xff]
  %v120 = vld [vmem:[%s1 + $0x2c0] sm:$0xff]
  %v121 = vld [vmem:[%s1 + $0x2c8] sm:$0xff]
  %v122 = vld [vmem:[%s1 + $0x2d0] sm:$0xff]
  %v123 = vld [vmem:[%s1 + $0x2d8] sm:$0xff]
  %v124 = vld [vmem:[%s1 + $0x2e0] sm:$0xff]
  %v125 = vld [vmem:[%s1 + $0x2e8] sm:$0xff]
  %v126 = vld [vmem:[%s1 + $0x2f0] sm:$0xff]
  %v127 = vld [vmem:[%s1 + $0x2f8] sm:$0xff]
  %v128 = vld [vmem:[%s1 + $0x300] sm:$0xff]
  %v129 = vld [vmem:[%s1 + $0x308] sm:$0xff]
  %v130 = vld [vmem:[%s1 + $0x310] sm:$0xff]
  %v131 = vld [vmem:[%s1 + $0x318] sm:$0xff]
  %v132 = vld [vmem:[%s1 + $0x320] sm:$0xff]
  %v133 = vld [vmem:[%s1 + $0x328] sm:$0xff]
  %v134 = vld [vmem:[%s1 + $0x330] sm:$0xff]
  %v135 = vld [vmem:[%s1 + $0x338] sm:$0xff]
  %v136 = vld [vmem:[%s1 + $0x340] sm:$0xff]
  %v137 = vld [vmem:[%s1 + $0x348] sm:$0xff]
  %v138 = vld [vmem:[%s1 + $0x350] sm:$0xff]
  %v139 = vld [vmem:[%s1 + $0x358] sm:$0xff]
  %v140 = vld [vmem:[%s1 + $0x360] sm:$0xff]
  %v141 = vld [vmem:[%s1 + $0x368] sm:$0xff]
  %v142 = vld [vmem:[%s1 + $0x370] sm:$0xff]
  %v143 = vld [vmem:[%s1 + $0x378] sm:$0xff]
  %v144 = vld [vmem:[%s1 + $0x380] sm:$0xff]
  %v145 = vld [vmem:[%s1 + $0x388] sm:$0xff]
  %v146 = vld [vmem:[%s1 + $0x390] sm:$0xff]
  %v147 = vld [vmem:[%s1 + $0x398] sm:$0xff]
  %v148 = vld [vmem:[%s1 + $0x3a0] sm:$0xff]
  %v149 = vld [vmem:[%s1 + $0x3a8] sm:$0xff]
  %v150 = vld [vmem:[%s1 + $0x3b0] sm:$0xff]
  %v151 = vld [vmem:[%s1 + $0x3b8] sm:$0xff]
  %v152 = vld [vmem:[%s1 + $0x3c0] sm:$0xff]
  %v153 = vld [vmem:[%s1 + $0x3c8] sm:$0xff]
  %v154 = vld [vmem:[%s1 + $0x3d0] sm:$0xff]
  %v155 = vld [vmem:[%s1 + $0x3d8] sm:$0xff]
  %v156 = vld [vmem:[%s1 + $0x3e0] sm:$0xff]
  %v157 = vld [vmem:[%s1 + $0x3e8] sm:$0xff]
  %v158 = vld [vmem:[%s1 + $0x3f0] sm:$0xff]
  %v159 = vld [vmem:[%s1 + $0x3f8] sm:$0xff]
  %v160 = vld [vmem:[%s1 + $0x400] sm:$0xff]
  %v161 = vld [vmem:[%s1 + $0x408] sm:$0xff]
  %v162 = vld [vmem:[%s1 + $0x410] sm:$0xff]
  %v163 = vld [vmem:[%s1 + $0x418] sm:$0xff]
  %v164 = vld [vmem:[%s1 + $0x420] sm:$0xff]
  %v165 = vld [vmem:[%s1 + $0x428] sm:$0xff]
  %v166 = vld [vmem:[%s1 + $0x430] sm:$0xff]
  %v167 = vld [vmem:[%s1 + $0x438] sm:$0xff]
  %v168 = vld [vmem:[%s1 + $0x440] sm:$0xff]
  %v169 = vld [vmem:[%s1 + $0x448] sm:$0xff]
  %v170 = vld [vmem:[%s1 + $0x450] sm:$0xff]
  %v171 = vld [vmem:[%s1 + $0x458] sm:$0xff]
  %v172 = vld [vmem:[%s1 + $0x460] sm:$0xff]
  %v173 = vld [vmem:[%s1 + $0x468] sm:$0xff]
  %v174 = vld [vmem:[%s1 + $0x470] sm:$0xff]
  %v175 = vld [vmem:[%s1 + $0x478] sm:$0xff]
  %v176 = vld [vmem:[%s0] sm:$0xff]
  %v177 = vld [vmem:[%s0 + $0x8] sm:$0x1]
  %v180 = vcombine.high %v176, %v176
  %v182 = vunpack.c.l.s4 1966171168
  %v183 = vunpack.c.0.s8 %v182
  %v184 = vlaneseq
  %v185 = vshrl.u32 %v184, 7
  %v186 = vsub.s32 %v183, %v185
  %v187 = vrot.slane %v176, %v186
  %v189 = vunpack.c.l.s4 1966171168
  %v190 = vunpack.c.0.s8 %v189
  %v191 = vlaneseq
  %v192 = vshrl.u32 %v191, 7
  %v193 = vsub.s32 %v190, %v192
  %v194 = vrot.slane %v180, %v193
  %v195 = vcombine.high %v187, %v187
  %v196 = vcombine.high %v194, %v194
  %v198 = vunpack.c.l.s4 1966171168
  %v199 = vunpack.c.0.s8 %v198
  %v200 = vlaneseq
  %v201 = vshrl.u32 %v200, 7
  %v202 = vsub.s32 %v199, %v201
  %v203 = vrot.slane %v187, %v202
  %v205 = vunpack.c.l.s4 1966171168
  %v206 = vunpack.c.0.s8 %v205
  %v207 = vlaneseq
  %v208 = vshrl.u32 %v207, 7
  %v209 = vsub.s32 %v206, %v208
  %v210 = vrot.slane %v194, %v209
  %v212 = vunpack.c.l.s4 1966171168
  %v213 = vunpack.c.0.s8 %v212
  %v214 = vlaneseq
  %v215 = vshrl.u32 %v214, 7
  %v216 = vsub.s32 %v213, %v215
  %v217 = vrot.slane %v195, %v216
  %v219 = vunpack.c.l.s4 1966171168
  %v220 = vunpack.c.0.s8 %v219
  %v221 = vlaneseq
  %v222 = vshrl.u32 %v221, 7
  %v223 = vsub.s32 %v220, %v222
  %v224 = vrot.slane %v196, %v223
  %v225 = vcombine.high %v203, %v203
  %v226 = vcombine.high %v210, %v210
  %v227 = vcombine.high %v217, %v217
  %v228 = vcombine.high %v224, %v224
  %v230 = vunpack.c.l.s4 1966171168
  %v231 = vunpack.c.0.s8 %v230
  %v232 = vlaneseq
  %v233 = vshrl.u32 %v232, 7
  %v234 = vsub.s32 %v231, %v233
  %v235 = vrot.slane %v177, %v234
  %v237 = vunpack.c.l.s4 1966171168
  %v238 = vunpack.c.0.s8 %v237
  %v239 = vlaneseq
  %v240 = vshrl.u32 %v239, 7
  %v241 = vsub.s32 %v238, %v240
  %v242 = vrot.slane %v235, %v241
  %v396 = vunpack.c.l.b16 %v32
  %v397 = vunpack.c.h.b16 %v32
  %v398 = vunpack.c.l.b16 %v33
  %v399 = vunpack.c.h.b16 %v33
  %v400 = vunpack.c.l.b16 %v34
  %v401 = vunpack.c.h.b16 %v34
  %v402 = vunpack.c.l.b16 %v35
  %v403 = vunpack.c.h.b16 %v35
  %v404 = vunpack.c.l.b16 %v36
  %v405 = vunpack.c.h.b16 %v36
  %v406 = vunpack.c.l.b16 %v37
  %v407 = vunpack.c.h.b16 %v37
  %v408 = vunpack.c.l.b16 %v38
  %v409 = vunpack.c.h.b16 %v38
  %v410 = vunpack.c.l.b16 %v39
  %v411 = vunpack.c.h.b16 %v39
  %v412 = vunpack.c.l.b16 %v40
  %v413 = vunpack.c.h.b16 %v40
  %v414 = vunpack.c.l.b16 %v41
  %v415 = vunpack.c.h.b16 %v41
  %v416 = vunpack.c.l.b16 %v42
  %v417 = vunpack.c.h.b16 %v42
  %v418 = vunpack.c.l.b16 %v43
  %v419 = vunpack.c.h.b16 %v43
  %v420 = vunpack.c.l.b16 %v44
  %v421 = vunpack.c.h.b16 %v44
  %v422 = vunpack.c.l.b16 %v45
  %v423 = vunpack.c.h.b16 %v45
  %v424 = vunpack.c.l.b16 %v46
  %v425 = vunpack.c.h.b16 %v46
  %v426 = vunpack.c.l.b16 %v47
  %v427 = vunpack.c.h.b16 %v47
  %v428 = vunpack.c.l.b16 %v48
  %v429 = vunpack.c.h.b16 %v48
  %v430 = vunpack.c.l.b16 %v49
  %v431 = vunpack.c.h.b16 %v49
  %v432 = vunpack.c.l.b16 %v50
  %v433 = vunpack.c.h.b16 %v50
  %v434 = vunpack.c.l.b16 %v51
  %v435 = vunpack.c.h.b16 %v51
  %v436 = vunpack.c.l.b16 %v52
  %v437 = vunpack.c.h.b16 %v52
  %v438 = vunpack.c.l.b16 %v53
  %v439 = vunpack.c.h.b16 %v53
  %v440 = vunpack.c.l.b16 %v54
  %v441 = vunpack.c.h.b16 %v54
  %v442 = vunpack.c.l.b16 %v55
  %v443 = vunpack.c.h.b16 %v55
  %v444 = vunpack.c.l.b16 %v56
  %v445 = vunpack.c.h.b16 %v56
  %v446 = vunpack.c.l.b16 %v57
  %v447 = vunpack.c.h.b16 %v57
  %v448 = vunpack.c.l.b16 %v58
  %v449 = vunpack.c.h.b16 %v58
  %v450 = vunpack.c.l.b16 %v59
  %v451 = vunpack.c.h.b16 %v59
  %v452 = vunpack.c.l.b16 %v60
  %v453 = vunpack.c.h.b16 %v60
  %v454 = vunpack.c.l.b16 %v61
  %v455 = vunpack.c.h.b16 %v61
  %v456 = vunpack.c.l.b16 %v62
  %v457 = vunpack.c.h.b16 %v62
  %v458 = vunpack.c.l.b16 %v63
  %v459 = vunpack.c.h.b16 %v63
  %v460 = vunpack.c.l.b16 %v64
  %v461 = vunpack.c.h.b16 %v64
  %v462 = vunpack.c.l.b16 %v65
  %v463 = vunpack.c.h.b16 %v65
  %v464 = vunpack.c.l.b16 %v66
  %v465 = vunpack.c.h.b16 %v66
  %v466 = vunpack.c.l.b16 %v67
  %v467 = vunpack.c.h.b16 %v67
  %v468 = vunpack.c.l.b16 %v68
  %v469 = vunpack.c.h.b16 %v68
  %v470 = vunpack.c.l.b16 %v69
  %v471 = vunpack.c.h.b16 %v69
  %v472 = vunpack.c.l.b16 %v70
  %v473 = vunpack.c.h.b16 %v70
  %v474 = vunpack.c.l.b16 %v71
  %v475 = vunpack.c.h.b16 %v71
  %v476 = vunpack.c.l.b16 %v72
  %v477 = vunpack.c.h.b16 %v72
  %v478 = vunpack.c.l.b16 %v73
  %v479 = vunpack.c.h.b16 %v73
  %v480 = vunpack.c.l.b16 %v74
  %v481 = vunpack.c.h.b16 %v74
  %v482 = vunpack.c.l.b16 %v75
  %v483 = vunpack.c.h.b16 %v75
  %v484 = vunpack.c.l.b16 %v76
  %v485 = vunpack.c.h.b16 %v76
  %v486 = vunpack.c.l.b16 %v77
  %v487 = vunpack.c.h.b16 %v77
  %v488 = vunpack.c.l.b16 %v78
  %v489 = vunpack.c.h.b16 %v78
  %v490 = vunpack.c.l.b16 %v79
  %v491 = vunpack.c.h.b16 %v79
  %v492 = vunpack.c.l.b16 %v80
  %v493 = vunpack.c.h.b16 %v80
  %v494 = vunpack.c.l.b16 %v81
  %v495 = vunpack.c.h.b16 %v81
  %v496 = vunpack.c.l.b16 %v82
  %v497 = vunpack.c.h.b16 %v82
  %v498 = vunpack.c.l.b16 %v83
  %v499 = vunpack.c.h.b16 %v83
  %v500 = vunpack.c.l.b16 %v84
  %v501 = vunpack.c.h.b16 %v84
  %v502 = vunpack.c.l.b16 %v85
  %v503 = vunpack.c.h.b16 %v85
  %v504 = vunpack.c.l.b16 %v86
  %v505 = vunpack.c.h.b16 %v86
  %v506 = vunpack.c.l.b16 %v87
  %v507 = vunpack.c.h.b16 %v87
  %v508 = vunpack.c.l.b16 %v88
  %v509 = vunpack.c.h.b16 %v88
  %v510 = vunpack.c.l.b16 %v89
  %v511 = vunpack.c.h.b16 %v89
  %v512 = vunpack.c.l.b16 %v90
  %v513 = vunpack.c.h.b16 %v90
  %v514 = vunpack.c.l.b16 %v91
  %v515 = vunpack.c.h.b16 %v91
  %v516 = vunpack.c.l.b16 %v92
  %v517 = vunpack.c.h.b16 %v92
  %v518 = vunpack.c.l.b16 %v93
  %v519 = vunpack.c.h.b16 %v93
  %v520 = vunpack.c.l.b16 %v94
  %v521 = vunpack.c.h.b16 %v94
  %v522 = vunpack.c.l.b16 %v95
  %v523 = vunpack.c.h.b16 %v95
  %v524 = vunpack.c.l.b16 %v96
  %v525 = vunpack.c.h.b16 %v96
  %v526 = vunpack.c.l.b16 %v97
  %v527 = vunpack.c.h.b16 %v97
  %v528 = vunpack.c.l.b16 %v98
  %v529 = vunpack.c.h.b16 %v98
  %v530 = vunpack.c.l.b16 %v99
  %v531 = vunpack.c.h.b16 %v99
  %v532 = vunpack.c.l.b16 %v100
  %v533 = vunpack.c.h.b16 %v100
  %v534 = vunpack.c.l.b16 %v101
  %v535 = vunpack.c.h.b16 %v101
  %v536 = vunpack.c.l.b16 %v102
  %v537 = vunpack.c.h.b16 %v102
  %v538 = vunpack.c.l.b16 %v103
  %v539 = vunpack.c.h.b16 %v103
  %v540 = vunpack.c.l.b16 %v104
  %v541 = vunpack.c.h.b16 %v104
  %v542 = vunpack.c.l.b16 %v105
  %v543 = vunpack.c.h.b16 %v105
  %v544 = vunpack.c.l.b16 %v106
  %v545 = vunpack.c.h.b16 %v106
  %v546 = vunpack.c.l.b16 %v107
  %v547 = vunpack.c.h.b16 %v107
  %v548 = vunpack.c.l.b16 %v108
  %v549 = vunpack.c.h.b16 %v108
  %v550 = vunpack.c.l.b16 %v109
  %v551 = vunpack.c.h.b16 %v109
  %v552 = vunpack.c.l.b16 %v110
  %v553 = vunpack.c.h.b16 %v110
  %v554 = vunpack.c.l.b16 %v111
  %v555 = vunpack.c.h.b16 %v111
  %v556 = vunpack.c.l.b16 %v112
  %v557 = vunpack.c.h.b16 %v112
  %v558 = vunpack.c.l.b16 %v113
  %v559 = vunpack.c.h.b16 %v113
  %v560 = vunpack.c.l.b16 %v114
  %v561 = vunpack.c.h.b16 %v114
  %v562 = vunpack.c.l.b16 %v115
  %v563 = vunpack.c.h.b16 %v115
  %v564 = vunpack.c.l.b16 %v116
  %v565 = vunpack.c.h.b16 %v116
  %v566 = vunpack.c.l.b16 %v117
  %v567 = vunpack.c.h.b16 %v117
  %v568 = vunpack.c.l.b16 %v118
  %v569 = vunpack.c.h.b16 %v118
  %v570 = vunpack.c.l.b16 %v119
  %v571 = vunpack.c.h.b16 %v119
  %v572 = vunpack.c.l.b16 %v120
  %v573 = vunpack.c.h.b16 %v120
  %v574 = vunpack.c.l.b16 %v121
  %v575 = vunpack.c.h.b16 %v121
  %v576 = vunpack.c.l.b16 %v122
  %v577 = vunpack.c.h.b16 %v122
  %v578 = vunpack.c.l.b16 %v123
  %v579 = vunpack.c.h.b16 %v123
  %v580 = vunpack.c.l.b16 %v124
  %v581 = vunpack.c.h.b16 %v124
  %v582 = vunpack.c.l.b16 %v125
  %v583 = vunpack.c.h.b16 %v125
  %v584 = vunpack.c.l.b16 %v126
  %v585 = vunpack.c.h.b16 %v126
  %v586 = vunpack.c.l.b16 %v127
  %v587 = vunpack.c.h.b16 %v127
  %v588 = vunpack.c.l.b16 %v128
  %v589 = vunpack.c.h.b16 %v128
  %v590 = vunpack.c.l.b16 %v129
  %v591 = vunpack.c.h.b16 %v129
  %v592 = vunpack.c.l.b16 %v130
  %v593 = vunpack.c.h.b16 %v130
  %v594 = vunpack.c.l.b16 %v131
  %v595 = vunpack.c.h.b16 %v131
  %v596 = vunpack.c.l.b16 %v132
  %v597 = vunpack.c.h.b16 %v132
  %v598 = vunpack.c.l.b16 %v133
  %v599 = vunpack.c.h.b16 %v133
  %v600 = vunpack.c.l.b16 %v134
  %v601 = vunpack.c.h.b16 %v134
  %v602 = vunpack.c.l.b16 %v135
  %v603 = vunpack.c.h.b16 %v135
  %v604 = vunpack.c.l.b16 %v136
  %v605 = vunpack.c.h.b16 %v136
  %v606 = vunpack.c.l.b16 %v137
  %v607 = vunpack.c.h.b16 %v137
  %v608 = vunpack.c.l.b16 %v138
  %v609 = vunpack.c.h.b16 %v138
  %v610 = vunpack.c.l.b16 %v139
  %v611 = vunpack.c.h.b16 %v139
  %v612 = vunpack.c.l.b16 %v140
  %v613 = vunpack.c.h.b16 %v140
  %v614 = vunpack.c.l.b16 %v141
  %v615 = vunpack.c.h.b16 %v141
  %v616 = vunpack.c.l.b16 %v142
  %v617 = vunpack.c.h.b16 %v142
  %v618 = vunpack.c.l.b16 %v143
  %v619 = vunpack.c.h.b16 %v143
  %v620 = vunpack.c.l.b16 %v144
  %v621 = vunpack.c.h.b16 %v144
  %v622 = vunpack.c.l.b16 %v145
  %v623 = vunpack.c.h.b16 %v145
  %v624 = vunpack.c.l.b16 %v146
  %v625 = vunpack.c.h.b16 %v146
  %v626 = vunpack.c.l.b16 %v147
  %v627 = vunpack.c.h.b16 %v147
  %v628 = vunpack.c.l.b16 %v148
  %v629 = vunpack.c.h.b16 %v148
  %v630 = vunpack.c.l.b16 %v149
  %v631 = vunpack.c.h.b16 %v149
  %v632 = vunpack.c.l.b16 %v150
  %v633 = vunpack.c.h.b16 %v150
  %v634 = vunpack.c.l.b16 %v151
  %v635 = vunpack.c.h.b16 %v151
  %v636 = vunpack.c.l.b16 %v152
  %v637 = vunpack.c.h.b16 %v152
  %v638 = vunpack.c.l.b16 %v153
  %v639 = vunpack.c.h.b16 %v153
  %v640 = vunpack.c.l.b16 %v154
  %v641 = vunpack.c.h.b16 %v154
  %v642 = vunpack.c.l.b16 %v155
  %v643 = vunpack.c.h.b16 %v155
  %v644 = vunpack.c.l.b16 %v156
  %v645 = vunpack.c.h.b16 %v156
  %v646 = vunpack.c.l.b16 %v157
  %v647 = vunpack.c.h.b16 %v157
  %v648 = vunpack.c.l.b16 %v158
  %v649 = vunpack.c.h.b16 %v158
  %v650 = vunpack.c.l.b16 %v159
  %v651 = vunpack.c.h.b16 %v159
  %v652 = vunpack.c.l.b16 %v160
  %v653 = vunpack.c.h.b16 %v160
  %v654 = vunpack.c.l.b16 %v161
  %v655 = vunpack.c.h.b16 %v161
  %v656 = vunpack.c.l.b16 %v162
  %v657 = vunpack.c.h.b16 %v162
  %v658 = vunpack.c.l.b16 %v163
  %v659 = vunpack.c.h.b16 %v163
  %v660 = vunpack.c.l.b16 %v164
  %v661 = vunpack.c.h.b16 %v164
  %v662 = vunpack.c.l.b16 %v165
  %v663 = vunpack.c.h.b16 %v165
  %v664 = vunpack.c.l.b16 %v166
  %v665 = vunpack.c.h.b16 %v166
  %v666 = vunpack.c.l.b16 %v167
  %v667 = vunpack.c.h.b16 %v167
  %v668 = vunpack.c.l.b16 %v168
  %v669 = vunpack.c.h.b16 %v168
  %v670 = vunpack.c.l.b16 %v169
  %v671 = vunpack.c.h.b16 %v169
  %v672 = vunpack.c.l.b16 %v170
  %v673 = vunpack.c.h.b16 %v170
  %v674 = vunpack.c.l.b16 %v171
  %v675 = vunpack.c.h.b16 %v171
  %v676 = vunpack.c.l.b16 %v172
  %v677 = vunpack.c.h.b16 %v172
  %v678 = vunpack.c.l.b16 %v173
  %v679 = vunpack.c.h.b16 %v173
  %v680 = vunpack.c.l.b16 %v174
  %v681 = vunpack.c.h.b16 %v174
  %v682 = vunpack.c.l.b16 %v175
  %v683 = vunpack.c.h.b16 %v175
  %v684 = vpack.c.b16 %v398, %v396
  %v685 = vpack.c.b16 %v399, %v397
  %v686 = vpack.c.b16 %v402, %v400
  %v687 = vpack.c.b16 %v403, %v401
  %v688 = vpack.c.b16 %v406, %v404
  %v689 = vpack.c.b16 %v407, %v405
  %v690 = vpack.c.b16 %v410, %v408
  %v691 = vpack.c.b16 %v411, %v409
  %v692 = vpack.c.b16 %v414, %v412
  %v693 = vpack.c.b16 %v415, %v413
  %v694 = vpack.c.b16 %v418, %v416
  %v695 = vpack.c.b16 %v419, %v417
  %v696 = vpack.c.b16 %v422, %v420
  %v697 = vpack.c.b16 %v423, %v421
  %v698 = vpack.c.b16 %v426, %v424
  %v699 = vpack.c.b16 %v427, %v425
  %v700 = vpack.c.b16 %v430, %v428
  %v701 = vpack.c.b16 %v431, %v429
  %v702 = vpack.c.b16 %v434, %v432
  %v703 = vpack.c.b16 %v435, %v433
  %v704 = vpack.c.b16 %v438, %v436
  %v705 = vpack.c.b16 %v439, %v437
  %v706 = vpack.c.b16 %v442, %v440
  %v707 = vpack.c.b16 %v443, %v441
  %v708 = vpack.c.b16 %v446, %v444
  %v709 = vpack.c.b16 %v447, %v445
  %v710 = vpack.c.b16 %v450, %v448
  %v711 = vpack.c.b16 %v451, %v449
  %v712 = vpack.c.b16 %v454, %v452
  %v713 = vpack.c.b16 %v455, %v453
  %v714 = vpack.c.b16 %v458, %v456
  %v715 = vpack.c.b16 %v459, %v457
  %v716 = vpack.c.b16 %v462, %v460
  %v717 = vpack.c.b16 %v463, %v461
  %v718 = vpack.c.b16 %v466, %v464
  %v719 = vpack.c.b16 %v467, %v465
  %v720 = vpack.c.b16 %v470, %v468
  %v721 = vpack.c.b16 %v471, %v469
  %v722 = vpack.c.b16 %v474, %v472
  %v723 = vpack.c.b16 %v475, %v473
  %v724 = vpack.c.b16 %v478, %v476
  %v725 = vpack.c.b16 %v479, %v477
  %v726 = vpack.c.b16 %v482, %v480
  %v727 = vpack.c.b16 %v483, %v481
  %v728 = vpack.c.b16 %v486, %v484
  %v729 = vpack.c.b16 %v487, %v485
  %v730 = vpack.c.b16 %v490, %v488
  %v731 = vpack.c.b16 %v491, %v489
  %v732 = vpack.c.b16 %v494, %v492
  %v733 = vpack.c.b16 %v495, %v493
  %v734 = vpack.c.b16 %v498, %v496
  %v735 = vpack.c.b16 %v499, %v497
  %v736 = vpack.c.b16 %v502, %v500
  %v737 = vpack.c.b16 %v503, %v501
  %v738 = vpack.c.b16 %v506, %v504
  %v739 = vpack.c.b16 %v507, %v505
  %v740 = vpack.c.b16 %v510, %v508
  %v741 = vpack.c.b16 %v511, %v509
  %v742 = vpack.c.b16 %v514, %v512
  %v743 = vpack.c.b16 %v515, %v513
  %v744 = vpack.c.b16 %v518, %v516
  %v745 = vpack.c.b16 %v519, %v517
  %v746 = vpack.c.b16 %v522, %v520
  %v747 = vpack.c.b16 %v523, %v521
  %v748 = vpack.c.b16 %v526, %v524
  %v749 = vpack.c.b16 %v527, %v525
  %v750 = vpack.c.b16 %v530, %v528
  %v751 = vpack.c.b16 %v531, %v529
  %v752 = vpack.c.b16 %v534, %v532
  %v753 = vpack.c.b16 %v535, %v533
  %v754 = vpack.c.b16 %v538, %v536
  %v755 = vpack.c.b16 %v539, %v537
  %v756 = vpack.c.b16 %v542, %v540
  %v757 = vpack.c.b16 %v543, %v541
  %v758 = vpack.c.b16 %v546, %v544
  %v759 = vpack.c.b16 %v547, %v545
  %v760 = vpack.c.b16 %v550, %v548
  %v761 = vpack.c.b16 %v551, %v549
  %v762 = vpack.c.b16 %v554, %v552
  %v763 = vpack.c.b16 %v555, %v553
  %v764 = vpack.c.b16 %v558, %v556
  %v765 = vpack.c.b16 %v559, %v557
  %v766 = vpack.c.b16 %v562, %v560
  %v767 = vpack.c.b16 %v563, %v561
  %v768 = vpack.c.b16 %v566, %v564
  %v769 = vpack.c.b16 %v567, %v565
  %v770 = vpack.c.b16 %v570, %v568
  %v771 = vpack.c.b16 %v571, %v569
  %v772 = vpack.c.b16 %v574, %v572
  %v773 = vpack.c.b16 %v575, %v573
  %v774 = vpack.c.b16 %v578, %v576
  %v775 = vpack.c.b16 %v579, %v577
  %v776 = vpack.c.b16 %v582, %v580
  %v777 = vpack.c.b16 %v583, %v581
  %v778 = vpack.c.b16 %v586, %v584
  %v779 = vpack.c.b16 %v587, %v585
  %v780 = vpack.c.b16 %v590, %v588
  %v781 = vpack.c.b16 %v591, %v589
  %v782 = vpack.c.b16 %v594, %v592
  %v783 = vpack.c.b16 %v595, %v593
  %v784 = vpack.c.b16 %v598, %v596
  %v785 = vpack.c.b16 %v599, %v597
  %v786 = vpack.c.b16 %v602, %v600
  %v787 = vpack.c.b16 %v603, %v601
  %v788 = vpack.c.b16 %v606, %v604
  %v789 = vpack.c.b16 %v607, %v605
  %v790 = vpack.c.b16 %v610, %v608
  %v791 = vpack.c.b16 %v611, %v609
  %v792 = vpack.c.b16 %v614, %v612
  %v793 = vpack.c.b16 %v615, %v613
  %v794 = vpack.c.b16 %v618, %v616
  %v795 = vpack.c.b16 %v619, %v617
  %v796 = vpack.c.b16 %v622, %v620
  %v797 = vpack.c.b16 %v623, %v621
  %v798 = vpack.c.b16 %v626, %v624
  %v799 = vpack.c.b16 %v627, %v625
  %v800 = vpack.c.b16 %v630, %v628
  %v801 = vpack.c.b16 %v631, %v629
  %v802 = vpack.c.b16 %v634, %v632
  %v803 = vpack.c.b16 %v635, %v633
  %v804 = vpack.c.b16 %v638, %v636
  %v805 = vpack.c.b16 %v639, %v637
  %v806 = vpack.c.b16 %v642, %v640
  %v807 = vpack.c.b16 %v643, %v641
  %v808 = vpack.c.b16 %v646, %v644
  %v809 = vpack.c.b16 %v647, %v645
  %v810 = vpack.c.b16 %v650, %v648
  %v811 = vpack.c.b16 %v651, %v649
  %v812 = vpack.c.b16 %v654, %v652
  %v813 = vpack.c.b16 %v655, %v653
  %v814 = vpack.c.b16 %v658, %v656
  %v815 = vpack.c.b16 %v659, %v657
  %v816 = vpack.c.b16 %v662, %v660
  %v817 = vpack.c.b16 %v663, %v661
  %v818 = vpack.c.b16 %v666, %v664
  %v819 = vpack.c.b16 %v667, %v665
  %v820 = vpack.c.b16 %v670, %v668
  %v821 = vpack.c.b16 %v671, %v669
  %v822 = vpack.c.b16 %v674, %v672
  %v823 = vpack.c.b16 %v675, %v673
  %v824 = vpack.c.b16 %v678, %v676
  %v825 = vpack.c.b16 %v679, %v677
  %v826 = vpack.c.b16 %v682, %v680
  %v827 = vpack.c.b16 %v683, %v681
  %972 = vmatprep.subr.bf16.mxu0 %v685
  %973 = vmatpush1.bf16.msra.mxu0 %v684
  %974 = vmatprep.subr.bf16.mxu0 %v687
  %975 = vmatpush1.bf16.msra.mxu0 %v686
  %976 = vmatprep.subr.bf16.mxu0 %v689
  %977 = vmatpush1.bf16.msra.mxu0 %v688
  %978 = vmatprep.subr.bf16.mxu0 %v691
  %979 = vmatpush1.bf16.msra.mxu0 %v690
  %980 = vmatprep.subr.bf16.mxu0 %v693
  %981 = vmatpush1.bf16.msra.mxu0 %v692
  %982 = vmatprep.subr.bf16.mxu0 %v695
  %983 = vmatpush1.bf16.msra.mxu0 %v694
  %984 = vmatprep.subr.bf16.mxu0 %v697
  %985 = vmatpush1.bf16.msra.mxu0 %v696
  %986 = vmatprep.subr.bf16.mxu0 %v699
  %987 = vmatpush1.bf16.msra.mxu0 %v698
  %988 = vmatprep.subr.bf16.mxu0 %v701
  %989 = vmatpush1.bf16.msra.mxu0 %v700
  %990 = vmatprep.subr.bf16.mxu0 %v703
  %991 = vmatpush1.bf16.msra.mxu0 %v702
  %992 = vmatprep.subr.bf16.mxu0 %v705
  %993 = vmatpush1.bf16.msra.mxu0 %v704
  %994 = vmatprep.subr.bf16.mxu0 %v707
  %995 = vmatpush1.bf16.msra.mxu0 %v706
  %996 = vmatprep.subr.bf16.mxu0 %v709
  %997 = vmatpush1.bf16.msra.mxu0 %v708
  %998 = vmatprep.subr.bf16.mxu0 %v711
  %999 = vmatpush1.bf16.msra.mxu0 %v710
  %1000 = vmatprep.subr.bf16.mxu0 %v713
  %1001 = vmatpush1.bf16.msra.mxu0 %v712
  %1002 = vmatprep.subr.bf16.mxu0 %v715
  %1003 = vmatpush1.bf16.msra.mxu0 %v714
  %1004 = vmatprep.mubr.bf16.mxu0 %v217
  %1005 = vmatmul.mubr.bf16.gmra.mrb[0].mxu0 %v203
  %v1006 = vpop.f32.mrb[0].mxu0
  %v1007 = vadd.f32 0.0, %v1006
  %v1008 = vpop.f32.mrb[0].mxu0
  %v1009 = vadd.f32 0.0, %v1008
  %v1010 = vpop.f32.mrb[0].mxu0
  %v1011 = vpop.f32.mrb[0].mxu0
  %1012 = vdwg.mxu0
  %1013 = vmatprep.subr.bf16.mxu0 %v717
  %1014 = vmatpush1.bf16.msra.mxu0 %v716
  %1015 = vmatprep.subr.bf16.mxu0 %v719
  %1016 = vmatpush1.bf16.msra.mxu0 %v718
  %1017 = vmatprep.subr.bf16.mxu0 %v721
  %1018 = vmatpush1.bf16.msra.mxu0 %v720
  %1019 = vmatprep.subr.bf16.mxu0 %v723
  %1020 = vmatpush1.bf16.msra.mxu0 %v722
  %1021 = vmatprep.subr.bf16.mxu0 %v725
  %1022 = vmatpush1.bf16.msra.mxu0 %v724
  %1023 = vmatprep.subr.bf16.mxu0 %v727
  %1024 = vmatpush1.bf16.msra.mxu0 %v726
  %1025 = vmatprep.subr.bf16.mxu0 %v729
  %1026 = vmatpush1.bf16.msra.mxu0 %v728
  %1027 = vmatprep.subr.bf16.mxu0 %v731
  %1028 = vmatpush1.bf16.msra.mxu0 %v730
  %1029 = vmatprep.subr.bf16.mxu0 %v733
  %1030 = vmatpush1.bf16.msra.mxu0 %v732
  %1031 = vmatprep.subr.bf16.mxu0 %v735
  %1032 = vmatpush1.bf16.msra.mxu0 %v734
  %1033 = vmatprep.subr.bf16.mxu0 %v737
  %1034 = vmatpush1.bf16.msra.mxu0 %v736
  %1035 = vmatprep.subr.bf16.mxu0 %v739
  %1036 = vmatpush1.bf16.msra.mxu0 %v738
  %1037 = vmatprep.subr.bf16.mxu0 %v741
  %1038 = vmatpush1.bf16.msra.mxu0 %v740
  %1039 = vmatprep.subr.bf16.mxu0 %v743
  %1040 = vmatpush1.bf16.msra.mxu0 %v742
  %1041 = vmatprep.subr.bf16.mxu0 %v745
  %1042 = vmatpush1.bf16.msra.mxu0 %v744
  %1043 = vmatprep.subr.bf16.mxu0 %v747
  %1044 = vmatpush1.bf16.msra.mxu0 %v746
  %1045 = vmatprep.mubr.bf16.mxu0 %v227
  %1046 = vmatmul.mubr.bf16.gmra.mrb[0].mxu0 %v225
  %v1047 = vpop.f32.mrb[0].mxu0
  %v1048 = vadd.f32 %v1007, %v1047
  %v1049 = vpop.f32.mrb[0].mxu0
  %v1050 = vadd.f32 %v1009, %v1049
  %v1051 = vpop.f32.mrb[0].mxu0
  %v1052 = vpop.f32.mrb[0].mxu0
  %1053 = vdwg.mxu0
  %1054 = vmatprep.subr.bf16.mxu0 %v749
  %1055 = vmatpush1.bf16.msra.mxu0 %v748
  %1056 = vmatprep.subr.bf16.mxu0 %v751
  %1057 = vmatpush1.bf16.msra.mxu0 %v750
  %1058 = vmatprep.subr.bf16.mxu0 %v753
  %1059 = vmatpush1.bf16.msra.mxu0 %v752
  %1060 = vmatprep.subr.bf16.mxu0 %v755
  %1061 = vmatpush1.bf16.msra.mxu0 %v754
  %1062 = vmatprep.subr.bf16.mxu0 %v757
  %1063 = vmatpush1.bf16.msra.mxu0 %v756
  %1064 = vmatprep.subr.bf16.mxu0 %v759
  %1065 = vmatpush1.bf16.msra.mxu0 %v758
  %1066 = vmatprep.subr.bf16.mxu0 %v761
  %1067 = vmatpush1.bf16.msra.mxu0 %v760
  %1068 = vmatprep.subr.bf16.mxu0 %v763
  %1069 = vmatpush1.bf16.msra.mxu0 %v762
  %1070 = vmatprep.subr.bf16.mxu0 %v765
  %1071 = vmatpush1.bf16.msra.mxu0 %v764
  %1072 = vmatprep.subr.bf16.mxu0 %v767
  %1073 = vmatpush1.bf16.msra.mxu0 %v766
  %1074 = vmatprep.subr.bf16.mxu0 %v769
  %1075 = vmatpush1.bf16.msra.mxu0 %v768
  %1076 = vmatprep.subr.bf16.mxu0 %v771
  %1077 = vmatpush1.bf16.msra.mxu0 %v770
  %1078 = vmatprep.subr.bf16.mxu0 %v773
  %1079 = vmatpush1.bf16.msra.mxu0 %v772
  %1080 = vmatprep.subr.bf16.mxu0 %v775
  %1081 = vmatpush1.bf16.msra.mxu0 %v774
  %1082 = vmatprep.subr.bf16.mxu0 %v777
  %1083 = vmatpush1.bf16.msra.mxu0 %v776
  %1084 = vmatprep.subr.bf16.mxu0 %v779
  %1085 = vmatpush1.bf16.msra.mxu0 %v778
  %1086 = vmatprep.mubr.bf16.mxu0 %v224
  %1087 = vmatmul.mubr.bf16.gmra.mrb[0].mxu0 %v210
  %v1088 = vpop.f32.mrb[0].mxu0
  %v1089 = vadd.f32 %v1048, %v1088
  %v1090 = vpop.f32.mrb[0].mxu0
  %v1091 = vadd.f32 %v1050, %v1090
  %v1092 = vpop.f32.mrb[0].mxu0
  %v1093 = vpop.f32.mrb[0].mxu0
  %1094 = vdwg.mxu0
  %1095 = vmatprep.subr.bf16.mxu0 %v781
  %1096 = vmatpush1.bf16.msra.mxu0 %v780
  %1097 = vmatprep.subr.bf16.mxu0 %v783
  %1098 = vmatpush1.bf16.msra.mxu0 %v782
  %1099 = vmatprep.subr.bf16.mxu0 %v785
  %1100 = vmatpush1.bf16.msra.mxu0 %v784
  %1101 = vmatprep.subr.bf16.mxu0 %v787
  %1102 = vmatpush1.bf16.msra.mxu0 %v786
  %1103 = vmatprep.subr.bf16.mxu0 %v789
  %1104 = vmatpush1.bf16.msra.mxu0 %v788
  %1105 = vmatprep.subr.bf16.mxu0 %v791
  %1106 = vmatpush1.bf16.msra.mxu0 %v790
  %1107 = vmatprep.subr.bf16.mxu0 %v793
  %1108 = vmatpush1.bf16.msra.mxu0 %v792
  %1109 = vmatprep.subr.bf16.mxu0 %v795
  %1110 = vmatpush1.bf16.msra.mxu0 %v794
  %1111 = vmatprep.subr.bf16.mxu0 %v797
  %1112 = vmatpush1.bf16.msra.mxu0 %v796
  %1113 = vmatprep.subr.bf16.mxu0 %v799
  %1114 = vmatpush1.bf16.msra.mxu0 %v798
  %1115 = vmatprep.subr.bf16.mxu0 %v801
  %1116 = vmatpush1.bf16.msra.mxu0 %v800
  %1117 = vmatprep.subr.bf16.mxu0 %v803
  %1118 = vmatpush1.bf16.msra.mxu0 %v802
  %1119 = vmatprep.subr.bf16.mxu0 %v805
  %1120 = vmatpush1.bf16.msra.mxu0 %v804
  %1121 = vmatprep.subr.bf16.mxu0 %v807
  %1122 = vmatpush1.bf16.msra.mxu0 %v806
  %1123 = vmatprep.subr.bf16.mxu0 %v809
  %1124 = vmatpush1.bf16.msra.mxu0 %v808
  %1125 = vmatprep.subr.bf16.mxu0 %v811
  %1126 = vmatpush1.bf16.msra.mxu0 %v810
  %1127 = vmatprep.mubr.bf16.mxu0 %v228
  %1128 = vmatmul.mubr.bf16.gmra.mrb[0].mxu0 %v226
  %v1129 = vpop.f32.mrb[0].mxu0
  %v1130 = vadd.f32 %v1089, %v1129
  %v1131 = vpop.f32.mrb[0].mxu0
  %v1132 = vadd.f32 %v1091, %v1131
  %v1133 = vpop.f32.mrb[0].mxu0
  %v1134 = vpop.f32.mrb[0].mxu0
  %1135 = vdwg.mxu0
  %1136 = vmatprep.subr.bf16.mxu0 %v813
  %1137 = vmatpush1.bf16.msra.mxu0 %v812
  %1138 = vmatprep.subr.bf16.mxu0 %v815
  %1139 = vmatpush1.bf16.msra.mxu0 %v814
  %1140 = vmatprep.subr.bf16.mxu0 %v817
  %1141 = vmatpush1.bf16.msra.mxu0 %v816
  %1142 = vmatprep.subr.bf16.mxu0 %v819
  %1143 = vmatpush1.bf16.msra.mxu0 %v818
  %1144 = vmatprep.subr.bf16.mxu0 %v821
  %1145 = vmatpush1.bf16.msra.mxu0 %v820
  %1146 = vmatprep.subr.bf16.mxu0 %v823
  %1147 = vmatpush1.bf16.msra.mxu0 %v822
  %1148 = vmatprep.subr.bf16.mxu0 %v825
  %1149 = vmatpush1.bf16.msra.mxu0 %v824
  %1150 = vmatprep.subr.bf16.mxu0 %v827
  %1151 = vmatpush1.bf16.msra.mxu0 %v826
  %1152 = vmatprep.subr.bf16.mxu0 0
  %1153 = vmatpush1.bf16.msra.mxu0 0
  %1154 = vmatprep.subr.bf16.mxu0 0
  %1155 = vmatpush1.bf16.msra.mxu0 0
  %1156 = vmatprep.subr.bf16.mxu0 0
  %1157 = vmatpush1.bf16.msra.mxu0 0
  %1158 = vmatprep.subr.bf16.mxu0 0
  %1159 = vmatpush1.bf16.msra.mxu0 0
  %1160 = vmatprep.subr.bf16.mxu0 0
  %1161 = vmatpush1.bf16.msra.mxu0 0
  %1162 = vmatprep.subr.bf16.mxu0 0
  %1163 = vmatpush1.bf16.msra.mxu0 0
  %1164 = vmatprep.subr.bf16.mxu0 0
  %1165 = vmatpush1.bf16.msra.mxu0 0
  %1166 = vmatprep.subr.bf16.mxu0 0
  %1167 = vmatpush1.bf16.msra.mxu0 0
  %1168 = vmatprep.mubr.bf16.mxu0 0
  %1169 = vmatmul.mubr.bf16.gmra.mrb[0].mxu0 %v242
  %v1170 = vpop.f32.mrb[0].mxu0
  %v1171 = vadd.f32 %v1130, %v1170
  %v1172 = vpop.f32.mrb[0].mxu0
  %v1173 = vadd.f32 %v1132, %v1172
  %v1174 = vpop.f32.mrb[0].mxu0
  %v1175 = vpop.f32.mrb[0].mxu0
  %1176 = vdwg.mxu0
  %s1177 = scalar_lea.vmem %s0, 9
  %v1178 = vld [vmem:[%s1177] sm:$0xff]
  %v1179 = vld [vmem:[%s1177 + $0x8] sm:$0x1]
  %v1182 = vcombine.high %v1178, %v1178
  %v1184 = vunpack.c.l.s4 1966171168
  %v1185 = vunpack.c.0.s8 %v1184
  %v1186 = vlaneseq
  %v1187 = vshrl.u32 %v1186, 7
  %v1188 = vsub.s32 %v1185, %v1187
  %v1189 = vrot.slane %v1178, %v1188
  %v1191 = vunpack.c.l.s4 1966171168
  %v1192 = vunpack.c.0.s8 %v1191
  %v1193 = vlaneseq
  %v1194 = vshrl.u32 %v1193, 7
  %v1195 = vsub.s32 %v1192, %v1194
  %v1196 = vrot.slane %v1182, %v1195
  %v1197 = vcombine.high %v1189, %v1189
  %v1198 = vcombine.high %v1196, %v1196
  %v1200 = vunpack.c.l.s4 1966171168
  %v1201 = vunpack.c.0.s8 %v1200
  %v1202 = vlaneseq
  %v1203 = vshrl.u32 %v1202, 7
  %v1204 = vsub.s32 %v1201, %v1203
  %v1205 = vrot.slane %v1189, %v1204
  %v1207 = vunpack.c.l.s4 1966171168
  %v1208 = vunpack.c.0.s8 %v1207
  %v1209 = vlaneseq
  %v1210 = vshrl.u32 %v1209, 7
  %v1211 = vsub.s32 %v1208, %v1210
  %v1212 = vrot.slane %v1196, %v1211
  %v1214 = vunpack.c.l.s4 1966171168
  %v1215 = vunpack.c.0.s8 %v1214
  %v1216 = vlaneseq
  %v1217 = vshrl.u32 %v1216, 7
  %v1218 = vsub.s32 %v1215, %v1217
  %v1219 = vrot.slane %v1197, %v1218
  %v1221 = vunpack.c.l.s4 1966171168
  %v1222 = vunpack.c.0.s8 %v1221
  %v1223 = vlaneseq
  %v1224 = vshrl.u32 %v1223, 7
  %v1225 = vsub.s32 %v1222, %v1224
  %v1226 = vrot.slane %v1198, %v1225
  %v1227 = vcombine.high %v1205, %v1205
  %v1228 = vcombine.high %v1212, %v1212
  %v1229 = vcombine.high %v1219, %v1219
  %v1230 = vcombine.high %v1226, %v1226
  %v1232 = vunpack.c.l.s4 1966171168
  %v1233 = vunpack.c.0.s8 %v1232
  %v1234 = vlaneseq
  %v1235 = vshrl.u32 %v1234, 7
  %v1236 = vsub.s32 %v1233, %v1235
  %v1237 = vrot.slane %v1179, %v1236
  %v1239 = vunpack.c.l.s4 1966171168
  %v1240 = vunpack.c.0.s8 %v1239
  %v1241 = vlaneseq
  %v1242 = vshrl.u32 %v1241, 7
  %v1243 = vsub.s32 %v1240, %v1242
  %v1244 = vrot.slane %v1237, %v1243
  %1254 = vmatprep.subr.bf16.mxu0 %v685
  %1255 = vmatpush1.bf16.msra.mxu0 %v684
  %1256 = vmatprep.subr.bf16.mxu0 %v687
  %1257 = vmatpush1.bf16.msra.mxu0 %v686
  %1258 = vmatprep.subr.bf16.mxu0 %v689
  %1259 = vmatpush1.bf16.msra.mxu0 %v688
  %1260 = vmatprep.subr.bf16.mxu0 %v691
  %1261 = vmatpush1.bf16.msra.mxu0 %v690
  %1262 = vmatprep.subr.bf16.mxu0 %v693
  %1263 = vmatpush1.bf16.msra.mxu0 %v692
  %1264 = vmatprep.subr.bf16.mxu0 %v695
  %1265 = vmatpush1.bf16.msra.mxu0 %v694
  %1266 = vmatprep.subr.bf16.mxu0 %v697
  %1267 = vmatpush1.bf16.msra.mxu0 %v696
  %1268 = vmatprep.subr.bf16.mxu0 %v699
  %1269 = vmatpush1.bf16.msra.mxu0 %v698
  %1270 = vmatprep.subr.bf16.mxu0 %v701
  %1271 = vmatpush1.bf16.msra.mxu0 %v700
  %1272 = vmatprep.subr.bf16.mxu0 %v703
  %1273 = vmatpush1.bf16.msra.mxu0 %v702
  %1274 = vmatprep.subr.bf16.mxu0 %v705
  %1275 = vmatpush1.bf16.msra.mxu0 %v704
  %1276 = vmatprep.subr.bf16.mxu0 %v707
  %1277 = vmatpush1.bf16.msra.mxu0 %v706
  %1278 = vmatprep.subr.bf16.mxu0 %v709
  %1279 = vmatpush1.bf16.msra.mxu0 %v708
  %1280 = vmatprep.subr.bf16.mxu0 %v711
  %1281 = vmatpush1.bf16.msra.mxu0 %v710
  %1282 = vmatprep.subr.bf16.mxu0 %v713
  %1283 = vmatpush1.bf16.msra.mxu0 %v712
  %1284 = vmatprep.subr.bf16.mxu0 %v715
  %1285 = vmatpush1.bf16.msra.mxu0 %v714
  %1286 = vmatprep.mubr.bf16.mxu0 %v1219
  %1287 = vmatmul.mubr.bf16.gmra.mrb[0].mxu0 %v1205
  %v1288 = vpop.f32.mrb[0].mxu0
  %v1289 = vadd.f32 0.0, %v1288
  %v1290 = vpop.f32.mrb[0].mxu0
  %v1291 = vadd.f32 0.0, %v1290
  %v1292 = vpop.f32.mrb[0].mxu0
  %v1293 = vpop.f32.mrb[0].mxu0
  %1294 = vdwg.mxu0
  %1295 = vmatprep.subr.bf16.mxu0 %v717
  %1296 = vmatpush1.bf16.msra.mxu0 %v716
  %1297 = vmatprep.subr.bf16.mxu0 %v719
  %1298 = vmatpush1.bf16.msra.mxu0 %v718
  %1299 = vmatprep.subr.bf16.mxu0 %v721
  %1300 = vmatpush1.bf16.msra.mxu0 %v720
  %1301 = vmatprep.subr.bf16.mxu0 %v723
  %1302 = vmatpush1.bf16.msra.mxu0 %v722
  %1303 = vmatprep.subr.bf16.mxu0 %v725
  %1304 = vmatpush1.bf16.msra.mxu0 %v724
  %1305 = vmatprep.subr.bf16.mxu0 %v727
  %1306 = vmatpush1.bf16.msra.mxu0 %v726
  %1307 = vmatprep.subr.bf16.mxu0 %v729
  %1308 = vmatpush1.bf16.msra.mxu0 %v728
  %1309 = vmatprep.subr.bf16.mxu0 %v731
  %1310 = vmatpush1.bf16.msra.mxu0 %v730
  %1311 = vmatprep.subr.bf16.mxu0 %v733
  %1312 = vmatpush1.bf16.msra.mxu0 %v732
  %1313 = vmatprep.subr.bf16.mxu0 %v735
  %1314 = vmatpush1.bf16.msra.mxu0 %v734
  %1315 = vmatprep.subr.bf16.mxu0 %v737
  %1316 = vmatpush1.bf16.msra.mxu0 %v736
  %1317 = vmatprep.subr.bf16.mxu0 %v739
  %1318 = vmatpush1.bf16.msra.mxu0 %v738
  %1319 = vmatprep.subr.bf16.mxu0 %v741
  %1320 = vmatpush1.bf16.msra.mxu0 %v740
  %1321 = vmatprep.subr.bf16.mxu0 %v743
  %1322 = vmatpush1.bf16.msra.mxu0 %v742
  %1323 = vmatprep.subr.bf16.mxu0 %v745
  %1324 = vmatpush1.bf16.msra.mxu0 %v744
  %1325 = vmatprep.subr.bf16.mxu0 %v747
  %1326 = vmatpush1.bf16.msra.mxu0 %v746
  %1327 = vmatprep.mubr.bf16.mxu0 %v1229
  %1328 = vmatmul.mubr.bf16.gmra.mrb[0].mxu0 %v1227
  %v1329 = vpop.f32.mrb[0].mxu0
  %v1330 = vadd.f32 %v1289, %v1329
  %v1331 = vpop.f32.mrb[0].mxu0
  %v1332 = vadd.f32 %v1291, %v1331
  %v1333 = vpop.f32.mrb[0].mxu0
  %v1334 = vpop.f32.mrb[0].mxu0
  %1335 = vdwg.mxu0
  %1336 = vmatprep.subr.bf16.mxu0 %v749
  %1337 = vmatpush1.bf16.msra.mxu0 %v748
  %1338 = vmatprep.subr.bf16.mxu0 %v751
  %1339 = vmatpush1.bf16.msra.mxu0 %v750
  %1340 = vmatprep.subr.bf16.mxu0 %v753
  %1341 = vmatpush1.bf16.msra.mxu0 %v752
  %1342 = vmatprep.subr.bf16.mxu0 %v755
  %1343 = vmatpush1.bf16.msra.mxu0 %v754
  %1344 = vmatprep.subr.bf16.mxu0 %v757
  %1345 = vmatpush1.bf16.msra.mxu0 %v756
  %1346 = vmatprep.subr.bf16.mxu0 %v759
  %1347 = vmatpush1.bf16.msra.mxu0 %v758
  %1348 = vmatprep.subr.bf16.mxu0 %v761
  %1349 = vmatpush1.bf16.msra.mxu0 %v760
  %1350 = vmatprep.subr.bf16.mxu0 %v763
  %1351 = vmatpush1.bf16.msra.mxu0 %v762
  %1352 = vmatprep.subr.bf16.mxu0 %v765
  %1353 = vmatpush1.bf16.msra.mxu0 %v764
  %1354 = vmatprep.subr.bf16.mxu0 %v767
  %1355 = vmatpush1.bf16.msra.mxu0 %v766
  %1356 = vmatprep.subr.bf16.mxu0 %v769
  %1357 = vmatpush1.bf16.msra.mxu0 %v768
  %1358 = vmatprep.subr.bf16.mxu0 %v771
  %1359 = vmatpush1.bf16.msra.mxu0 %v770
  %1360 = vmatprep.subr.bf16.mxu0 %v773
  %1361 = vmatpush1.bf16.msra.mxu0 %v772
  %1362 = vmatprep.subr.bf16.mxu0 %v775
  %1363 = vmatpush1.bf16.msra.mxu0 %v774
  %1364 = vmatprep.subr.bf16.mxu0 %v777
  %1365 = vmatpush1.bf16.msra.mxu0 %v776
  %1366 = vmatprep.subr.bf16.mxu0 %v779
  %1367 = vmatpush1.bf16.msra.mxu0 %v778
  %1368 = vmatprep.mubr.bf16.mxu0 %v1226
  %1369 = vmatmul.mubr.bf16.gmra.mrb[0].mxu0 %v1212
  %v1370 = vpop.f32.mrb[0].mxu0
  %v1371 = vadd.f32 %v1330, %v1370
  %v1372 = vpop.f32.mrb[0].mxu0
  %v1373 = vadd.f32 %v1332, %v1372
  %v1374 = vpop.f32.mrb[0].mxu0
  %v1375 = vpop.f32.mrb[0].mxu0
  %1376 = vdwg.mxu0
  %1377 = vmatprep.subr.bf16.mxu0 %v781
  %1378 = vmatpush1.bf16.msra.mxu0 %v780
  %1379 = vmatprep.subr.bf16.mxu0 %v783
  %1380 = vmatpush1.bf16.msra.mxu0 %v782
  %1381 = vmatprep.subr.bf16.mxu0 %v785
  %1382 = vmatpush1.bf16.msra.mxu0 %v784
  %1383 = vmatprep.subr.bf16.mxu0 %v787
  %1384 = vmatpush1.bf16.msra.mxu0 %v786
  %1385 = vmatprep.subr.bf16.mxu0 %v789
  %1386 = vmatpush1.bf16.msra.mxu0 %v788
  %1387 = vmatprep.subr.bf16.mxu0 %v791
  %1388 = vmatpush1.bf16.msra.mxu0 %v790
  %1389 = vmatprep.subr.bf16.mxu0 %v793
  %1390 = vmatpush1.bf16.msra.mxu0 %v792
  %1391 = vmatprep.subr.bf16.mxu0 %v795
  %1392 = vmatpush1.bf16.msra.mxu0 %v794
  %1393 = vmatprep.subr.bf16.mxu0 %v797
  %1394 = vmatpush1.bf16.msra.mxu0 %v796
  %1395 = vmatprep.subr.bf16.mxu0 %v799
  %1396 = vmatpush1.bf16.msra.mxu0 %v798
  %1397 = vmatprep.subr.bf16.mxu0 %v801
  %1398 = vmatpush1.bf16.msra.mxu0 %v800
  %1399 = vmatprep.subr.bf16.mxu0 %v803
  %1400 = vmatpush1.bf16.msra.mxu0 %v802
  %1401 = vmatprep.subr.bf16.mxu0 %v805
  %1402 = vmatpush1.bf16.msra.mxu0 %v804
  %1403 = vmatprep.subr.bf16.mxu0 %v807
  %1404 = vmatpush1.bf16.msra.mxu0 %v806
  %1405 = vmatprep.subr.bf16.mxu0 %v809
  %1406 = vmatpush1.bf16.msra.mxu0 %v808
  %1407 = vmatprep.subr.bf16.mxu0 %v811
  %1408 = vmatpush1.bf16.msra.mxu0 %v810
  %1409 = vmatprep.mubr.bf16.mxu0 %v1230
  %1410 = vmatmul.mubr.bf16.gmra.mrb[0].mxu0 %v1228
  %v1411 = vpop.f32.mrb[0].mxu0
  %v1412 = vadd.f32 %v1371, %v1411
  %v1413 = vpop.f32.mrb[0].mxu0
  %v1414 = vadd.f32 %v1373, %v1413
  %v1415 = vpop.f32.mrb[0].mxu0
  %v1416 = vpop.f32.mrb[0].mxu0
  %1417 = vdwg.mxu0
  %1418 = vmatprep.subr.bf16.mxu0 %v813
  %1419 = vmatpush1.bf16.msra.mxu0 %v812
  %1420 = vmatprep.subr.bf16.mxu0 %v815
  %1421 = vmatpush1.bf16.msra.mxu0 %v814
  %1422 = vmatprep.subr.bf16.mxu0 %v817
  %1423 = vmatpush1.bf16.msra.mxu0 %v816
  %1424 = vmatprep.subr.bf16.mxu0 %v819
  %1425 = vmatpush1.bf16.msra.mxu0 %v818
  %1426 = vmatprep.subr.bf16.mxu0 %v821
  %1427 = vmatpush1.bf16.msra.mxu0 %v820
  %1428 = vmatprep.subr.bf16.mxu0 %v823
  %1429 = vmatpush1.bf16.msra.mxu0 %v822
  %1430 = vmatprep.subr.bf16.mxu0 %v825
  %1431 = vmatpush1.bf16.msra.mxu0 %v824
  %1432 = vmatprep.subr.bf16.mxu0 %v827
  %1433 = vmatpush1.bf16.msra.mxu0 %v826
  %1434 = vmatprep.subr.bf16.mxu0 0
  %1435 = vmatpush1.bf16.msra.mxu0 0
  %1436 = vmatprep.subr.bf16.mxu0 0
  %1437 = vmatpush1.bf16.msra.mxu0 0
  %1438 = vmatprep.subr.bf16.mxu0 0
  %1439 = vmatpush1.bf16.msra.mxu0 0
  %1440 = vmatprep.subr.bf16.mxu0 0
  %1441 = vmatpush1.bf16.msra.mxu0 0
  %1442 = vmatprep.subr.bf16.mxu0 0
  %1443 = vmatpush1.bf16.msra.mxu0 0
  %1444 = vmatprep.subr.bf16.mxu0 0
  %1445 = vmatpush1.bf16.msra.mxu0 0
  %1446 = vmatprep.subr.bf16.mxu0 0
  %1447 = vmatpush1.bf16.msra.mxu0 0
  %1448 = vmatprep.subr.bf16.mxu0 0
  %1449 = vmatpush1.bf16.msra.mxu0 0
  %1450 = vmatprep.mubr.bf16.mxu0 0
  %1451 = vmatmul.mubr.bf16.gmra.mrb[0].mxu0 %v1244
  %v1452 = vpop.f32.mrb[0].mxu0
  %v1453 = vadd.f32 %v1412, %v1452
  %v1454 = vpop.f32.mrb[0].mxu0
  %v1455 = vadd.f32 %v1414, %v1454
  %v1456 = vpop.f32.mrb[0].mxu0
  %v1457 = vpop.f32.mrb[0].mxu0
  %1458 = vdwg.mxu0
  %s1459 = scalar_lea.vmem %s0, 18
  %v1460 = vld [vmem:[%s1459] sm:$0xff]
  %v1461 = vld [vmem:[%s1459 + $0x8] sm:$0x1]
  %v1464 = vcombine.high %v1460, %v1460
  %v1466 = vunpack.c.l.s4 1966171168
  %v1467 = vunpack.c.0.s8 %v1466
  %v1468 = vlaneseq
  %v1469 = vshrl.u32 %v1468, 7
  %v1470 = vsub.s32 %v1467, %v1469
  %v1471 = vrot.slane %v1460, %v1470
  %v1473 = vunpack.c.l.s4 1966171168
  %v1474 = vunpack.c.0.s8 %v1473
  %v1475 = vlaneseq
  %v1476 = vshrl.u32 %v1475, 7
  %v1477 = vsub.s32 %v1474, %v1476
  %v1478 = vrot.slane %v1464, %v1477
  %v1479 = vcombine.high %v1471, %v1471
  %v1480 = vcombine.high %v1478, %v1478
  %v1482 = vunpack.c.l.s4 1966171168
  %v1483 = vunpack.c.0.s8 %v1482
  %v1484 = vlaneseq
  %v1485 = vshrl.u32 %v1484, 7
  %v1486 = vsub.s32 %v1483, %v1485
  %v1487 = vrot.slane %v1471, %v1486
  %v1489 = vunpack.c.l.s4 1966171168
  %v1490 = vunpack.c.0.s8 %v1489
  %v1491 = vlaneseq
  %v1492 = vshrl.u32 %v1491, 7
  %v1493 = vsub.s32 %v1490, %v1492
  %v1494 = vrot.slane %v1478, %v1493
  %v1496 = vunpack.c.l.s4 1966171168
  %v1497 = vunpack.c.0.s8 %v1496
  %v1498 = vlaneseq
  %v1499 = vshrl.u32 %v1498, 7
  %v1500 = vsub.s32 %v1497, %v1499
  %v1501 = vrot.slane %v1479, %v1500
  %v1503 = vunpack.c.l.s4 1966171168
  %v1504 = vunpack.c.0.s8 %v1503
  %v1505 = vlaneseq
  %v1506 = vshrl.u32 %v1505, 7
  %v1507 = vsub.s32 %v1504, %v1506
  %v1508 = vrot.slane %v1480, %v1507
  %v1509 = vcombine.high %v1487, %v1487
  %v1510 = vcombine.high %v1494, %v1494
  %v1511 = vcombine.high %v1501, %v1501
  %v1512 = vcombine.high %v1508, %v1508
  %v1514 = vunpack.c.l.s4 1966171168
  %v1515 = vunpack.c.0.s8 %v1514
  %v1516 = vlaneseq
  %v1517 = vshrl.u32 %v1516, 7
  %v1518 = vsub.s32 %v1515, %v1517
  %v1519 = vrot.slane %v1461, %v1518
  %v1521 = vunpack.c.l.s4 1966171168
  %v1522 = vunpack.c.0.s8 %v1521
  %v1523 = vlaneseq
  %v1524 = vshrl.u32 %v1523, 7
  %v1525 = vsub.s32 %v1522, %v1524
  %v1526 = vrot.slane %v1519, %v1525
  %1536 = vmatprep.subr.bf16.mxu0 %v685
  %1537 = vmatpush1.bf16.msra.mxu0 %v684
  %1538 = vmatprep.subr.bf16.mxu0 %v687
  %1539 = vmatpush1.bf16.msra.mxu0 %v686
  %1540 = vmatprep.subr.bf16.mxu0 %v689
  %1541 = vmatpush1.bf16.msra.mxu0 %v688
  %1542 = vmatprep.subr.bf16.mxu0 %v691
  %1543 = vmatpush1.bf16.msra.mxu0 %v690
  %1544 = vmatprep.subr.bf16.mxu0 %v693
  %1545 = vmatpush1.bf16.msra.mxu0 %v692
  %1546 = vmatprep.subr.bf16.mxu0 %v695
  %1547 = vmatpush1.bf16.msra.mxu0 %v694
  %1548 = vmatprep.subr.bf16.mxu0 %v697
  %1549 = vmatpush1.bf16.msra.mxu0 %v696
  %1550 = vmatprep.subr.bf16.mxu0 %v699
  %1551 = vmatpush1.bf16.msra.mxu0 %v698
  %1552 = vmatprep.subr.bf16.mxu0 %v701
  %1553 = vmatpush1.bf16.msra.mxu0 %v700
  %1554 = vmatprep.subr.bf16.mxu0 %v703
  %1555 = vmatpush1.bf16.msra.mxu0 %v702
  %1556 = vmatprep.subr.bf16.mxu0 %v705
  %1557 = vmatpush1.bf16.msra.mxu0 %v704
  %1558 = vmatprep.subr.bf16.mxu0 %v707
  %1559 = vmatpush1.bf16.msra.mxu0 %v706
  %1560 = vmatprep.subr.bf16.mxu0 %v709
  %1561 = vmatpush1.bf16.msra.mxu0 %v708
  %1562 = vmatprep.subr.bf16.mxu0 %v711
  %1563 = vmatpush1.bf16.msra.mxu0 %v710
  %1564 = vmatprep.subr.bf16.mxu0 %v713
  %1565 = vmatpush1.bf16.msra.mxu0 %v712
  %1566 = vmatprep.subr.bf16.mxu0 %v715
  %1567 = vmatpush1.bf16.msra.mxu0 %v714
  %1568 = vmatprep.mubr.bf16.mxu0 %v1501
  %1569 = vmatmul.mubr.bf16.gmra.mrb[0].mxu0 %v1487
  %v1570 = vpop.f32.mrb[0].mxu0
  %v1571 = vadd.f32 0.0, %v1570
  %v1572 = vpop.f32.mrb[0].mxu0
  %v1573 = vadd.f32 0.0, %v1572
  %v1574 = vpop.f32.mrb[0].mxu0
  %v1575 = vpop.f32.mrb[0].mxu0
  %1576 = vdwg.mxu0
  %1577 = vmatprep.subr.bf16.mxu0 %v717
  %1578 = vmatpush1.bf16.msra.mxu0 %v716
  %1579 = vmatprep.subr.bf16.mxu0 %v719
  %1580 = vmatpush1.bf16.msra.mxu0 %v718
  %1581 = vmatprep.subr.bf16.mxu0 %v721
  %1582 = vmatpush1.bf16.msra.mxu0 %v720
  %1583 = vmatprep.subr.bf16.mxu0 %v723
  %1584 = vmatpush1.bf16.msra.mxu0 %v722
  %1585 = vmatprep.subr.bf16.mxu0 %v725
  %1586 = vmatpush1.bf16.msra.mxu0 %v724
  %1587 = vmatprep.subr.bf16.mxu0 %v727
  %1588 = vmatpush1.bf16.msra.mxu0 %v726
  %1589 = vmatprep.subr.bf16.mxu0 %v729
  %1590 = vmatpush1.bf16.msra.mxu0 %v728
  %1591 = vmatprep.subr.bf16.mxu0 %v731
  %1592 = vmatpush1.bf16.msra.mxu0 %v730
  %1593 = vmatprep.subr.bf16.mxu0 %v733
  %1594 = vmatpush1.bf16.msra.mxu0 %v732
  %1595 = vmatprep.subr.bf16.mxu0 %v735
  %1596 = vmatpush1.bf16.msra.mxu0 %v734
  %1597 = vmatprep.subr.bf16.mxu0 %v737
  %1598 = vmatpush1.bf16.msra.mxu0 %v736
  %1599 = vmatprep.subr.bf16.mxu0 %v739
  %1600 = vmatpush1.bf16.msra.mxu0 %v738
  %1601 = vmatprep.subr.bf16.mxu0 %v741
  %1602 = vmatpush1.bf16.msra.mxu0 %v740
  %1603 = vmatprep.subr.bf16.mxu0 %v743
  %1604 = vmatpush1.bf16.msra.mxu0 %v742
  %1605 = vmatprep.subr.bf16.mxu0 %v745
  %1606 = vmatpush1.bf16.msra.mxu0 %v744
  %1607 = vmatprep.subr.bf16.mxu0 %v747
  %1608 = vmatpush1.bf16.msra.mxu0 %v746
  %1609 = vmatprep.mubr.bf16.mxu0 %v1511
  %1610 = vmatmul.mubr.bf16.gmra.mrb[0].mxu0 %v1509
  %v1611 = vpop.f32.mrb[0].mxu0
  %v1612 = vadd.f32 %v1571, %v1611
  %v1613 = vpop.f32.mrb[0].mxu0
  %v1614 = vadd.f32 %v1573, %v1613
  %v1615 = vpop.f32.mrb[0].mxu0
  %v1616 = vpop.f32.mrb[0].mxu0
  %1617 = vdwg.mxu0
  %1618 = vmatprep.subr.bf16.mxu0 %v749
  %1619 = vmatpush1.bf16.msra.mxu0 %v748
  %1620 = vmatprep.subr.bf16.mxu0 %v751
  %1621 = vmatpush1.bf16.msra.mxu0 %v750
  %1622 = vmatprep.subr.bf16.mxu0 %v753
  %1623 = vmatpush1.bf16.msra.mxu0 %v752
  %1624 = vmatprep.subr.bf16.mxu0 %v755
  %1625 = vmatpush1.bf16.msra.mxu0 %v754
  %1626 = vmatprep.subr.bf16.mxu0 %v757
  %1627 = vmatpush1.bf16.msra.mxu0 %v756
  %1628 = vmatprep.subr.bf16.mxu0 %v759
  %1629 = vmatpush1.bf16.msra.mxu0 %v758
  %1630 = vmatprep.subr.bf16.mxu0 %v761
  %1631 = vmatpush1.bf16.msra.mxu0 %v760
  %1632 = vmatprep.subr.bf16.mxu0 %v763
  %1633 = vmatpush1.bf16.msra.mxu0 %v762
  %1634 = vmatprep.subr.bf16.mxu0 %v765
  %1635 = vmatpush1.bf16.msra.mxu0 %v764
  %1636 = vmatprep.subr.bf16.mxu0 %v767
  %1637 = vmatpush1.bf16.msra.mxu0 %v766
  %1638 = vmatprep.subr.bf16.mxu0 %v769
  %1639 = vmatpush1.bf16.msra.mxu0 %v768
  %1640 = vmatprep.subr.bf16.mxu0 %v771
  %1641 = vmatpush1.bf16.msra.mxu0 %v770
  %1642 = vmatprep.subr.bf16.mxu0 %v773
  %1643 = vmatpush1.bf16.msra.mxu0 %v772
  %1644 = vmatprep.subr.bf16.mxu0 %v775
  %1645 = vmatpush1.bf16.msra.mxu0 %v774
  %1646 = vmatprep.subr.bf16.mxu0 %v777
  %1647 = vmatpush1.bf16.msra.mxu0 %v776
  %1648 = vmatprep.subr.bf16.mxu0 %v779
  %1649 = vmatpush1.bf16.msra.mxu0 %v778
  %1650 = vmatprep.mubr.bf16.mxu0 %v1508
  %1651 = vmatmul.mubr.bf16.gmra.mrb[0].mxu0 %v1494
  %v1652 = vpop.f32.mrb[0].mxu0
  %v1653 = vadd.f32 %v1612, %v1652
  %v1654 = vpop.f32.mrb[0].mxu0
  %v1655 = vadd.f32 %v1614, %v1654
  %v1656 = vpop.f32.mrb[0].mxu0
  %v1657 = vpop.f32.mrb[0].mxu0
  %1658 = vdwg.mxu0
  %1659 = vmatprep.subr.bf16.mxu0 %v781
  %1660 = vmatpush1.bf16.msra.mxu0 %v780
  %1661 = vmatprep.subr.bf16.mxu0 %v783
  %1662 = vmatpush1.bf16.msra.mxu0 %v782
  %1663 = vmatprep.subr.bf16.mxu0 %v785
  %1664 = vmatpush1.bf16.msra.mxu0 %v784
  %1665 = vmatprep.subr.bf16.mxu0 %v787
  %1666 = vmatpush1.bf16.msra.mxu0 %v786
  %1667 = vmatprep.subr.bf16.mxu0 %v789
  %1668 = vmatpush1.bf16.msra.mxu0 %v788
  %1669 = vmatprep.subr.bf16.mxu0 %v791
  %1670 = vmatpush1.bf16.msra.mxu0 %v790
  %1671 = vmatprep.subr.bf16.mxu0 %v793
  %1672 = vmatpush1.bf16.msra.mxu0 %v792
  %1673 = vmatprep.subr.bf16.mxu0 %v795
  %1674 = vmatpush1.bf16.msra.mxu0 %v794
  %1675 = vmatprep.subr.bf16.mxu0 %v797
  %1676 = vmatpush1.bf16.msra.mxu0 %v796
  %1677 = vmatprep.subr.bf16.mxu0 %v799
  %1678 = vmatpush1.bf16.msra.mxu0 %v798
  %1679 = vmatprep.subr.bf16.mxu0 %v801
  %1680 = vmatpush1.bf16.msra.mxu0 %v800
  %1681 = vmatprep.subr.bf16.mxu0 %v803
  %1682 = vmatpush1.bf16.msra.mxu0 %v802
  %1683 = vmatprep.subr.bf16.mxu0 %v805
  %1684 = vmatpush1.bf16.msra.mxu0 %v804
  %1685 = vmatprep.subr.bf16.mxu0 %v807
  %1686 = vmatpush1.bf16.msra.mxu0 %v806
  %1687 = vmatprep.subr.bf16.mxu0 %v809
  %1688 = vmatpush1.bf16.msra.mxu0 %v808
  %1689 = vmatprep.subr.bf16.mxu0 %v811
  %1690 = vmatpush1.bf16.msra.mxu0 %v810
  %1691 = vmatprep.mubr.bf16.mxu0 %v1512
  %1692 = vmatmul.mubr.bf16.gmra.mrb[0].mxu0 %v1510
  %v1693 = vpop.f32.mrb[0].mxu0
  %v1694 = vadd.f32 %v1653, %v1693
  %v1695 = vpop.f32.mrb[0].mxu0
  %v1696 = vadd.f32 %v1655, %v1695
  %v1697 = vpop.f32.mrb[0].mxu0
  %v1698 = vpop.f32.mrb[0].mxu0
  %1699 = vdwg.mxu0
  %1700 = vmatprep.subr.bf16.mxu0 %v813
  %1701 = vmatpush1.bf16.msra.mxu0 %v812
  %1702 = vmatprep.subr.bf16.mxu0 %v815
  %1703 = vmatpush1.bf16.msra.mxu0 %v814
  %1704 = vmatprep.subr.bf16.mxu0 %v817
  %1705 = vmatpush1.bf16.msra.mxu0 %v816
  %1706 = vmatprep.subr.bf16.mxu0 %v819
  %1707 = vmatpush1.bf16.msra.mxu0 %v818
  %1708 = vmatprep.subr.bf16.mxu0 %v821
  %1709 = vmatpush1.bf16.msra.mxu0 %v820
  %1710 = vmatprep.subr.bf16.mxu0 %v823
  %1711 = vmatpush1.bf16.msra.mxu0 %v822
  %1712 = vmatprep.subr.bf16.mxu0 %v825
  %1713 = vmatpush1.bf16.msra.mxu0 %v824
  %1714 = vmatprep.subr.bf16.mxu0 %v827
  %1715 = vmatpush1.bf16.msra.mxu0 %v826
  %1716 = vmatprep.subr.bf16.mxu0 0
  %1717 = vmatpush1.bf16.msra.mxu0 0
  %1718 = vmatprep.subr.bf16.mxu0 0
  %1719 = vmatpush1.bf16.msra.mxu0 0
  %1720 = vmatprep.subr.bf16.mxu0 0
  %1721 = vmatpush1.bf16.msra.mxu0 0
  %1722 = vmatprep.subr.bf16.mxu0 0
  %1723 = vmatpush1.bf16.msra.mxu0 0
  %1724 = vmatprep.subr.bf16.mxu0 0
  %1725 = vmatpush1.bf16.msra.mxu0 0
  %1726 = vmatprep.subr.bf16.mxu0 0
  %1727 = vmatpush1.bf16.msra.mxu0 0
  %1728 = vmatprep.subr.bf16.mxu0 0
  %1729 = vmatpush1.bf16.msra.mxu0 0
  %1730 = vmatprep.subr.bf16.mxu0 0
  %1731 = vmatpush1.bf16.msra.mxu0 0
  %1732 = vmatprep.mubr.bf16.mxu0 0
  %1733 = vmatmul.mubr.bf16.gmra.mrb[0].mxu0 %v1526
  %v1734 = vpop.f32.mrb[0].mxu0
  %v1735 = vadd.f32 %v1694, %v1734
  %v1736 = vpop.f32.mrb[0].mxu0
  %v1737 = vadd.f32 %v1696, %v1736
  %v1738 = vpop.f32.mrb[0].mxu0
  %v1739 = vpop.f32.mrb[0].mxu0
  %1740 = vdwg.mxu0
  %s1741 = scalar_lea.vmem %s0, 27
  %v1742 = vld [vmem:[%s1741] sm:$0xff]
  %v1743 = vld [vmem:[%s1741 + $0x8] sm:$0x1]
  %v1746 = vcombine.high %v1742, %v1742
  %v1748 = vunpack.c.l.s4 1966171168
  %v1749 = vunpack.c.0.s8 %v1748
  %v1750 = vlaneseq
  %v1751 = vshrl.u32 %v1750, 7
  %v1752 = vsub.s32 %v1749, %v1751
  %v1753 = vrot.slane %v1742, %v1752
  %v1755 = vunpack.c.l.s4 1966171168
  %v1756 = vunpack.c.0.s8 %v1755
  %v1757 = vlaneseq
  %v1758 = vshrl.u32 %v1757, 7
  %v1759 = vsub.s32 %v1756, %v1758
  %v1760 = vrot.slane %v1746, %v1759
  %v1761 = vcombine.high %v1753, %v1753
  %v1762 = vcombine.high %v1760, %v1760
  %v1764 = vunpack.c.l.s4 1966171168
  %v1765 = vunpack.c.0.s8 %v1764
  %v1766 = vlaneseq
  %v1767 = vshrl.u32 %v1766, 7
  %v1768 = vsub.s32 %v1765, %v1767
  %v1769 = vrot.slane %v1753, %v1768
  %v1771 = vunpack.c.l.s4 1966171168
  %v1772 = vunpack.c.0.s8 %v1771
  %v1773 = vlaneseq
  %v1774 = vshrl.u32 %v1773, 7
  %v1775 = vsub.s32 %v1772, %v1774
  %v1776 = vrot.slane %v1760, %v1775
  %v1778 = vunpack.c.l.s4 1966171168
  %v1779 = vunpack.c.0.s8 %v1778
  %v1780 = vlaneseq
  %v1781 = vshrl.u32 %v1780, 7
  %v1782 = vsub.s32 %v1779, %v1781
  %v1783 = vrot.slane %v1761, %v1782
  %v1785 = vunpack.c.l.s4 1966171168
  %v1786 = vunpack.c.0.s8 %v1785
  %v1787 = vlaneseq
  %v1788 = vshrl.u32 %v1787, 7
  %v1789 = vsub.s32 %v1786, %v1788
  %v1790 = vrot.slane %v1762, %v1789
  %v1791 = vcombine.high %v1769, %v1769
  %v1792 = vcombine.high %v1776, %v1776
  %v1793 = vcombine.high %v1783, %v1783
  %v1794 = vcombine.high %v1790, %v1790
  %v1796 = vunpack.c.l.s4 1966171168
  %v1797 = vunpack.c.0.s8 %v1796
  %v1798 = vlaneseq
  %v1799 = vshrl.u32 %v1798, 7
  %v1800 = vsub.s32 %v1797, %v1799
  %v1801 = vrot.slane %v1743, %v1800
  %v1803 = vunpack.c.l.s4 1966171168
  %v1804 = vunpack.c.0.s8 %v1803
  %v1805 = vlaneseq
  %v1806 = vshrl.u32 %v1805, 7
  %v1807 = vsub.s32 %v1804, %v1806
  %v1808 = vrot.slane %v1801, %v1807
  %1818 = vmatprep.subr.bf16.mxu0 %v685
  %1819 = vmatpush1.bf16.msra.mxu0 %v684
  %1820 = vmatprep.subr.bf16.mxu0 %v687
  %1821 = vmatpush1.bf16.msra.mxu0 %v686
  %1822 = vmatprep.subr.bf16.mxu0 %v689
  %1823 = vmatpush1.bf16.msra.mxu0 %v688
  %1824 = vmatprep.subr.bf16.mxu0 %v691
  %1825 = vmatpush1.bf16.msra.mxu0 %v690
  %1826 = vmatprep.subr.bf16.mxu0 %v693
  %1827 = vmatpush1.bf16.msra.mxu0 %v692
  %1828 = vmatprep.subr.bf16.mxu0 %v695
  %1829 = vmatpush1.bf16.msra.mxu0 %v694
  %1830 = vmatprep.subr.bf16.mxu0 %v697
  %1831 = vmatpush1.bf16.msra.mxu0 %v696
  %1832 = vmatprep.subr.bf16.mxu0 %v699
  %1833 = vmatpush1.bf16.msra.mxu0 %v698
  %1834 = vmatprep.subr.bf16.mxu0 %v701
  %1835 = vmatpush1.bf16.msra.mxu0 %v700
  %1836 = vmatprep.subr.bf16.mxu0 %v703
  %1837 = vmatpush1.bf16.msra.mxu0 %v702
  %1838 = vmatprep.subr.bf16.mxu0 %v705
  %1839 = vmatpush1.bf16.msra.mxu0 %v704
  %1840 = vmatprep.subr.bf16.mxu0 %v707
  %1841 = vmatpush1.bf16.msra.mxu0 %v706
  %1842 = vmatprep.subr.bf16.mxu0 %v709
  %1843 = vmatpush1.bf16.msra.mxu0 %v708
  %1844 = vmatprep.subr.bf16.mxu0 %v711
  %1845 = vmatpush1.bf16.msra.mxu0 %v710
  %1846 = vmatprep.subr.bf16.mxu0 %v713
  %1847 = vmatpush1.bf16.msra.mxu0 %v712
  %1848 = vmatprep.subr.bf16.mxu0 %v715
  %1849 = vmatpush1.bf16.msra.mxu0 %v714
  %1850 = vmatprep.mubr.bf16.mxu0 %v1783
  %1851 = vmatmul.mubr.bf16.gmra.mrb[0].mxu0 %v1769
  %v1852 = vpop.f32.mrb[0].mxu0
  %v1853 = vadd.f32 0.0, %v1852
  %v1854 = vpop.f32.mrb[0].mxu0
  %v1855 = vadd.f32 0.0, %v1854
  %v1856 = vpop.f32.mrb[0].mxu0
  %v1857 = vpop.f32.mrb[0].mxu0
  %1858 = vdwg.mxu0
  %1859 = vmatprep.subr.bf16.mxu0 %v717
  %1860 = vmatpush1.bf16.msra.mxu0 %v716
  %1861 = vmatprep.subr.bf16.mxu0 %v719
  %1862 = vmatpush1.bf16.msra.mxu0 %v718
  %1863 = vmatprep.subr.bf16.mxu0 %v721
  %1864 = vmatpush1.bf16.msra.mxu0 %v720
  %1865 = vmatprep.subr.bf16.mxu0 %v723
  %1866 = vmatpush1.bf16.msra.mxu0 %v722
  %1867 = vmatprep.subr.bf16.mxu0 %v725
  %1868 = vmatpush1.bf16.msra.mxu0 %v724
  %1869 = vmatprep.subr.bf16.mxu0 %v727
  %1870 = vmatpush1.bf16.msra.mxu0 %v726
  %1871 = vmatprep.subr.bf16.mxu0 %v729
  %1872 = vmatpush1.bf16.msra.mxu0 %v728
  %1873 = vmatprep.subr.bf16.mxu0 %v731
  %1874 = vmatpush1.bf16.msra.mxu0 %v730
  %1875 = vmatprep.subr.bf16.mxu0 %v733
  %1876 = vmatpush1.bf16.msra.mxu0 %v732
  %1877 = vmatprep.subr.bf16.mxu0 %v735
  %1878 = vmatpush1.bf16.msra.mxu0 %v734
  %1879 = vmatprep.subr.bf16.mxu0 %v737
  %1880 = vmatpush1.bf16.msra.mxu0 %v736
  %1881 = vmatprep.subr.bf16.mxu0 %v739
  %1882 = vmatpush1.bf16.msra.mxu0 %v738
  %1883 = vmatprep.subr.bf16.mxu0 %v741
  %1884 = vmatpush1.bf16.msra.mxu0 %v740
  %1885 = vmatprep.subr.bf16.mxu0 %v743
  %1886 = vmatpush1.bf16.msra.mxu0 %v742
  %1887 = vmatprep.subr.bf16.mxu0 %v745
  %1888 = vmatpush1.bf16.msra.mxu0 %v744
  %1889 = vmatprep.subr.bf16.mxu0 %v747
  %1890 = vmatpush1.bf16.msra.mxu0 %v746
  %1891 = vmatprep.mubr.bf16.mxu0 %v1793
  %1892 = vmatmul.mubr.bf16.gmra.mrb[0].mxu0 %v1791
  %v1893 = vpop.f32.mrb[0].mxu0
  %v1894 = vadd.f32 %v1853, %v1893
  %v1895 = vpop.f32.mrb[0].mxu0
  %v1896 = vadd.f32 %v1855, %v1895
  %v1897 = vpop.f32.mrb[0].mxu0
  %v1898 = vpop.f32.mrb[0].mxu0
  %1899 = vdwg.mxu0
  %1900 = vmatprep.subr.bf16.mxu0 %v749
  %1901 = vmatpush1.bf16.msra.mxu0 %v748
  %1902 = vmatprep.subr.bf16.mxu0 %v751
  %1903 = vmatpush1.bf16.msra.mxu0 %v750
  %1904 = vmatprep.subr.bf16.mxu0 %v753
  %1905 = vmatpush1.bf16.msra.mxu0 %v752
  %1906 = vmatprep.subr.bf16.mxu0 %v755
  %1907 = vmatpush1.bf16.msra.mxu0 %v754
  %1908 = vmatprep.subr.bf16.mxu0 %v757
  %1909 = vmatpush1.bf16.msra.mxu0 %v756
  %1910 = vmatprep.subr.bf16.mxu0 %v759
  %1911 = vmatpush1.bf16.msra.mxu0 %v758
  %1912 = vmatprep.subr.bf16.mxu0 %v761
  %1913 = vmatpush1.bf16.msra.mxu0 %v760
  %1914 = vmatprep.subr.bf16.mxu0 %v763
  %1915 = vmatpush1.bf16.msra.mxu0 %v762
  %1916 = vmatprep.subr.bf16.mxu0 %v765
  %1917 = vmatpush1.bf16.msra.mxu0 %v764
  %1918 = vmatprep.subr.bf16.mxu0 %v767
  %1919 = vmatpush1.bf16.msra.mxu0 %v766
  %1920 = vmatprep.subr.bf16.mxu0 %v769
  %1921 = vmatpush1.bf16.msra.mxu0 %v768
  %1922 = vmatprep.subr.bf16.mxu0 %v771
  %1923 = vmatpush1.bf16.msra.mxu0 %v770
  %1924 = vmatprep.subr.bf16.mxu0 %v773
  %1925 = vmatpush1.bf16.msra.mxu0 %v772
  %1926 = vmatprep.subr.bf16.mxu0 %v775
  %1927 = vmatpush1.bf16.msra.mxu0 %v774
  %1928 = vmatprep.subr.bf16.mxu0 %v777
  %1929 = vmatpush1.bf16.msra.mxu0 %v776
  %1930 = vmatprep.subr.bf16.mxu0 %v779
  %1931 = vmatpush1.bf16.msra.mxu0 %v778
  %1932 = vmatprep.mubr.bf16.mxu0 %v1790
  %1933 = vmatmul.mubr.bf16.gmra.mrb[0].mxu0 %v1776
  %v1934 = vpop.f32.mrb[0].mxu0
  %v1935 = vadd.f32 %v1894, %v1934
  %v1936 = vpop.f32.mrb[0].mxu0
  %v1937 = vadd.f32 %v1896, %v1936
  %v1938 = vpop.f32.mrb[0].mxu0
  %v1939 = vpop.f32.mrb[0].mxu0
  %1940 = vdwg.mxu0
  %1941 = vmatprep.subr.bf16.mxu0 %v781
  %1942 = vmatpush1.bf16.msra.mxu0 %v780
  %1943 = vmatprep.subr.bf16.mxu0 %v783
  %1944 = vmatpush1.bf16.msra.mxu0 %v782
  %1945 = vmatprep.subr.bf16.mxu0 %v785
  %1946 = vmatpush1.bf16.msra.mxu0 %v784
  %1947 = vmatprep.subr.bf16.mxu0 %v787
  %1948 = vmatpush1.bf16.msra.mxu0 %v786
  %1949 = vmatprep.subr.bf16.mxu0 %v789
  %1950 = vmatpush1.bf16.msra.mxu0 %v788
  %1951 = vmatprep.subr.bf16.mxu0 %v791
  %1952 = vmatpush1.bf16.msra.mxu0 %v790
  %1953 = vmatprep.subr.bf16.mxu0 %v793
  %1954 = vmatpush1.bf16.msra.mxu0 %v792
  %1955 = vmatprep.subr.bf16.mxu0 %v795
  %1956 = vmatpush1.bf16.msra.mxu0 %v794
  %1957 = vmatprep.subr.bf16.mxu0 %v797
  %1958 = vmatpush1.bf16.msra.mxu0 %v796
  %1959 = vmatprep.subr.bf16.mxu0 %v799
  %1960 = vmatpush1.bf16.msra.mxu0 %v798
  %1961 = vmatprep.subr.bf16.mxu0 %v801
  %1962 = vmatpush1.bf16.msra.mxu0 %v800
  %1963 = vmatprep.subr.bf16.mxu0 %v803
  %1964 = vmatpush1.bf16.msra.mxu0 %v802
  %1965 = vmatprep.subr.bf16.mxu0 %v805
  %1966 = vmatpush1.bf16.msra.mxu0 %v804
  %1967 = vmatprep.subr.bf16.mxu0 %v807
  %1968 = vmatpush1.bf16.msra.mxu0 %v806
  %1969 = vmatprep.subr.bf16.mxu0 %v809
  %1970 = vmatpush1.bf16.msra.mxu0 %v808
  %1971 = vmatprep.subr.bf16.mxu0 %v811
  %1972 = vmatpush1.bf16.msra.mxu0 %v810
  %1973 = vmatprep.mubr.bf16.mxu0 %v1794
  %1974 = vmatmul.mubr.bf16.gmra.mrb[0].mxu0 %v1792
  %v1975 = vpop.f32.mrb[0].mxu0
  %v1976 = vadd.f32 %v1935, %v1975
  %v1977 = vpop.f32.mrb[0].mxu0
  %v1978 = vadd.f32 %v1937, %v1977
  %v1979 = vpop.f32.mrb[0].mxu0
  %v1980 = vpop.f32.mrb[0].mxu0
  %1981 = vdwg.mxu0
  %1982 = vmatprep.subr.bf16.mxu0 %v813
  %1983 = vmatpush1.bf16.msra.mxu0 %v812
  %1984 = vmatprep.subr.bf16.mxu0 %v815
  %1985 = vmatpush1.bf16.msra.mxu0 %v814
  %1986 = vmatprep.subr.bf16.mxu0 %v817
  %1987 = vmatpush1.bf16.msra.mxu0 %v816
  %1988 = vmatprep.subr.bf16.mxu0 %v819
  %1989 = vmatpush1.bf16.msra.mxu0 %v818
  %1990 = vmatprep.subr.bf16.mxu0 %v821
  %1991 = vmatpush1.bf16.msra.mxu0 %v820
  %1992 = vmatprep.subr.bf16.mxu0 %v823
  %1993 = vmatpush1.bf16.msra.mxu0 %v822
  %1994 = vmatprep.subr.bf16.mxu0 %v825
  %1995 = vmatpush1.bf16.msra.mxu0 %v824
  %1996 = vmatprep.subr.bf16.mxu0 %v827
  %1997 = vmatpush1.bf16.msra.mxu0 %v826
  %1998 = vmatprep.subr.bf16.mxu0 0
  %1999 = vmatpush1.bf16.msra.mxu0 0
  %2000 = vmatprep.subr.bf16.mxu0 0
  %2001 = vmatpush1.bf16.msra.mxu0 0
  %2002 = vmatprep.subr.bf16.mxu0 0
  %2003 = vmatpush1.bf16.msra.mxu0 0
  %2004 = vmatprep.subr.bf16.mxu0 0
  %2005 = vmatpush1.bf16.msra.mxu0 0
  %2006 = vmatprep.subr.bf16.mxu0 0
  %2007 = vmatpush1.bf16.msra.mxu0 0
  %2008 = vmatprep.subr.bf16.mxu0 0
  %2009 = vmatpush1.bf16.msra.mxu0 0
  %2010 = vmatprep.subr.bf16.mxu0 0
  %2011 = vmatpush1.bf16.msra.mxu0 0
  %2012 = vmatprep.subr.bf16.mxu0 0
  %2013 = vmatpush1.bf16.msra.mxu0 0
  %2014 = vmatprep.mubr.bf16.mxu0 0
  %2015 = vmatmul.mubr.bf16.gmra.mrb[0].mxu0 %v1808
  %v2016 = vpop.f32.mrb[0].mxu0
  %v2017 = vadd.f32 %v1976, %v2016
  %v2018 = vpop.f32.mrb[0].mxu0
  %v2019 = vadd.f32 %v1978, %v2018
  %v2020 = vpop.f32.mrb[0].mxu0
  %v2021 = vpop.f32.mrb[0].mxu0
  %2022 = vdwg.mxu0
  %vm2023 = vcmask 1041408
  %v2024 = vsel %vm2023, %v1171, 0.0
  %v2025 = vrot.slane %v2024, 4
  %v2026 = vadd.f32 %v2024, %v2025
  %v2027 = vrot.slane %v2026, 2
  %v2028 = vadd.f32 %v2026, %v2027
  %v2029 = vrot.slane %v2028, 1
  %v2030 = vadd.f32 %v2028, %v2029
  %v2031 = vsel %vm2023, %v1173, 0.0
  %v2032 = vrot.slane %v2031, 4
  %v2033 = vadd.f32 %v2031, %v2032
  %v2034 = vrot.slane %v2033, 2
  %v2035 = vadd.f32 %v2033, %v2034
  %v2036 = vrot.slane %v2035, 1
  %v2037 = vadd.f32 %v2035, %v2036
  %v2038 = vadd.f32 %v2030, 0.0
  %v2039 = vadd.f32 %v2037, 0.0
  %v2040 = vsel %vm2023, %v1453, 0.0
  %v2041 = vrot.slane %v2040, 4
  %v2042 = vadd.f32 %v2040, %v2041
  %v2043 = vrot.slane %v2042, 2
  %v2044 = vadd.f32 %v2042, %v2043
  %v2045 = vrot.slane %v2044, 1
  %v2046 = vadd.f32 %v2044, %v2045
  %v2047 = vsel %vm2023, %v1455, 0.0
  %v2048 = vrot.slane %v2047, 4
  %v2049 = vadd.f32 %v2047, %v2048
  %v2050 = vrot.slane %v2049, 2
  %v2051 = vadd.f32 %v2049, %v2050
  %v2052 = vrot.slane %v2051, 1
  %v2053 = vadd.f32 %v2051, %v2052
  %v2054 = vadd.f32 %v2038, %v2046
  %v2055 = vadd.f32 %v2039, %v2053
  %v2056 = vsel %vm2023, %v1735, 0.0
  %v2057 = vrot.slane %v2056, 4
  %v2058 = vadd.f32 %v2056, %v2057
  %v2059 = vrot.slane %v2058, 2
  %v2060 = vadd.f32 %v2058, %v2059
  %v2061 = vrot.slane %v2060, 1
  %v2062 = vadd.f32 %v2060, %v2061
  %v2063 = vsel %vm2023, %v1737, 0.0
  %v2064 = vrot.slane %v2063, 4
  %v2065 = vadd.f32 %v2063, %v2064
  %v2066 = vrot.slane %v2065, 2
  %v2067 = vadd.f32 %v2065, %v2066
  %v2068 = vrot.slane %v2067, 1
  %v2069 = vadd.f32 %v2067, %v2068
  %v2070 = vadd.f32 %v2054, %v2062
  %v2071 = vadd.f32 %v2055, %v2069
  %v2072 = vsel %vm2023, %v2017, 0.0
  %v2073 = vrot.slane %v2072, 4
  %v2074 = vadd.f32 %v2072, %v2073
  %v2075 = vrot.slane %v2074, 2
  %v2076 = vadd.f32 %v2074, %v2075
  %v2077 = vrot.slane %v2076, 1
  %v2078 = vadd.f32 %v2076, %v2077
  %v2079 = vsel %vm2023, %v2019, 0.0
  %v2080 = vrot.slane %v2079, 4
  %v2081 = vadd.f32 %v2079, %v2080
  %v2082 = vrot.slane %v2081, 2
  %v2083 = vadd.f32 %v2081, %v2082
  %v2084 = vrot.slane %v2083, 1
  %v2085 = vadd.f32 %v2083, %v2084
  %v2086 = vadd.f32 %v2070, %v2078
  %v2087 = vadd.f32 %v2071, %v2085
  %v2088 = vmul.f32 %v1171, %v1171
  %v2089 = vmul.f32 %v1173, %v1173
  %v2090 = vsel %vm2023, %v2088, 0.0
  %v2091 = vrot.slane %v2090, 4
  %v2092 = vadd.f32 %v2090, %v2091
  %v2093 = vrot.slane %v2092, 2
  %v2094 = vadd.f32 %v2092, %v2093
  %v2095 = vrot.slane %v2094, 1
  %v2096 = vadd.f32 %v2094, %v2095
  %v2097 = vsel %vm2023, %v2089, 0.0
  %v2098 = vrot.slane %v2097, 4
  %v2099 = vadd.f32 %v2097, %v2098
  %v2100 = vrot.slane %v2099, 2
  %v2101 = vadd.f32 %v2099, %v2100
  %v2102 = vrot.slane %v2101, 1
  %v2103 = vadd.f32 %v2101, %v2102
  %v2104 = vadd.f32 %v2096, 0.0
  %v2105 = vadd.f32 %v2103, 0.0
  %v2106 = vmul.f32 %v1453, %v1453
  %v2107 = vmul.f32 %v1455, %v1455
  %v2108 = vsel %vm2023, %v2106, 0.0
  %v2109 = vrot.slane %v2108, 4
  %v2110 = vadd.f32 %v2108, %v2109
  %v2111 = vrot.slane %v2110, 2
  %v2112 = vadd.f32 %v2110, %v2111
  %v2113 = vrot.slane %v2112, 1
  %v2114 = vadd.f32 %v2112, %v2113
  %v2115 = vsel %vm2023, %v2107, 0.0
  %v2116 = vrot.slane %v2115, 4
  %v2117 = vadd.f32 %v2115, %v2116
  %v2118 = vrot.slane %v2117, 2
  %v2119 = vadd.f32 %v2117, %v2118
  %v2120 = vrot.slane %v2119, 1
  %v2121 = vadd.f32 %v2119, %v2120
  %v2122 = vadd.f32 %v2104, %v2114
  %v2123 = vadd.f32 %v2105, %v2121
  %v2124 = vmul.f32 %v1735, %v1735
  %v2125 = vmul.f32 %v1737, %v1737
  %v2126 = vsel %vm2023, %v2124, 0.0
  %v2127 = vrot.slane %v2126, 4
  %v2128 = vadd.f32 %v2126, %v2127
  %v2129 = vrot.slane %v2128, 2
  %v2130 = vadd.f32 %v2128, %v2129
  %v2131 = vrot.slane %v2130, 1
  %v2132 = vadd.f32 %v2130, %v2131
  %v2133 = vsel %vm2023, %v2125, 0.0
  %v2134 = vrot.slane %v2133, 4
  %v2135 = vadd.f32 %v2133, %v2134
  %v2136 = vrot.slane %v2135, 2
  %v2137 = vadd.f32 %v2135, %v2136
  %v2138 = vrot.slane %v2137, 1
  %v2139 = vadd.f32 %v2137, %v2138
  %v2140 = vadd.f32 %v2122, %v2132
  %v2141 = vadd.f32 %v2123, %v2139
  %v2142 = vmul.f32 %v2017, %v2017
  %v2143 = vmul.f32 %v2019, %v2019
  %v2144 = vsel %vm2023, %v2142, 0.0
  %v2145 = vrot.slane %v2144, 4
  %v2146 = vadd.f32 %v2144, %v2145
  %v2147 = vrot.slane %v2146, 2
  %v2148 = vadd.f32 %v2146, %v2147
  %v2149 = vrot.slane %v2148, 1
  %v2150 = vadd.f32 %v2148, %v2149
  %v2151 = vsel %vm2023, %v2143, 0.0
  %v2152 = vrot.slane %v2151, 4
  %v2153 = vadd.f32 %v2151, %v2152
  %v2154 = vrot.slane %v2153, 2
  %v2155 = vadd.f32 %v2153, %v2154
  %v2156 = vrot.slane %v2155, 1
  %v2157 = vadd.f32 %v2155, %v2156
  %v2158 = vadd.f32 %v2140, %v2150
  %v2159 = vadd.f32 %v2141, %v2157
  %v2160 = vmul.f32 %v2086, 0.125
  %v2161 = vmul.f32 %v2087, 0.125
  %v2162 = vmul.f32 %v2158, 0.125
  %v2163 = vmul.f32 %v2159, 0.125
  %v2164 = vmul.f32 %v2160, %v2160
  %v2165 = vmul.f32 %v2161, %v2161
  %v2166 = vsub.f32 %v2162, %v2164
  %v2167 = vsub.f32 %v2163, %v2165
  %v2168 = vmax.f32 %v2166, 0.0
  %v2169 = vmax.f32 %v2167, 0.0
  %v2170 = vadd.f32 %v2168, 1e-05
  %v2171 = vadd.f32 %v2169, 1e-05
  %v2172 = vrsqrt.pop %v2170
  %v2173 = vrsqrt.pop %v2171
  %v2174 = vld [vmem:[%s2] sm:$0x3]
  %v2177 = vcombine.low %v2172, %v2173
  %v2179 = vunpack.c.l.s4 1966171168
  %v2180 = vunpack.c.0.s8 %v2179
  %v2181 = vlaneseq
  %v2182 = vshrl.u32 %v2181, 7
  %v2183 = vsub.s32 %v2180, %v2182
  %v2184 = vrot.slane %v2177, %v2183
  %v2186 = vunpack.c.l.s4 1966171168
  %v2187 = vunpack.c.0.s8 %v2186
  %v2188 = vlaneseq
  %v2189 = vshrl.u32 %v2188, 7
  %v2190 = vsub.s32 %v2187, %v2189
  %v2191 = vrot.slane %v2184, %v2190
  %v2193 = vmul.f32 %v2174, %v2191
  %v2194 = vld [vmem:[%s3] sm:$0x3]
  %v2196 = vlaneseq
  %v2197 = vshrl.u32 %v2196, 7
  %v2198 = vsub.s32 0, %v2197
  %v2199 = vrot.slane %v2193, %v2198
  %v2200 = vlaneseq
  %v2201 = vshrl.u32 %v2200, 7
  %v2202 = vsub.s32 1, %v2201
  %v2203 = vrot.slane %v2193, %v2202
  %v2206 = vmul.f32 %v2160, %v2199
  %v2207 = vmul.f32 %v2161, %v2203
  %v2210 = vcombine.low %v2206, %v2207
  %v2212 = vunpack.c.l.s4 1966171168
  %v2213 = vunpack.c.0.s8 %v2212
  %v2214 = vlaneseq
  %v2215 = vshrl.u32 %v2214, 7
  %v2216 = vsub.s32 %v2213, %v2215
  %v2217 = vrot.slane %v2210, %v2216
  %v2219 = vunpack.c.l.s4 1966171168
  %v2220 = vunpack.c.0.s8 %v2219
  %v2221 = vlaneseq
  %v2222 = vshrl.u32 %v2221, 7
  %v2223 = vsub.s32 %v2220, %v2222
  %v2224 = vrot.slane %v2217, %v2223
  %v2226 = vsub.f32 %v2194, %v2224
  %v2227 = vmul.f32 %v1171, %v2199
  %v2228 = vmul.f32 %v1173, %v2203
  %v2230 = vlaneseq
  %v2231 = vshrl.u32 %v2230, 7
  %v2232 = vsub.s32 0, %v2231
  %v2233 = vrot.slane %v2226, %v2232
  %v2234 = vlaneseq
  %v2235 = vshrl.u32 %v2234, 7
  %v2236 = vsub.s32 1, %v2235
  %v2237 = vrot.slane %v2226, %v2236
  %v2240 = vadd.f32 %v2227, %v2233
  %v2241 = vadd.f32 %v2228, %v2237
  %v2242 = vmax.f32 %v2240, 0.0
  %v2243 = vmax.f32 %v2241, 0.0
  %v2244 = vmul.f32 %v1453, %v2199
  %v2245 = vmul.f32 %v1455, %v2203
  %v2246 = vadd.f32 %v2244, %v2233
  %v2247 = vadd.f32 %v2245, %v2237
  %v2248 = vmax.f32 %v2246, 0.0
  %v2249 = vmax.f32 %v2247, 0.0
  %v2250 = vmul.f32 %v1735, %v2199
  %v2251 = vmul.f32 %v1737, %v2203
  %v2252 = vadd.f32 %v2250, %v2233
  %v2253 = vadd.f32 %v2251, %v2237
  %v2254 = vmax.f32 %v2252, 0.0
  %v2255 = vmax.f32 %v2253, 0.0
  %v2256 = vmul.f32 %v2017, %v2199
  %v2257 = vmul.f32 %v2019, %v2203
  %v2258 = vadd.f32 %v2256, %v2233
  %v2259 = vadd.f32 %v2257, %v2237
  %v2260 = vmax.f32 %v2258, 0.0
  %v2261 = vmax.f32 %v2259, 0.0
  %v2262 = vmax.f32 %v2242, %v2248
  %v2263 = vmax.f32 %v2243, %v2249
  %v2264 = vmax.f32 %v2254, %v2260
  %v2265 = vmax.f32 %v2255, %v2261
  %v2266 = vmax.f32 %v2262, %v2264
  %v2267 = vmax.f32 %v2263, %v2265
  %v2268 = vld [vmem:[%s4] sm:$0xff]
  %v2269 = vld [vmem:[%s4 + $0x8] sm:$0xff]
  %v2270 = vld [vmem:[%s4 + $0x10] sm:$0xff]
  %v2271 = vld [vmem:[%s4 + $0x18] sm:$0xff]
  %v2272 = vld [vmem:[%s4 + $0x20] sm:$0xff]
  %v2273 = vld [vmem:[%s4 + $0x28] sm:$0xff]
  %v2274 = vld [vmem:[%s4 + $0x30] sm:$0xff]
  %v2275 = vld [vmem:[%s4 + $0x38] sm:$0xff]
  %v2276 = vld [vmem:[%s4 + $0x40] sm:$0xff]
  %v2277 = vld [vmem:[%s4 + $0x48] sm:$0xff]
  %v2278 = vld [vmem:[%s4 + $0x50] sm:$0xff]
  %v2279 = vld [vmem:[%s4 + $0x58] sm:$0xff]
  %v2280 = vld [vmem:[%s4 + $0x60] sm:$0xff]
  %v2281 = vld [vmem:[%s4 + $0x68] sm:$0xff]
  %v2282 = vld [vmem:[%s4 + $0x70] sm:$0xff]
  %v2283 = vld [vmem:[%s4 + $0x78] sm:$0xff]
  %v2284 = vld [vmem:[%s4 + $0x80] sm:$0xff]
  %v2285 = vld [vmem:[%s4 + $0x88] sm:$0xff]
  %v2286 = vld [vmem:[%s4 + $0x90] sm:$0xff]
  %v2287 = vld [vmem:[%s4 + $0x98] sm:$0xff]
  %v2288 = vld [vmem:[%s4 + $0xa0] sm:$0xff]
  %v2289 = vld [vmem:[%s4 + $0xa8] sm:$0xff]
  %v2290 = vld [vmem:[%s4 + $0xb0] sm:$0xff]
  %v2291 = vld [vmem:[%s4 + $0xb8] sm:$0xff]
  %v2292 = vld [vmem:[%s4 + $0xc0] sm:$0xff]
  %v2293 = vld [vmem:[%s4 + $0xc8] sm:$0xff]
  %v2294 = vld [vmem:[%s4 + $0xd0] sm:$0xff]
  %v2295 = vld [vmem:[%s4 + $0xd8] sm:$0xff]
  %v2296 = vld [vmem:[%s4 + $0xe0] sm:$0xff]
  %v2297 = vld [vmem:[%s4 + $0xe8] sm:$0xff]
  %v2298 = vld [vmem:[%s4 + $0xf0] sm:$0xff]
  %v2299 = vld [vmem:[%s4 + $0xf8] sm:$0xff]
  %v2300 = vld [vmem:[%s5] sm:$0x1]
  %v2302 = vlaneseq
  %v2303 = vshrl.u32 %v2302, 7
  %v2304 = vsub.s32 0, %v2303
  %v2305 = vrot.slane %v2300, %v2304
  %2307 = vmatprep.subr.mxu0 0.0
  %2308 = vmatpush1.msra.mxu0 %v2268
  %2309 = vmatprep.subr.mxu0 0.0
  %2310 = vmatpush1.msra.mxu0 %v2269
  %2311 = vmatprep.subr.mxu0 0.0
  %2312 = vmatpush1.msra.mxu0 %v2270
  %2313 = vmatprep.subr.mxu0 0.0
  %2314 = vmatpush1.msra.mxu0 %v2271
  %2315 = vmatprep.subr.mxu0 0.0
  %2316 = vmatpush1.msra.mxu0 %v2272
  %2317 = vmatprep.subr.mxu0 0.0
  %2318 = vmatpush1.msra.mxu0 %v2273
  %2319 = vmatprep.subr.mxu0 0.0
  %2320 = vmatpush1.msra.mxu0 %v2274
  %2321 = vmatprep.subr.mxu0 0.0
  %2322 = vmatpush1.msra.mxu0 %v2275
  %2323 = vmatprep.subr.mxu0 0.0
  %2324 = vmatpush1.msra.mxu0 %v2276
  %2325 = vmatprep.subr.mxu0 0.0
  %2326 = vmatpush1.msra.mxu0 %v2277
  %2327 = vmatprep.subr.mxu0 0.0
  %2328 = vmatpush1.msra.mxu0 %v2278
  %2329 = vmatprep.subr.mxu0 0.0
  %2330 = vmatpush1.msra.mxu0 %v2279
  %2331 = vmatprep.subr.mxu0 0.0
  %2332 = vmatpush1.msra.mxu0 %v2280
  %2333 = vmatprep.subr.mxu0 0.0
  %2334 = vmatpush1.msra.mxu0 %v2281
  %2335 = vmatprep.subr.mxu0 0.0
  %2336 = vmatpush1.msra.mxu0 %v2282
  %2337 = vmatprep.subr.mxu0 0.0
  %2338 = vmatpush1.msra.mxu0 %v2283
  %2339 = vmatprep.subr.mxu0 0.0
  %2340 = vmatpush1.msra.mxu0 %v2284
  %2341 = vmatprep.subr.mxu0 0.0
  %2342 = vmatpush1.msra.mxu0 %v2285
  %2343 = vmatprep.subr.mxu0 0.0
  %2344 = vmatpush1.msra.mxu0 %v2286
  %2345 = vmatprep.subr.mxu0 0.0
  %2346 = vmatpush1.msra.mxu0 %v2287
  %2347 = vmatprep.subr.mxu0 0.0
  %2348 = vmatpush1.msra.mxu0 %v2288
  %2349 = vmatprep.subr.mxu0 0.0
  %2350 = vmatpush1.msra.mxu0 %v2289
  %2351 = vmatprep.subr.mxu0 0.0
  %2352 = vmatpush1.msra.mxu0 %v2290
  %2353 = vmatprep.subr.mxu0 0.0
  %2354 = vmatpush1.msra.mxu0 %v2291
  %2355 = vmatprep.subr.mxu0 0.0
  %2356 = vmatpush1.msra.mxu0 %v2292
  %2357 = vmatprep.subr.mxu0 0.0
  %2358 = vmatpush1.msra.mxu0 %v2293
  %2359 = vmatprep.subr.mxu0 0.0
  %2360 = vmatpush1.msra.mxu0 %v2294
  %2361 = vmatprep.subr.mxu0 0.0
  %2362 = vmatpush1.msra.mxu0 %v2295
  %2363 = vmatprep.subr.mxu0 0.0
  %2364 = vmatpush1.msra.mxu0 %v2296
  %2365 = vmatprep.subr.mxu0 0.0
  %2366 = vmatpush1.msra.mxu0 %v2297
  %2367 = vmatprep.subr.mxu0 0.0
  %2368 = vmatpush1.msra.mxu0 %v2298
  %2369 = vmatprep.subr.mxu0 0.0
  %2370 = vmatpush1.msra.mxu0 %v2299
  %2371 = vmatprep.mubr.f32.mxu0 %v2267
  %2372 = vmatmul.mubr.f32.gmra.mrb[0].mxu0 %v2266
  %v2373 = vpop.f32.mrb[0].mxu0
  %v2374 = vadd.f32 %v2305, %v2373
  %v2375 = vpop.f32.mrb[0].mxu0
  %2376 = vdwg.mxu0
  %vm2377 = vcmask 254976
  %2378 = vst.msk [vmem:[%s8] sm:$0x3] %vm2377, %v2374
  %v2379 = vld [vmem:[%s6] sm:$0xff]
  %v2380 = vld [vmem:[%s6 + $0x8] sm:$0xff]
  %v2381 = vld [vmem:[%s6 + $0x10] sm:$0xff]
  %v2382 = vld [vmem:[%s6 + $0x18] sm:$0xff]
  %vm2383 = vcmask 261120
  %v2385 = vsel %vm2383, %v2374, 0
  %2387 = vmatprep.subr.mxu0 0.0
  %2388 = vmatpush1.msra.mxu0 %v2379
  %2389 = vmatprep.subr.mxu0 0.0
  %2390 = vmatpush1.msra.mxu0 %v2380
  %2391 = vmatprep.subr.mxu0 0.0
  %2392 = vmatpush1.msra.mxu0 %v2381
  %2393 = vmatprep.subr.mxu0 0.0
  %2394 = vmatpush1.msra.mxu0 %v2382
  %2395 = vmatprep.subr.mxu0 0.0
  %2396 = vmatpush1.msra.mxu0 0.0
  %2397 = vmatprep.subr.mxu0 0.0
  %2398 = vmatpush1.msra.mxu0 0.0
  %2399 = vmatprep.subr.mxu0 0.0
  %2400 = vmatpush1.msra.mxu0 0.0
  %2401 = vmatprep.subr.mxu0 0.0
  %2402 = vmatpush1.msra.mxu0 0.0
  %2403 = vmatprep.subr.mxu0 0.0
  %2404 = vmatpush1.msra.mxu0 0.0
  %2405 = vmatprep.subr.mxu0 0.0
  %2406 = vmatpush1.msra.mxu0 0.0
  %2407 = vmatprep.subr.mxu0 0.0
  %2408 = vmatpush1.msra.mxu0 0.0
  %2409 = vmatprep.subr.mxu0 0.0
  %2410 = vmatpush1.msra.mxu0 0.0
  %2411 = vmatprep.subr.mxu0 0.0
  %2412 = vmatpush1.msra.mxu0 0.0
  %2413 = vmatprep.subr.mxu0 0.0
  %2414 = vmatpush1.msra.mxu0 0.0
  %2415 = vmatprep.subr.mxu0 0.0
  %2416 = vmatpush1.msra.mxu0 0.0
  %2417 = vmatprep.subr.mxu0 0.0
  %2418 = vmatpush1.msra.mxu0 0.0
  %2419 = vmatprep.subr.mxu0 0.0
  %2420 = vmatpush1.msra.mxu0 0.0
  %2421 = vmatprep.subr.mxu0 0.0
  %2422 = vmatpush1.msra.mxu0 0.0
  %2423 = vmatprep.subr.mxu0 0.0
  %2424 = vmatpush1.msra.mxu0 0.0
  %2425 = vmatprep.subr.mxu0 0.0
  %2426 = vmatpush1.msra.mxu0 0.0
  %2427 = vmatprep.subr.mxu0 0.0
  %2428 = vmatpush1.msra.mxu0 0.0
  %2429 = vmatprep.subr.mxu0 0.0
  %2430 = vmatpush1.msra.mxu0 0.0
  %2431 = vmatprep.subr.mxu0 0.0
  %2432 = vmatpush1.msra.mxu0 0.0
  %2433 = vmatprep.subr.mxu0 0.0
  %2434 = vmatpush1.msra.mxu0 0.0
  %2435 = vmatprep.subr.mxu0 0.0
  %2436 = vmatpush1.msra.mxu0 0.0
  %2437 = vmatprep.subr.mxu0 0.0
  %2438 = vmatpush1.msra.mxu0 0.0
  %2439 = vmatprep.subr.mxu0 0.0
  %2440 = vmatpush1.msra.mxu0 0.0
  %2441 = vmatprep.subr.mxu0 0.0
  %2442 = vmatpush1.msra.mxu0 0.0
  %2443 = vmatprep.subr.mxu0 0.0
  %2444 = vmatpush1.msra.mxu0 0.0
  %2445 = vmatprep.subr.mxu0 0.0
  %2446 = vmatpush1.msra.mxu0 0.0
  %2447 = vmatprep.subr.mxu0 0.0
  %2448 = vmatpush1.msra.mxu0 0.0
  %2449 = vmatprep.subr.mxu0 0.0
  %2450 = vmatpush1.msra.mxu0 0.0
  %2451 = vmatprep.mubr.f32.mxu0 0.0
  %2452 = vmatmul.mubr.f32.gmra.mrb[0].mxu0 %v2385
  %v2453 = vpop.f32.mrb[0].mxu0
  %v2454 = vadd.f32 0.0, %v2453
  %v2455 = vpop.f32.mrb[0].mxu0
  %2456 = vdwg.mxu0
  %v2457 = vmax.f32 %v2454, 0.0
  %v2458 = vld [vmem:[%s7] sm:$0xff]
  %v2459 = vld [vmem:[%s7 + $0x8] sm:$0xff]
  %v2460 = vld [vmem:[%s7 + $0x10] sm:$0xff]
  %v2461 = vld [vmem:[%s7 + $0x18] sm:$0xff]
  %v2463 = vsel %vm2383, %v2457, 0
  %2465 = vmatprep.subr.mxu0 0.0
  %2466 = vmatpush1.msra.mxu0 %v2458
  %2467 = vmatprep.subr.mxu0 0.0
  %2468 = vmatpush1.msra.mxu0 %v2459
  %2469 = vmatprep.subr.mxu0 0.0
  %2470 = vmatpush1.msra.mxu0 %v2460
  %2471 = vmatprep.subr.mxu0 0.0
  %2472 = vmatpush1.msra.mxu0 %v2461
  %2473 = vmatprep.subr.mxu0 0.0
  %2474 = vmatpush1.msra.mxu0 0.0
  %2475 = vmatprep.subr.mxu0 0.0
  %2476 = vmatpush1.msra.mxu0 0.0
  %2477 = vmatprep.subr.mxu0 0.0
  %2478 = vmatpush1.msra.mxu0 0.0
  %2479 = vmatprep.subr.mxu0 0.0
  %2480 = vmatpush1.msra.mxu0 0.0
  %2481 = vmatprep.subr.mxu0 0.0
  %2482 = vmatpush1.msra.mxu0 0.0
  %2483 = vmatprep.subr.mxu0 0.0
  %2484 = vmatpush1.msra.mxu0 0.0
  %2485 = vmatprep.subr.mxu0 0.0
  %2486 = vmatpush1.msra.mxu0 0.0
  %2487 = vmatprep.subr.mxu0 0.0
  %2488 = vmatpush1.msra.mxu0 0.0
  %2489 = vmatprep.subr.mxu0 0.0
  %2490 = vmatpush1.msra.mxu0 0.0
  %2491 = vmatprep.subr.mxu0 0.0
  %2492 = vmatpush1.msra.mxu0 0.0
  %2493 = vmatprep.subr.mxu0 0.0
  %2494 = vmatpush1.msra.mxu0 0.0
  %2495 = vmatprep.subr.mxu0 0.0
  %2496 = vmatpush1.msra.mxu0 0.0
  %2497 = vmatprep.subr.mxu0 0.0
  %2498 = vmatpush1.msra.mxu0 0.0
  %2499 = vmatprep.subr.mxu0 0.0
  %2500 = vmatpush1.msra.mxu0 0.0
  %2501 = vmatprep.subr.mxu0 0.0
  %2502 = vmatpush1.msra.mxu0 0.0
  %2503 = vmatprep.subr.mxu0 0.0
  %2504 = vmatpush1.msra.mxu0 0.0
  %2505 = vmatprep.subr.mxu0 0.0
  %2506 = vmatpush1.msra.mxu0 0.0
  %2507 = vmatprep.subr.mxu0 0.0
  %2508 = vmatpush1.msra.mxu0 0.0
  %2509 = vmatprep.subr.mxu0 0.0
  %2510 = vmatpush1.msra.mxu0 0.0
  %2511 = vmatprep.subr.mxu0 0.0
  %2512 = vmatpush1.msra.mxu0 0.0
  %2513 = vmatprep.subr.mxu0 0.0
  %2514 = vmatpush1.msra.mxu0 0.0
  %2515 = vmatprep.subr.mxu0 0.0
  %2516 = vmatpush1.msra.mxu0 0.0
  %2517 = vmatprep.subr.mxu0 0.0
  %2518 = vmatpush1.msra.mxu0 0.0
  %2519 = vmatprep.subr.mxu0 0.0
  %2520 = vmatpush1.msra.mxu0 0.0
  %2521 = vmatprep.subr.mxu0 0.0
  %2522 = vmatpush1.msra.mxu0 0.0
  %2523 = vmatprep.subr.mxu0 0.0
  %2524 = vmatpush1.msra.mxu0 0.0
  %2525 = vmatprep.subr.mxu0 0.0
  %2526 = vmatpush1.msra.mxu0 0.0
  %2527 = vmatprep.subr.mxu0 0.0
  %2528 = vmatpush1.msra.mxu0 0.0
  %2529 = vmatprep.mubr.f32.mxu0 0.0
  %2530 = vmatmul.mubr.f32.gmra.mrb[0].mxu0 %v2463
  %v2531 = vpop.f32.mrb[0].mxu0
  %v2532 = vadd.f32 0.0, %v2531
  %v2533 = vpop.f32.mrb[0].mxu0
  %2534 = vdwg.mxu0
  %2535 = vst.msk [vmem:[%s9] sm:$0x3] %vm2377, %v2532
  // Predicated region
  $region34: #{cl_forward.7} parent=0 // pred_check
    _
  $region35: #{cl_forward.7} parent=0 // pred_check_branch
    %2537 = sbr.rel (0) target = $region37
  $region36: #{cl_forward.7} parent=0 // pred_region
    _
  $region37: #{cl_forward.7} parent=0 // pred_fallthru
    _
  // Predicated region
  $region38: #{cl_forward.7} parent=0 // pred_check
    _
  $region39: #{cl_forward.7} parent=0 // pred_check_branch
    %2539 = sbr.rel (0) target = $region41
  $region40: #{cl_forward.7} parent=0 // pred_region
    _
  $region41: #{cl_forward.7} parent=0 // pred_fallthru
    _
  // Predicated region
  $region42: #{cl_forward.7} parent=0 // pred_check
    _
  $region43: #{cl_forward.7} parent=0 // pred_check_branch
    %2541 = sbr.rel (0) target = $region45
  $region44: #{cl_forward.7} parent=0 // pred_region
    _
  $region45: #{cl_forward.7} parent=0 // pred_fallthru
    _
  // Predicated region
  $region46: #{cl_forward.7} parent=0 // pred_check
    _
  $region47: #{cl_forward.7} parent=0 // pred_check_branch
    %2543 = sbr.rel (0) target = $region49
  $region48: #{cl_forward.7} parent=0 // pred_region
    _
  $region49: #{cl_forward.7} parent=0 // pred_fallthru
    _

</llo_original>
